<compile_context>
chip_gen: v5e
topology: v5e:2x2
jax: 0.10.0
libtpu: 0.0.40
codegen_flags: <defaults>
</compile_context>

<pallas_src>
import math
from functools import partial

import jax
import jax.numpy as jnp
from jax.experimental import pallas as pl
from jax.experimental.pallas import tpu as pltpu

# ----------------------- small config (consistent with forward) ----------------
B = 2
C = 3
IMG = 32
PATCH = 8                      # 4x4 = 16 patches
EMBED = 32
DEPTH = 2
NUM_HEADS = 4
DEC_EMBED = 32
DEC_DEPTH = 2
DEC_HEADS = 4
MLP_RATIO = 4.0
MASK_RATIO = 0.6875            # len_keep = 5 -> decoder tokens (after cls drop) = 4 = 2x2
SEQ_PAD = 8                    # pad token sequences to a multiple of 8 sublanes

_INV_SQRT2 = 1.0 / math.sqrt(2.0)


# ================================ Pallas kernels ================================
def _gelu(x):
    # exact (erf) GELU, matching nn.GELU()
    return 0.5 * x * (1.0 + jax.lax.erf(x * _INV_SQRT2))


def _ln(x, g, b, eps=1e-5):
    mu = jnp.mean(x, axis=-1, keepdims=True)
    var = jnp.mean(jnp.square(x - mu), axis=-1, keepdims=True)
    return (x - mu) * jax.lax.rsqrt(var + eps) * g + b


# ---- patch embed: patchify-matmul + bias + pos-embed add, one launch ----------
def _embed_kernel(x_ref, w_ref, b_ref, pos_ref, o_ref):
    acc = (jnp.dot(x_ref[...].astype(jnp.float32),
                   w_ref[...].astype(jnp.float32),
                   preferred_element_type=jnp.float32)
           + b_ref[...] + pos_ref[...])
    o_ref[...] = acc.astype(o_ref.dtype)


def embed_with_pos(x2d, w, b, pos2d, rows_per_block):
    """x2d: (M, K), w: (K, N), b: (N,), pos2d: (M, N) -> (M, N)."""
    M, K = x2d.shape
    N = w.shape[1]
    return pl.pallas_call(
        _embed_kernel,
        out_shape=jax.ShapeDtypeStruct((M, N), x2d.dtype),
        grid=(M // rows_per_block,),
        in_specs=[
            pl.BlockSpec((rows_per_block, K), lambda i: (i, 0)),
            pl.BlockSpec((K, N), lambda i: (0, 0)),
            pl.BlockSpec((1, N), lambda i: (0, 0)),
            pl.BlockSpec((rows_per_block, N), lambda i: (i, 0)),
        ],
        out_specs=pl.BlockSpec((rows_per_block, N), lambda i: (i, 0)),
        compiler_params=pltpu.CompilerParams(dimension_semantics=("parallel",)),
    )(x2d, w, b.reshape(1, N), pos2d)


# ---- fused transformer STACK: depth blocks + final norm (+ optional head) -----
def _stack_kernel(*refs, depth, num_heads, seq_valid, fuse_head):
    """All `depth` timm ViT Blocks + final LayerNorm (+ optional linear head),
    for ONE batch element's padded (Sp, D) token matrix.  Everything stays in
    registers/VMEM; heads are split with static slices and merged with a
    single concatenate (no scratch, no masked partial stores).  Padded key
    positions (>= seq_valid) are masked out of the softmax."""
    if fuse_head:
        (x_ref, ln1_g, ln1_b, qkv_w, qkv_b, proj_w, proj_b, ln2_g, ln2_b,
         fc1_w, fc1_b, fc2_w, fc2_b, norm_g, norm_b, head_w, head_b,
         o_ref) = refs
    else:
        (x_ref, ln1_g, ln1_b, qkv_w, qkv_b, proj_w, proj_b, ln2_g, ln2_b,
         fc1_w, fc1_b, fc2_w, fc2_b, norm_g, norm_b, o_ref) = refs

    Sp, D = x_ref.shape
    dh = D // num_heads
    scale = dh ** -0.5
    x = x_ref[...].astype(jnp.float32)                       # (Sp, D)

    key_ids = jax.lax.broadcasted_iota(jnp.int32, (1, Sp), 1)
    key_bias = jnp.where(key_ids < seq_valid, 0.0, -1e30).astype(jnp.float32)

    # TODO(synk): at real MAE sizes (D=1024, hidden=4096) per-layer f32 weights
    # (~48 MB) exceed v7x's 64 MiB VMEM; switch to bf16 operands and tiled
    # (tm,tn,tk) matmul grids / streamed weight DMA instead of this
    # fully-resident static depth loop.
    for l in range(depth):
        # ---- LN1 + fused QKV ----
        xn = _ln(x, ln1_g[l], ln1_b[l])
        qkv = jnp.dot(xn, qkv_w[l].astype(jnp.float32),
                      preferred_element_type=jnp.float32) + qkv_b[l]   # (Sp, 3D)

        # ---- multi-head attention, register-resident, single merge ----
        heads = []
        for h in range(num_heads):
            c0 = h * dh
            q = qkv[:, c0:c0 + dh]
            k = qkv[:, D + c0:D + c0 + dh]
            v = qkv[:, 2 * D + c0:2 * D + c0 + dh]
            s = jax.lax.dot_general(q, k, (((1,), (1,)), ((), ())),
                                    preferred_element_type=jnp.float32) * scale
            s = s + key_bias
            s = s - jnp.max(s, axis=-1, keepdims=True)
            e = jnp.exp(s)
            p = e * pl.reciprocal(jnp.sum(e, axis=-1, keepdims=True), approx=True)
            heads.append(jnp.dot(p, v, preferred_element_type=jnp.float32))
        attn_out = jnp.concatenate(heads, axis=-1)            # (Sp, D) one write

        # ---- output projection + residual ----
        x = x + (jnp.dot(attn_out, proj_w[l].astype(jnp.float32),
                         preferred_element_type=jnp.float32) + proj_b[l])

        # ---- LN2 + MLP(GELU) + residual ----
        xn2 = _ln(x, ln2_g[l], ln2_b[l])
        h1 = _gelu(jnp.dot(xn2, fc1_w[l].astype(jnp.float32),
                           preferred_element_type=jnp.float32) + fc1_b[l])
        x = x + (jnp.dot(h1, fc2_w[l].astype(jnp.float32),
                         preferred_element_type=jnp.float32) + fc2_b[l])

    # ---- epilogue: final LayerNorm (+ optional fused linear head) ----
    x = _ln(x, norm_g[...], norm_b[...])
    if fuse_head:
        x = jnp.dot(x, head_w[...].astype(jnp.float32),
                    preferred_element_type=jnp.float32) + head_b[...]
    o_ref[...] = x.astype(o_ref.dtype)


def fused_stack(x, stk, norm_g, norm_b, *, num_heads, seq_valid,
                head_w=None, head_b=None):
    """x: (B, Sp, D) padded tokens -> (B, Sp, out_dim).  One pallas_call runs
    the whole block stack; grid is over batch ('parallel' for v7x 2-TC)."""
    Bx, Sp, D = x.shape
    depth = stk["qkv_w"].shape[0]
    fuse_head = head_w is not None
    out_dim = head_w.shape[1] if fuse_head else D
    xf = x.reshape(Bx * Sp, D)

    def full2(a):
        return pl.BlockSpec(a.shape, lambda b: (0, 0))

    def full3(a):
        return pl.BlockSpec(a.shape, lambda b: (0, 0, 0))

    w_list = [stk["ln1_g"], stk["ln1_b"], stk["qkv_w"], stk["qkv_b"],
              stk["proj_w"], stk["proj_b"], stk["ln2_g"], stk["ln2_b"],
              stk["fc1_w"], stk["fc1_b"], stk["fc2_w"], stk["fc2_b"]]
    w_specs = [full3(a) for a in w_list]
    ng = norm_g.reshape(1, D)
    nb = norm_b.reshape(1, D)
    w_list += [ng, nb]
    w_specs += [full2(ng), full2(nb)]
    if fuse_head:
        hb = head_b.reshape(1, out_dim)
        w_list += [head_w, hb]
        w_specs += [full2(head_w), full2(hb)]

    out = pl.pallas_call(
        partial(_stack_kernel, depth=depth, num_heads=num_heads,
                seq_valid=seq_valid, fuse_head=fuse_head),
        out_shape=jax.ShapeDtypeStruct((Bx * Sp, out_dim), x.dtype),
        grid=(Bx,),
        in_specs=[pl.BlockSpec((Sp, D), lambda b: (b, 0))] + w_specs,
        out_specs=pl.BlockSpec((Sp, out_dim), lambda b: (b, 0)),
        compiler_params=pltpu.CompilerParams(
            dimension_semantics=("parallel",)),
    )(xf, *w_list)
    return out.reshape(Bx, Sp, out_dim)


# ============================ sin-cos positional embed ==========================
def _get_1d_sincos(embed_dim, pos):
    omega = jnp.arange(embed_dim // 2, dtype=jnp.float32) / (embed_dim / 2.0)
    omega = 1.0 / (10000.0 ** omega)
    out = jnp.einsum("m,d->md", pos.reshape(-1).astype(jnp.float32), omega)
    return jnp.concatenate([jnp.sin(out), jnp.cos(out)], axis=1)


def get_2d_sincos_pos_embed_with_resolution(embed_dim, grid_size, res, cls_token=False):
    """res: (N,) per-sample resolution scale -> (N, grid_size**2 (+1), embed_dim)."""
    coords = jnp.arange(grid_size, dtype=jnp.float32)
    gw, gh = jnp.meshgrid(coords, coords)            # grid[0]=w varies fastest, grid[1]=h
    grid = jnp.stack([gw, gh], axis=0)               # (2, gs, gs)
    grid = jnp.einsum("chw,n->cnhw", grid, res.astype(jnp.float32))
    n = res.shape[0]
    emb_h = _get_1d_sincos(embed_dim // 2, grid[0])
    emb_w = _get_1d_sincos(embed_dim // 2, grid[1])
    pos = jnp.concatenate([emb_h, emb_w], axis=1).reshape(n, grid_size * grid_size, embed_dim)
    if cls_token:
        pos = jnp.concatenate([jnp.zeros((n, 1, embed_dim), jnp.float32), pos], axis=1)
    return pos


# ================================ model pieces =================================
def random_masking(x, mask_ratio, rng):
    N, L, D = x.shape
    len_keep = int(L * (1 - mask_ratio))
    noise = jax.random.uniform(rng, (N, L))
    # NOTE: jnp.argsort tie-breaking may differ from torch.argsort; masks are
    # statistically equivalent but not bit-identical to the PyTorch reference.
    ids_shuffle = jnp.argsort(noise, axis=1)
    ids_restore = jnp.argsort(ids_shuffle, axis=1)
    ids_keep = ids_shuffle[:, :len_keep]
    x_masked = jnp.take_along_axis(x, ids_keep[:, :, None], axis=1)
    mask = jnp.ones((N, L), jnp.float32).at[:, :len_keep].set(0.0)
    mask = jnp.take_along_axis(mask, ids_restore, axis=1)
    return x_masked, mask, ids_restore, len_keep


def forward_encoder(params, imgs, mask_ratio, input_res, rng):
    Bn, Cn, H, W = imgs.shape
    p = PATCH
    h = H // p
    w = W // p
    num_patches = h * w

    pos_embed = get_2d_sincos_pos_embed_with_resolution(
        EMBED, int(num_patches ** 0.5), input_res, cls_token=True)

    # patchify (Conv2d kernel=stride=p as matmul) + bias + pos-embed add, 1 launch
    xp = imgs.reshape(Bn, Cn, h, p, w, p)
    xp = jnp.transpose(xp, (0, 2, 4, 1, 3, 5)).reshape(Bn * num_patches, Cn * p * p)
    pos_patch = pos_embed[:, 1:, :].reshape(Bn * num_patches, EMBED)
    x = embed_with_pos(xp, params["patch_w"], params["patch_b"], pos_patch,
                       rows_per_block=num_patches)
    x = x.reshape(Bn, num_patches, EMBED)

    x, mask, ids_restore, len_keep = random_masking(x, mask_ratio, rng)

    cls_token = params["cls_token"] + pos_embed[:, :1, :]        # (B, 1, D)
    S = 1 + len_keep
    pad = jnp.zeros((Bn, SEQ_PAD - S, EMBED), x.dtype)
    x = jnp.concatenate([cls_token, x, pad], axis=1)             # (B, SEQ_PAD, D)

    # Whole encoder stack + final norm + decoder_embed linear: ONE pallas_call.
    x = fused_stack(x, params["enc_stack"], params["norm_g"], params["norm_b"],
                    num_heads=NUM_HEADS, seq_valid=S,
                    head_w=params["dec_embed_w"], head_b=params["dec_embed_b"])
    x = x[:, :S, :]                                              # (B, S, DEC_EMBED)

    pos_embed_encoder = get_2d_sincos_pos_embed_with_resolution(
        DEC_EMBED, int(num_patches ** 0.5), input_res, cls_token=True)
    return x, mask, ids_restore, pos_embed_encoder, len_keep


def forward_decoder(params, x, ids_restore, target_res, target_dim,
                    pos_embed_encoder, mask, len_keep):
    # x is already decoder-embedded (fused into the encoder stack epilogue).
    Bn, S1, _ = x.shape

    pos_embed = get_2d_sincos_pos_embed_with_resolution(
        DEC_EMBED, target_dim, target_res, cls_token=True)

    L = ids_restore.shape[1]
    mask_tokens = jnp.broadcast_to(params["mask_token"], (Bn, L + 1 - S1, DEC_EMBED))
    x_ = jnp.concatenate([x[:, 1:, :], mask_tokens], axis=1)
    x_ = jnp.take_along_axis(x_, ids_restore[:, :, None], axis=1)
    x = jnp.concatenate([x[:, :1, :], x_], axis=1)
    x = x + pos_embed_encoder

    # use_mask_token = False default path: keep only `num_masked` (= len_keep) tokens.
    # NOTE: this intentionally replicates the PyTorch reference exactly — mask
    # indices (patch-only, length L) index the cls-augmented sequence directly,
    # and argsort tie-breaking may differ from torch's descending sort.
    num_masked = len_keep
    mask_idx = jnp.argsort(-mask, axis=-1)[:, :num_masked]
    x = jnp.take_along_axis(x, mask_idx[:, :, None], axis=1)

    pos_embed_raw = pos_embed
    x = x[:, 1:, :]
    n, p_2, d = x.shape
    p = int(p_2 ** 0.5)

    pad = jnp.zeros((n, SEQ_PAD - p_2, d), x.dtype)
    x = jnp.concatenate([x, pad], axis=1)
    # Whole decoder stack + decoder norm: ONE pallas_call.
    x = fused_stack(x, params["dec_stack"], params["dec_norm_g"], params["dec_norm_b"],
                    num_heads=DEC_HEADS, seq_valid=p_2)
    x = x[:, :p_2, :]

    x = jnp.transpose(x.reshape(n, p, p, d), (0, 3, 1, 2))       # (N, D, p, p)
    # TODO(synk): FPNHead / FCNHead / GPTBlock definitions are not provided in the
    # reference, so the decoder returns the (N, D, p, p) feature map produced right
    # before self.fpn(x) instead of the FCN-head predictions.
    return x, pos_embed_raw, None


def forward(params, imgs, targets, mask_ratio, input_res, target_res, rng):
    latent, mask, ids_restore, pos_embed_encoder, len_keep = forward_encoder(
        params, imgs, mask_ratio, input_res, rng)
    target_dim = targets.shape[2] // PATCH
    pred, pos_embed_decoder, ids = forward_decoder(
        params, latent, ids_restore, target_res, target_dim,
        pos_embed_encoder, mask, len_keep)
    # TODO(synk): forward_loss / split_pred depend on the FCN-head image outputs
    # (pred_high, pred_low) which require the missing FPNHead/FCNHead definitions.
    loss = None
    return loss, pred, mask, 0, 1, pos_embed_encoder, pos_embed_decoder, imgs


# ================================== init =======================================
def _xavier(key, fan_in, fan_out):
    bound = math.sqrt(6.0 / (fan_in + fan_out))
    return jax.random.uniform(key, (fan_in, fan_out), jnp.float32, -bound, bound)


def _init_block(key, dim, mlp_ratio):
    hidden = int(dim * mlp_ratio)
    ks = jax.random.split(key, 4)
    return dict(
        ln1_g=jnp.ones((dim,), jnp.float32), ln1_b=jnp.zeros((dim,), jnp.float32),
        qkv_w=_xavier(ks[0], dim, 3 * dim), qkv_b=jnp.zeros((3 * dim,), jnp.float32),
        proj_w=_xavier(ks[1], dim, dim), proj_b=jnp.zeros((dim,), jnp.float32),
        ln2_g=jnp.ones((dim,), jnp.float32), ln2_b=jnp.zeros((dim,), jnp.float32),
        fc1_w=_xavier(ks[2], dim, hidden), fc1_b=jnp.zeros((hidden,), jnp.float32),
        fc2_w=_xavier(ks[3], hidden, dim), fc2_b=jnp.zeros((dim,), jnp.float32),
    )


def _stack_block_params(blocks):
    """Stack per-block params along a leading depth axis for the fused stack kernel."""
    def s(key, add_row=False):
        arrs = [blk[key] for blk in blocks]
        if add_row:
            arrs = [a.reshape(1, -1) for a in arrs]
        return jnp.stack(arrs, axis=0)
    return dict(
        ln1_g=s("ln1_g", True), ln1_b=s("ln1_b", True),
        qkv_w=s("qkv_w"), qkv_b=s("qkv_b", True),
        proj_w=s("proj_w"), proj_b=s("proj_b", True),
        ln2_g=s("ln2_g", True), ln2_b=s("ln2_b", True),
        fc1_w=s("fc1_w"), fc1_b=s("fc1_b", True),
        fc2_w=s("fc2_w"), fc2_b=s("fc2_b", True),
    )


def init_params(key):
    ks = jax.random.split(key, 3 + DEPTH + DEC_DEPTH)
    patch_in = C * PATCH * PATCH
    enc_blocks = [_init_block(ks[3 + i], EMBED, MLP_RATIO) for i in range(DEPTH)]
    dec_blocks = [_init_block(ks[3 + DEPTH + i], DEC_EMBED, MLP_RATIO)
                  for i in range(DEC_DEPTH)]
    return dict(
        patch_w=_xavier(ks[0], patch_in, EMBED),              # conv weight, xavier on flattened view
        patch_b=jnp.zeros((EMBED,), jnp.float32),
        cls_token=0.02 * jax.random.normal(ks[1], (1, 1, EMBED), jnp.float32),
        mask_token=jnp.zeros((1, 1, DEC_EMBED), jnp.float32), # use_mask_token=False -> stays zeros
        norm_g=jnp.ones((EMBED,), jnp.float32), norm_b=jnp.zeros((EMBED,), jnp.float32),
        dec_embed_w=_xavier(ks[2], EMBED, DEC_EMBED),
        dec_embed_b=jnp.zeros((DEC_EMBED,), jnp.float32),
        dec_norm_g=jnp.ones((DEC_EMBED,), jnp.float32),
        dec_norm_b=jnp.zeros((DEC_EMBED,), jnp.float32),
        enc_stack=_stack_block_params(enc_blocks),
        dec_stack=_stack_block_params(dec_blocks),
    )


# ================================== main =======================================
if __name__ == "__main__":
    key = jax.random.PRNGKey(0)
    pkey, dkey, mkey = jax.random.split(key, 3)

    params = init_params(pkey)
    imgs = jax.random.normal(dkey, (B, C, IMG, IMG), jnp.float32)
    targets = imgs
    input_res = jnp.ones((B,), jnp.float32)
    target_res = jnp.ones((B,), jnp.float32)

    fwd = jax.jit(forward, static_argnums=(3,))   # mask_ratio static
    out = fwd(params, imgs, targets, MASK_RATIO, input_res, target_res, mkey)
    loss, pred, mask, mean, var, pe_enc, pe_dec, imgs_out = out
    jax.block_until_ready((pred, mask, pe_enc, pe_dec, imgs_out))

    assert pred.shape == (B, DEC_EMBED, 2, 2)
    assert mask.shape == (B, (IMG // PATCH) ** 2)
    assert bool(jnp.all(jnp.isfinite(pred)))
    print("KERNEL_OK")
</pallas_src>

<mosaic_0001>
module attributes {stable_mosaic.version = 11 : i64} {
  func.func @_embed_kernel(%arg0: i32, %arg1: memref<16x192xf32, #tpu.memory_space<vmem>>, %arg2: memref<192x32xf32, #tpu.memory_space<vmem>>, %arg3: memref<1x32xf32, #tpu.memory_space<vmem>>, %arg4: memref<16x32xf32, #tpu.memory_space<vmem>>, %arg5: memref<16x32xf32, #tpu.memory_space<vmem>>) attributes {dimension_semantics = [#tpu.dimension_semantics<parallel>], iteration_bounds = array<i64: 2>, scalar_prefetch = 0 : i64, scratch_operands = 0 : i64, tpu.core_type = #tpu.core_type<tc>, window_params = [{transform_indices = @transform_0, window_bounds = array<i64: 16, 192>}, {pipeline_mode = #tpu.pipeline_mode<synchronous>, transform_indices = @transform_1, window_bounds = array<i64: 192, 32>}, {pipeline_mode = #tpu.pipeline_mode<synchronous>, transform_indices = @transform_2, window_bounds = array<i64: 1, 32>}, {transform_indices = @transform_3, window_bounds = array<i64: 16, 32>}, {transform_indices = @transform_4, window_bounds = array<i64: 16, 32>}]} {
    %c0 = arith.constant 0 : index
    %c0_0 = arith.constant 0 : index
    %0 = vector.load %arg1[%c0, %c0_0] : memref<16x192xf32, #tpu.memory_space<vmem>>, vector<16x192xf32>
    %c0_1 = arith.constant 0 : index
    %c0_2 = arith.constant 0 : index
    %1 = vector.load %arg2[%c0_1, %c0_2] : memref<192x32xf32, #tpu.memory_space<vmem>>, vector<192x32xf32>
    %cst = arith.constant dense<0.000000e+00> : vector<16x32xf32>
    %2 = tpu.matmul %0, %1, %cst {dimension_numbers = #tpu.dot_dimension_numbers<[1], [0], [0], [1], [0, 0, 1, 1], [], []>} : vector<16x192xf32>, vector<192x32xf32>, vector<16x32xf32> -> vector<16x32xf32>
    %c0_3 = arith.constant 0 : index
    %c0_4 = arith.constant 0 : index
    %3 = vector.load %arg3[%c0_3, %c0_4] : memref<1x32xf32, #tpu.memory_space<vmem>>, vector<1x32xf32>
    %4 = vector.broadcast %3 : vector<1x32xf32> to vector<16x32xf32>
    %5 = arith.addf %2, %4 : vector<16x32xf32>
    %c0_5 = arith.constant 0 : index
    %c0_6 = arith.constant 0 : index
    %6 = vector.load %arg4[%c0_5, %c0_6] : memref<16x32xf32, #tpu.memory_space<vmem>>, vector<16x32xf32>
    %7 = arith.addf %5, %6 : vector<16x32xf32>
    %c0_7 = arith.constant 0 : index
    %c0_8 = arith.constant 0 : index
    %8 = vector.load %arg5[%c0_7, %c0_8] : memref<16x32xf32, #tpu.memory_space<vmem>>, vector<16x32xf32>
    tpu.vector_store %arg5[%c0_7, %c0_8], %7 {strides = array<i32>} : memref<16x32xf32, #tpu.memory_space<vmem>>, vector<16x32xf32>,
    return
  }
  func.func @transform_0(%arg0: i32) -> (i32, i32) {
    %c0_i32 = arith.constant 0 : i32
    %c0_i32_0 = arith.constant 0 : i32
    return %arg0, %c0_i32 : i32, i32
  }
  func.func @transform_1(%arg0: i32) -> (i32, i32) {
    %c0_i32 = arith.constant 0 : i32
    %c0_i32_0 = arith.constant 0 : i32
    %c0_i32_1 = arith.constant 0 : i32
    return %c0_i32, %c0_i32_0 : i32, i32
  }
  func.func @transform_2(%arg0: i32) -> (i32, i32) {
    %c0_i32 = arith.constant 0 : i32
    %c0_i32_0 = arith.constant 0 : i32
    %c0_i32_1 = arith.constant 0 : i32
    return %c0_i32, %c0_i32_0 : i32, i32
  }
  func.func @transform_3(%arg0: i32) -> (i32, i32) {
    %c0_i32 = arith.constant 0 : i32
    %c0_i32_0 = arith.constant 0 : i32
    return %arg0, %c0_i32 : i32, i32
  }
  func.func @transform_4(%arg0: i32) -> (i32, i32) {
    %c0_i32 = arith.constant 0 : i32
    %c0_i32_0 = arith.constant 0 : i32
    return %arg0, %c0_i32 : i32, i32
  }
}

module attributes {stable_mosaic.version = 11 : i64} {
  func.func @_stack_kernel(%arg0: i32, %arg1: memref<8x32xf32, #tpu.memory_space<vmem>>, %arg2: memref<2x1x32xf32, #tpu.memory_space<vmem>>, %arg3: memref<2x1x32xf32, #tpu.memory_space<vmem>>, %arg4: memref<2x32x96xf32, #tpu.memory_space<vmem>>, %arg5: memref<2x1x96xf32, #tpu.memory_space<vmem>>, %arg6: memref<2x32x32xf32, #tpu.memory_space<vmem>>, %arg7: memref<2x1x32xf32, #tpu.memory_space<vmem>>, %arg8: memref<2x1x32xf32, #tpu.memory_space<vmem>>, %arg9: memref<2x1x32xf32, #tpu.memory_space<vmem>>, %arg10: memref<2x32x128xf32, #tpu.memory_space<vmem>>, %arg11: memref<2x1x128xf32, #tpu.memory_space<vmem>>, %arg12: memref<2x128x32xf32, #tpu.memory_space<vmem>>, %arg13: memref<2x1x32xf32, #tpu.memory_space<vmem>>, %arg14: memref<1x32xf32, #tpu.memory_space<vmem>>, %arg15: memref<1x32xf32, #tpu.memory_space<vmem>>, %arg16: memref<32x32xf32, #tpu.memory_space<vmem>>, %arg17: memref<1x32xf32, #tpu.memory_space<vmem>>, %arg18: memref<8x32xf32, #tpu.memory_space<vmem>>) attributes {dimension_semantics = [#tpu.dimension_semantics<parallel>], iteration_bounds = array<i64: 2>, scalar_prefetch = 0 : i64, scratch_operands = 0 : i64, tpu.core_type = #tpu.core_type<tc>, window_params = [{transform_indices = @transform_0, window_bounds = array<i64: 8, 32>}, {pipeline_mode = #tpu.pipeline_mode<synchronous>, transform_indices = @transform_1, window_bounds = array<i64: 2, 1, 32>}, {pipeline_mode = #tpu.pipeline_mode<synchronous>, transform_indices = @transform_2, window_bounds = array<i64: 2, 1, 32>}, {pipeline_mode = #tpu.pipeline_mode<synchronous>, transform_indices = @transform_3, window_bounds = array<i64: 2, 32, 96>}, {pipeline_mode = #tpu.pipeline_mode<synchronous>, transform_indices = @transform_4, window_bounds = array<i64: 2, 1, 96>}, {pipeline_mode = #tpu.pipeline_mode<synchronous>, transform_indices = @transform_5, window_bounds = array<i64: 2, 32, 32>}, {pipeline_mode = #tpu.pipeline_mode<synchronous>, transform_indices = @transform_6, window_bounds = array<i64: 2, 1, 32>}, {pipeline_mode = #tpu.pipeline_mode<synchronous>, transform_indices = @transform_7, window_bounds = array<i64: 2, 1, 32>}, {pipeline_mode = #tpu.pipeline_mode<synchronous>, transform_indices = @transform_8, window_bounds = array<i64: 2, 1, 32>}, {pipeline_mode = #tpu.pipeline_mode<synchronous>, transform_indices = @transform_9, window_bounds = array<i64: 2, 32, 128>}, {pipeline_mode = #tpu.pipeline_mode<synchronous>, transform_indices = @transform_10, window_bounds = array<i64: 2, 1, 128>}, {pipeline_mode = #tpu.pipeline_mode<synchronous>, transform_indices = @transform_11, window_bounds = array<i64: 2, 128, 32>}, {pipeline_mode = #tpu.pipeline_mode<synchronous>, transform_indices = @transform_12, window_bounds = array<i64: 2, 1, 32>}, {pipeline_mode = #tpu.pipeline_mode<synchronous>, transform_indices = @transform_13, window_bounds = array<i64: 1, 32>}, {pipeline_mode = #tpu.pipeline_mode<synchronous>, transform_indices = @transform_14, window_bounds = array<i64: 1, 32>}, {pipeline_mode = #tpu.pipeline_mode<synchronous>, transform_indices = @transform_15, window_bounds = array<i64: 32, 32>}, {pipeline_mode = #tpu.pipeline_mode<synchronous>, transform_indices = @transform_16, window_bounds = array<i64: 1, 32>}, {transform_indices = @transform_17, window_bounds = array<i64: 8, 32>}]} {
    %c0 = arith.constant 0 : index
    %c0_0 = arith.constant 0 : index
    %0 = vector.load %arg1[%c0, %c0_0] : memref<8x32xf32, #tpu.memory_space<vmem>>, vector<8x32xf32>
    %1 = tpu.iota {dimensions = array<i32: 1>} : vector<1x8xi32>
    %c6_i32 = arith.constant 6 : i32
    %2 = vector.broadcast %c6_i32 : i32 to vector<1x8xi32>
    %3 = arith.cmpi slt, %1, %2 : vector<1x8xi32>
    %cst = arith.constant 0.000000e+00 : f32
    %cst_1 = arith.constant -1.000000e+30 : f32
    %4 = vector.broadcast %cst : f32 to vector<1x8xf32>
    %5 = vector.broadcast %cst_1 : f32 to vector<1x8xf32>
    %6 = arith.select %3, %4, %5 : vector<1x8xi1>, vector<1x8xf32>
    %c0_2 = arith.constant 0 : index
    %c0_3 = arith.constant 0 : index
    %c0_4 = arith.constant 0 : index
    %7 = vector.load %arg2[%c0_2, %c0_3, %c0_4] : memref<2x1x32xf32, #tpu.memory_space<vmem>>, vector<1x1x32xf32>
    %8 = vector.shape_cast %7 : vector<1x1x32xf32> to vector<1x32xf32>
    %c0_5 = arith.constant 0 : index
    %c0_6 = arith.constant 0 : index
    %c0_7 = arith.constant 0 : index
    %9 = vector.load %arg3[%c0_5, %c0_6, %c0_7] : memref<2x1x32xf32, #tpu.memory_space<vmem>>, vector<1x1x32xf32>
    %10 = vector.shape_cast %9 : vector<1x1x32xf32> to vector<1x32xf32>
    %cst_8 = arith.constant dense<0.000000e+00> : vector<8xf32>
    %11 = vector.multi_reduction <add>, %0, %cst_8 [1] : vector<8x32xf32> to vector<8xf32>
    %12 = vector.shape_cast %11 : vector<8xf32> to vector<8x1xf32>
    %cst_9 = arith.constant 3.200000e+01 : f32
    %13 = vector.broadcast %cst_9 : f32 to vector<8x1xf32>
    %14 = arith.divf %12, %13 : vector<8x1xf32>
    %15 = vector.broadcast %14 : vector<8x1xf32> to vector<8x32xf32>
    %16 = arith.subf %0, %15 : vector<8x32xf32>
    %17 = arith.mulf %16, %16 : vector<8x32xf32>
    %cst_10 = arith.constant dense<0.000000e+00> : vector<8xf32>
    %18 = vector.multi_reduction <add>, %17, %cst_10 [1] : vector<8x32xf32> to vector<8xf32>
    %19 = vector.shape_cast %18 : vector<8xf32> to vector<8x1xf32>
    %cst_11 = arith.constant 3.200000e+01 : f32
    %20 = vector.broadcast %cst_11 : f32 to vector<8x1xf32>
    %21 = arith.divf %19, %20 : vector<8x1xf32>
    %22 = vector.broadcast %14 : vector<8x1xf32> to vector<8x32xf32>
    %23 = arith.subf %0, %22 : vector<8x32xf32>
    %cst_12 = arith.constant 9.99999974E-6 : f32
    %24 = vector.broadcast %cst_12 : f32 to vector<8x1xf32>
    %25 = arith.addf %21, %24 : vector<8x1xf32>
    %26 = math.rsqrt %25 : vector<8x1xf32>
    %27 = vector.broadcast %26 : vector<8x1xf32> to vector<8x32xf32>
    %28 = arith.mulf %23, %27 : vector<8x32xf32>
    %29 = vector.broadcast %8 : vector<1x32xf32> to vector<8x32xf32>
    %30 = arith.mulf %28, %29 : vector<8x32xf32>
    %31 = vector.broadcast %10 : vector<1x32xf32> to vector<8x32xf32>
    %32 = arith.addf %30, %31 : vector<8x32xf32>
    %c0_13 = arith.constant 0 : index
    %c0_14 = arith.constant 0 : index
    %c0_15 = arith.constant 0 : index
    %33 = vector.load %arg4[%c0_13, %c0_14, %c0_15] : memref<2x32x96xf32, #tpu.memory_space<vmem>>, vector<1x32x96xf32>
    %34 = vector.shape_cast %33 : vector<1x32x96xf32> to vector<32x96xf32>
    %cst_16 = arith.constant dense<0.000000e+00> : vector<8x96xf32>
    %35 = tpu.matmul %32, %34, %cst_16 {dimension_numbers = #tpu.dot_dimension_numbers<[1], [0], [0], [1], [0, 0, 1, 1], [], []>} : vector<8x32xf32>, vector<32x96xf32>, vector<8x96xf32> -> vector<8x96xf32>
    %c0_17 = arith.constant 0 : index
    %c0_18 = arith.constant 0 : index
    %c0_19 = arith.constant 0 : index
    %36 = vector.load %arg5[%c0_17, %c0_18, %c0_19] : memref<2x1x96xf32, #tpu.memory_space<vmem>>, vector<1x1x96xf32>
    %37 = vector.shape_cast %36 : vector<1x1x96xf32> to vector<1x96xf32>
    %38 = vector.broadcast %37 : vector<1x96xf32> to vector<8x96xf32>
    %39 = arith.addf %35, %38 : vector<8x96xf32>
    %40 = vector.extract_strided_slice %39 {offsets = [0, 0], sizes = [8, 8], strides = [1, 1]} : vector<8x96xf32> to vector<8x8xf32>
    %41 = vector.extract_strided_slice %39 {offsets = [0, 32], sizes = [8, 8], strides = [1, 1]} : vector<8x96xf32> to vector<8x8xf32>
    %42 = vector.extract_strided_slice %39 {offsets = [0, 64], sizes = [8, 8], strides = [1, 1]} : vector<8x96xf32> to vector<8x8xf32>
    %cst_20 = arith.constant dense<0.000000e+00> : vector<8x8xf32>
    %43 = tpu.matmul %40, %41, %cst_20 {dimension_numbers = #tpu.dot_dimension_numbers<[1], [1], [0], [0], [0, 0, 1, 0], [], []>} : vector<8x8xf32>, vector<8x8xf32>, vector<8x8xf32> -> vector<8x8xf32>
    %cst_21 = arith.constant 0.353553385 : f32
    %44 = vector.broadcast %cst_21 : f32 to vector<8x8xf32>
    %45 = arith.mulf %43, %44 : vector<8x8xf32>
    %46 = vector.broadcast %6 : vector<1x8xf32> to vector<8x8xf32>
    %47 = arith.addf %45, %46 : vector<8x8xf32>
    %cst_22 = arith.constant dense<0xFF800000> : vector<8xf32>
    %48 = vector.multi_reduction <maximumf>, %47, %cst_22 [1] : vector<8x8xf32> to vector<8xf32>
    %49 = vector.shape_cast %48 : vector<8xf32> to vector<8x1xf32>
    %50 = vector.broadcast %49 : vector<8x1xf32> to vector<8x8xf32>
    %51 = arith.subf %47, %50 : vector<8x8xf32>
    %52 = math.exp %51 : vector<8x8xf32>
    %cst_23 = arith.constant dense<0.000000e+00> : vector<8xf32>
    %53 = vector.multi_reduction <add>, %52, %cst_23 [1] : vector<8x8xf32> to vector<8xf32>
    %54 = vector.shape_cast %53 : vector<8xf32> to vector<8x1xf32>
    %55 = tpu.reciprocal %54 {approx = true} : vector<8x1xf32> -> vector<8x1xf32>
    %56 = vector.broadcast %55 : vector<8x1xf32> to vector<8x8xf32>
    %57 = arith.mulf %52, %56 : vector<8x8xf32>
    %cst_24 = arith.constant dense<0.000000e+00> : vector<8x8xf32>
    %58 = tpu.matmul %57, %42, %cst_24 {dimension_numbers = #tpu.dot_dimension_numbers<[1], [0], [0], [1], [0, 0, 1, 1], [], []>} : vector<8x8xf32>, vector<8x8xf32>, vector<8x8xf32> -> vector<8x8xf32>
    %59 = vector.extract_strided_slice %39 {offsets = [0, 8], sizes = [8, 8], strides = [1, 1]} : vector<8x96xf32> to vector<8x8xf32>
    %60 = vector.extract_strided_slice %39 {offsets = [0, 40], sizes = [8, 8], strides = [1, 1]} : vector<8x96xf32> to vector<8x8xf32>
    %61 = vector.extract_strided_slice %39 {offsets = [0, 72], sizes = [8, 8], strides = [1, 1]} : vector<8x96xf32> to vector<8x8xf32>
    %cst_25 = arith.constant dense<0.000000e+00> : vector<8x8xf32>
    %62 = tpu.matmul %59, %60, %cst_25 {dimension_numbers = #tpu.dot_dimension_numbers<[1], [1], [0], [0], [0, 0, 1, 0], [], []>} : vector<8x8xf32>, vector<8x8xf32>, vector<8x8xf32> -> vector<8x8xf32>
    %cst_26 = arith.constant 0.353553385 : f32
    %63 = vector.broadcast %cst_26 : f32 to vector<8x8xf32>
    %64 = arith.mulf %62, %63 : vector<8x8xf32>
    %65 = vector.broadcast %6 : vector<1x8xf32> to vector<8x8xf32>
    %66 = arith.addf %64, %65 : vector<8x8xf32>
    %cst_27 = arith.constant dense<0xFF800000> : vector<8xf32>
    %67 = vector.multi_reduction <maximumf>, %66, %cst_27 [1] : vector<8x8xf32> to vector<8xf32>
    %68 = vector.shape_cast %67 : vector<8xf32> to vector<8x1xf32>
    %69 = vector.broadcast %68 : vector<8x1xf32> to vector<8x8xf32>
    %70 = arith.subf %66, %69 : vector<8x8xf32>
    %71 = math.exp %70 : vector<8x8xf32>
    %cst_28 = arith.constant dense<0.000000e+00> : vector<8xf32>
    %72 = vector.multi_reduction <add>, %71, %cst_28 [1] : vector<8x8xf32> to vector<8xf32>
    %73 = vector.shape_cast %72 : vector<8xf32> to vector<8x1xf32>
    %74 = tpu.reciprocal %73 {approx = true} : vector<8x1xf32> -> vector<8x1xf32>
    %75 = vector.broadcast %74 : vector<8x1xf32> to vector<8x8xf32>
    %76 = arith.mulf %71, %75 : vector<8x8xf32>
    %cst_29 = arith.constant dense<0.000000e+00> : vector<8x8xf32>
    %77 = tpu.matmul %76, %61, %cst_29 {dimension_numbers = #tpu.dot_dimension_numbers<[1], [0], [0], [1], [0, 0, 1, 1], [], []>} : vector<8x8xf32>, vector<8x8xf32>, vector<8x8xf32> -> vector<8x8xf32>
    %78 = vector.extract_strided_slice %39 {offsets = [0, 16], sizes = [8, 8], strides = [1, 1]} : vector<8x96xf32> to vector<8x8xf32>
    %79 = vector.extract_strided_slice %39 {offsets = [0, 48], sizes = [8, 8], strides = [1, 1]} : vector<8x96xf32> to vector<8x8xf32>
    %80 = vector.extract_strided_slice %39 {offsets = [0, 80], sizes = [8, 8], strides = [1, 1]} : vector<8x96xf32> to vector<8x8xf32>
    %cst_30 = arith.constant dense<0.000000e+00> : vector<8x8xf32>
    %81 = tpu.matmul %78, %79, %cst_30 {dimension_numbers = #tpu.dot_dimension_numbers<[1], [1], [0], [0], [0, 0, 1, 0], [], []>} : vector<8x8xf32>, vector<8x8xf32>, vector<8x8xf32> -> vector<8x8xf32>
    %cst_31 = arith.constant 0.353553385 : f32
    %82 = vector.broadcast %cst_31 : f32 to vector<8x8xf32>
    %83 = arith.mulf %81, %82 : vector<8x8xf32>
    %84 = vector.broadcast %6 : vector<1x8xf32> to vector<8x8xf32>
    %85 = arith.addf %83, %84 : vector<8x8xf32>
    %cst_32 = arith.constant dense<0xFF800000> : vector<8xf32>
    %86 = vector.multi_reduction <maximumf>, %85, %cst_32 [1] : vector<8x8xf32> to vector<8xf32>
    %87 = vector.shape_cast %86 : vector<8xf32> to vector<8x1xf32>
    %88 = vector.broadcast %87 : vector<8x1xf32> to vector<8x8xf32>
    %89 = arith.subf %85, %88 : vector<8x8xf32>
    %90 = math.exp %89 : vector<8x8xf32>
    %cst_33 = arith.constant dense<0.000000e+00> : vector<8xf32>
    %91 = vector.multi_reduction <add>, %90, %cst_33 [1] : vector<8x8xf32> to vector<8xf32>
    %92 = vector.shape_cast %91 : vector<8xf32> to vector<8x1xf32>
    %93 = tpu.reciprocal %92 {approx = true} : vector<8x1xf32> -> vector<8x1xf32>
    %94 = vector.broadcast %93 : vector<8x1xf32> to vector<8x8xf32>
    %95 = arith.mulf %90, %94 : vector<8x8xf32>
    %cst_34 = arith.constant dense<0.000000e+00> : vector<8x8xf32>
    %96 = tpu.matmul %95, %80, %cst_34 {dimension_numbers = #tpu.dot_dimension_numbers<[1], [0], [0], [1], [0, 0, 1, 1], [], []>} : vector<8x8xf32>, vector<8x8xf32>, vector<8x8xf32> -> vector<8x8xf32>
    %97 = vector.extract_strided_slice %39 {offsets = [0, 24], sizes = [8, 8], strides = [1, 1]} : vector<8x96xf32> to vector<8x8xf32>
    %98 = vector.extract_strided_slice %39 {offsets = [0, 56], sizes = [8, 8], strides = [1, 1]} : vector<8x96xf32> to vector<8x8xf32>
    %99 = vector.extract_strided_slice %39 {offsets = [0, 88], sizes = [8, 8], strides = [1, 1]} : vector<8x96xf32> to vector<8x8xf32>
    %cst_35 = arith.constant dense<0.000000e+00> : vector<8x8xf32>
    %100 = tpu.matmul %97, %98, %cst_35 {dimension_numbers = #tpu.dot_dimension_numbers<[1], [1], [0], [0], [0, 0, 1, 0], [], []>} : vector<8x8xf32>, vector<8x8xf32>, vector<8x8xf32> -> vector<8x8xf32>
    %cst_36 = arith.constant 0.353553385 : f32
    %101 = vector.broadcast %cst_36 : f32 to vector<8x8xf32>
    %102 = arith.mulf %100, %101 : vector<8x8xf32>
    %103 = vector.broadcast %6 : vector<1x8xf32> to vector<8x8xf32>
    %104 = arith.addf %102, %103 : vector<8x8xf32>
    %cst_37 = arith.constant dense<0xFF800000> : vector<8xf32>
    %105 = vector.multi_reduction <maximumf>, %104, %cst_37 [1] : vector<8x8xf32> to vector<8xf32>
    %106 = vector.shape_cast %105 : vector<8xf32> to vector<8x1xf32>
    %107 = vector.broadcast %106 : vector<8x1xf32> to vector<8x8xf32>
    %108 = arith.subf %104, %107 : vector<8x8xf32>
    %109 = math.exp %108 : vector<8x8xf32>
    %cst_38 = arith.constant dense<0.000000e+00> : vector<8xf32>
    %110 = vector.multi_reduction <add>, %109, %cst_38 [1] : vector<8x8xf32> to vector<8xf32>
    %111 = vector.shape_cast %110 : vector<8xf32> to vector<8x1xf32>
    %112 = tpu.reciprocal %111 {approx = true} : vector<8x1xf32> -> vector<8x1xf32>
    %113 = vector.broadcast %112 : vector<8x1xf32> to vector<8x8xf32>
    %114 = arith.mulf %109, %113 : vector<8x8xf32>
    %cst_39 = arith.constant dense<0.000000e+00> : vector<8x8xf32>
    %115 = tpu.matmul %114, %99, %cst_39 {dimension_numbers = #tpu.dot_dimension_numbers<[1], [0], [0], [1], [0, 0, 1, 1], [], []>} : vector<8x8xf32>, vector<8x8xf32>, vector<8x8xf32> -> vector<8x8xf32>
    %116 = tpu.concatenate %58, %77, %96, %115 in 1 : vector<8x8xf32>, vector<8x8xf32>, vector<8x8xf32>, vector<8x8xf32> -> vector<8x32xf32>
    %c0_40 = arith.constant 0 : index
    %c0_41 = arith.constant 0 : index
    %c0_42 = arith.constant 0 : index
    %117 = vector.load %arg6[%c0_40, %c0_41, %c0_42] : memref<2x32x32xf32, #tpu.memory_space<vmem>>, vector<1x32x32xf32>
    %118 = vector.shape_cast %117 : vector<1x32x32xf32> to vector<32x32xf32>
    %cst_43 = arith.constant dense<0.000000e+00> : vector<8x32xf32>
    %119 = tpu.matmul %116, %118, %cst_43 {dimension_numbers = #tpu.dot_dimension_numbers<[1], [0], [0], [1], [0, 0, 1, 1], [], []>} : vector<8x32xf32>, vector<32x32xf32>, vector<8x32xf32> -> vector<8x32xf32>
    %c0_44 = arith.constant 0 : index
    %c0_45 = arith.constant 0 : index
    %c0_46 = arith.constant 0 : index
    %120 = vector.load %arg7[%c0_44, %c0_45, %c0_46] : memref<2x1x32xf32, #tpu.memory_space<vmem>>, vector<1x1x32xf32>
    %121 = vector.shape_cast %120 : vector<1x1x32xf32> to vector<1x32xf32>
    %122 = vector.broadcast %121 : vector<1x32xf32> to vector<8x32xf32>
    %123 = arith.addf %119, %122 : vector<8x32xf32>
    %124 = arith.addf %0, %123 : vector<8x32xf32>
    %c0_47 = arith.constant 0 : index
    %c0_48 = arith.constant 0 : index
    %c0_49 = arith.constant 0 : index
    %125 = vector.load %arg8[%c0_47, %c0_48, %c0_49] : memref<2x1x32xf32, #tpu.memory_space<vmem>>, vector<1x1x32xf32>
    %126 = vector.shape_cast %125 : vector<1x1x32xf32> to vector<1x32xf32>
    %c0_50 = arith.constant 0 : index
    %c0_51 = arith.constant 0 : index
    %c0_52 = arith.constant 0 : index
    %127 = vector.load %arg9[%c0_50, %c0_51, %c0_52] : memref<2x1x32xf32, #tpu.memory_space<vmem>>, vector<1x1x32xf32>
    %128 = vector.shape_cast %127 : vector<1x1x32xf32> to vector<1x32xf32>
    %cst_53 = arith.constant dense<0.000000e+00> : vector<8xf32>
    %129 = vector.multi_reduction <add>, %124, %cst_53 [1] : vector<8x32xf32> to vector<8xf32>
    %130 = vector.shape_cast %129 : vector<8xf32> to vector<8x1xf32>
    %cst_54 = arith.constant 3.200000e+01 : f32
    %131 = vector.broadcast %cst_54 : f32 to vector<8x1xf32>
    %132 = arith.divf %130, %131 : vector<8x1xf32>
    %133 = vector.broadcast %132 : vector<8x1xf32> to vector<8x32xf32>
    %134 = arith.subf %124, %133 : vector<8x32xf32>
    %135 = arith.mulf %134, %134 : vector<8x32xf32>
    %cst_55 = arith.constant dense<0.000000e+00> : vector<8xf32>
    %136 = vector.multi_reduction <add>, %135, %cst_55 [1] : vector<8x32xf32> to vector<8xf32>
    %137 = vector.shape_cast %136 : vector<8xf32> to vector<8x1xf32>
    %cst_56 = arith.constant 3.200000e+01 : f32
    %138 = vector.broadcast %cst_56 : f32 to vector<8x1xf32>
    %139 = arith.divf %137, %138 : vector<8x1xf32>
    %140 = vector.broadcast %132 : vector<8x1xf32> to vector<8x32xf32>
    %141 = arith.subf %124, %140 : vector<8x32xf32>
    %cst_57 = arith.constant 9.99999974E-6 : f32
    %142 = vector.broadcast %cst_57 : f32 to vector<8x1xf32>
    %143 = arith.addf %139, %142 : vector<8x1xf32>
    %144 = math.rsqrt %143 : vector<8x1xf32>
    %145 = vector.broadcast %144 : vector<8x1xf32> to vector<8x32xf32>
    %146 = arith.mulf %141, %145 : vector<8x32xf32>
    %147 = vector.broadcast %126 : vector<1x32xf32> to vector<8x32xf32>
    %148 = arith.mulf %146, %147 : vector<8x32xf32>
    %149 = vector.broadcast %128 : vector<1x32xf32> to vector<8x32xf32>
    %150 = arith.addf %148, %149 : vector<8x32xf32>
    %c0_58 = arith.constant 0 : index
    %c0_59 = arith.constant 0 : index
    %c0_60 = arith.constant 0 : index
    %151 = vector.load %arg10[%c0_58, %c0_59, %c0_60] : memref<2x32x128xf32, #tpu.memory_space<vmem>>, vector<1x32x128xf32>
    %152 = vector.shape_cast %151 : vector<1x32x128xf32> to vector<32x128xf32>
    %cst_61 = arith.constant dense<0.000000e+00> : vector<8x128xf32>
    %153 = tpu.matmul %150, %152, %cst_61 {dimension_numbers = #tpu.dot_dimension_numbers<[1], [0], [0], [1], [0, 0, 1, 1], [], []>} : vector<8x32xf32>, vector<32x128xf32>, vector<8x128xf32> -> vector<8x128xf32>
    %c0_62 = arith.constant 0 : index
    %c0_63 = arith.constant 0 : index
    %c0_64 = arith.constant 0 : index
    %154 = vector.load %arg11[%c0_62, %c0_63, %c0_64] : memref<2x1x128xf32, #tpu.memory_space<vmem>>, vector<1x1x128xf32>
    %155 = vector.shape_cast %154 : vector<1x1x128xf32> to vector<1x128xf32>
    %156 = vector.broadcast %155 : vector<1x128xf32> to vector<8x128xf32>
    %157 = arith.addf %153, %156 : vector<8x128xf32>
    %cst_65 = arith.constant 5.000000e-01 : f32
    %158 = vector.broadcast %cst_65 : f32 to vector<8x128xf32>
    %159 = arith.mulf %158, %157 : vector<8x128xf32>
    %cst_66 = arith.constant 0.707106769 : f32
    %160 = vector.broadcast %cst_66 : f32 to vector<8x128xf32>
    %161 = arith.mulf %157, %160 : vector<8x128xf32>
    %162 = math.erf %161 : vector<8x128xf32>
    %cst_67 = arith.constant 1.000000e+00 : f32
    %163 = vector.broadcast %cst_67 : f32 to vector<8x128xf32>
    %164 = arith.addf %163, %162 : vector<8x128xf32>
    %165 = arith.mulf %159, %164 : vector<8x128xf32>
    %c0_68 = arith.constant 0 : index
    %c0_69 = arith.constant 0 : index
    %c0_70 = arith.constant 0 : index
    %166 = vector.load %arg12[%c0_68, %c0_69, %c0_70] : memref<2x128x32xf32, #tpu.memory_space<vmem>>, vector<1x128x32xf32>
    %167 = vector.shape_cast %166 : vector<1x128x32xf32> to vector<128x32xf32>
    %cst_71 = arith.constant dense<0.000000e+00> : vector<8x32xf32>
    %168 = tpu.matmul %165, %167, %cst_71 {dimension_numbers = #tpu.dot_dimension_numbers<[1], [0], [0], [1], [0, 0, 1, 1], [], []>} : vector<8x128xf32>, vector<128x32xf32>, vector<8x32xf32> -> vector<8x32xf32>
    %c0_72 = arith.constant 0 : index
    %c0_73 = arith.constant 0 : index
    %c0_74 = arith.constant 0 : index
    %169 = vector.load %arg13[%c0_72, %c0_73, %c0_74] : memref<2x1x32xf32, #tpu.memory_space<vmem>>, vector<1x1x32xf32>
    %170 = vector.shape_cast %169 : vector<1x1x32xf32> to vector<1x32xf32>
    %171 = vector.broadcast %170 : vector<1x32xf32> to vector<8x32xf32>
    %172 = arith.addf %168, %171 : vector<8x32xf32>
    %173 = arith.addf %124, %172 : vector<8x32xf32>
    %c1 = arith.constant 1 : index
    %c0_75 = arith.constant 0 : index
    %c0_76 = arith.constant 0 : index
    %174 = vector.load %arg2[%c1, %c0_75, %c0_76] : memref<2x1x32xf32, #tpu.memory_space<vmem>>, vector<1x1x32xf32>
    %175 = vector.shape_cast %174 : vector<1x1x32xf32> to vector<1x32xf32>
    %c1_77 = arith.constant 1 : index
    %c0_78 = arith.constant 0 : index
    %c0_79 = arith.constant 0 : index
    %176 = vector.load %arg3[%c1_77, %c0_78, %c0_79] : memref<2x1x32xf32, #tpu.memory_space<vmem>>, vector<1x1x32xf32>
    %177 = vector.shape_cast %176 : vector<1x1x32xf32> to vector<1x32xf32>
    %cst_80 = arith.constant dense<0.000000e+00> : vector<8xf32>
    %178 = vector.multi_reduction <add>, %173, %cst_80 [1] : vector<8x32xf32> to vector<8xf32>
    %179 = vector.shape_cast %178 : vector<8xf32> to vector<8x1xf32>
    %cst_81 = arith.constant 3.200000e+01 : f32
    %180 = vector.broadcast %cst_81 : f32 to vector<8x1xf32>
    %181 = arith.divf %179, %180 : vector<8x1xf32>
    %182 = vector.broadcast %181 : vector<8x1xf32> to vector<8x32xf32>
    %183 = arith.subf %173, %182 : vector<8x32xf32>
    %184 = arith.mulf %183, %183 : vector<8x32xf32>
    %cst_82 = arith.constant dense<0.000000e+00> : vector<8xf32>
    %185 = vector.multi_reduction <add>, %184, %cst_82 [1] : vector<8x32xf32> to vector<8xf32>
    %186 = vector.shape_cast %185 : vector<8xf32> to vector<8x1xf32>
    %cst_83 = arith.constant 3.200000e+01 : f32
    %187 = vector.broadcast %cst_83 : f32 to vector<8x1xf32>
    %188 = arith.divf %186, %187 : vector<8x1xf32>
    %189 = vector.broadcast %181 : vector<8x1xf32> to vector<8x32xf32>
    %190 = arith.subf %173, %189 : vector<8x32xf32>
    %cst_84 = arith.constant 9.99999974E-6 : f32
    %191 = vector.broadcast %cst_84 : f32 to vector<8x1xf32>
    %192 = arith.addf %188, %191 : vector<8x1xf32>
    %193 = math.rsqrt %192 : vector<8x1xf32>
    %194 = vector.broadcast %193 : vector<8x1xf32> to vector<8x32xf32>
    %195 = arith.mulf %190, %194 : vector<8x32xf32>
    %196 = vector.broadcast %175 : vector<1x32xf32> to vector<8x32xf32>
    %197 = arith.mulf %195, %196 : vector<8x32xf32>
    %198 = vector.broadcast %177 : vector<1x32xf32> to vector<8x32xf32>
    %199 = arith.addf %197, %198 : vector<8x32xf32>
    %c1_85 = arith.constant 1 : index
    %c0_86 = arith.constant 0 : index
    %c0_87 = arith.constant 0 : index
    %200 = vector.load %arg4[%c1_85, %c0_86, %c0_87] : memref<2x32x96xf32, #tpu.memory_space<vmem>>, vector<1x32x96xf32>
    %201 = vector.shape_cast %200 : vector<1x32x96xf32> to vector<32x96xf32>
    %cst_88 = arith.constant dense<0.000000e+00> : vector<8x96xf32>
    %202 = tpu.matmul %199, %201, %cst_88 {dimension_numbers = #tpu.dot_dimension_numbers<[1], [0], [0], [1], [0, 0, 1, 1], [], []>} : vector<8x32xf32>, vector<32x96xf32>, vector<8x96xf32> -> vector<8x96xf32>
    %c1_89 = arith.constant 1 : index
    %c0_90 = arith.constant 0 : index
    %c0_91 = arith.constant 0 : index
    %203 = vector.load %arg5[%c1_89, %c0_90, %c0_91] : memref<2x1x96xf32, #tpu.memory_space<vmem>>, vector<1x1x96xf32>
    %204 = vector.shape_cast %203 : vector<1x1x96xf32> to vector<1x96xf32>
    %205 = vector.broadcast %204 : vector<1x96xf32> to vector<8x96xf32>
    %206 = arith.addf %202, %205 : vector<8x96xf32>
    %207 = vector.extract_strided_slice %206 {offsets = [0, 0], sizes = [8, 8], strides = [1, 1]} : vector<8x96xf32> to vector<8x8xf32>
    %208 = vector.extract_strided_slice %206 {offsets = [0, 32], sizes = [8, 8], strides = [1, 1]} : vector<8x96xf32> to vector<8x8xf32>
    %209 = vector.extract_strided_slice %206 {offsets = [0, 64], sizes = [8, 8], strides = [1, 1]} : vector<8x96xf32> to vector<8x8xf32>
    %cst_92 = arith.constant dense<0.000000e+00> : vector<8x8xf32>
    %210 = tpu.matmul %207, %208, %cst_92 {dimension_numbers = #tpu.dot_dimension_numbers<[1], [1], [0], [0], [0, 0, 1, 0], [], []>} : vector<8x8xf32>, vector<8x8xf32>, vector<8x8xf32> -> vector<8x8xf32>
    %cst_93 = arith.constant 0.353553385 : f32
    %211 = vector.broadcast %cst_93 : f32 to vector<8x8xf32>
    %212 = arith.mulf %210, %211 : vector<8x8xf32>
    %213 = vector.broadcast %6 : vector<1x8xf32> to vector<8x8xf32>
    %214 = arith.addf %212, %213 : vector<8x8xf32>
    %cst_94 = arith.constant dense<0xFF800000> : vector<8xf32>
    %215 = vector.multi_reduction <maximumf>, %214, %cst_94 [1] : vector<8x8xf32> to vector<8xf32>
    %216 = vector.shape_cast %215 : vector<8xf32> to vector<8x1xf32>
    %217 = vector.broadcast %216 : vector<8x1xf32> to vector<8x8xf32>
    %218 = arith.subf %214, %217 : vector<8x8xf32>
    %219 = math.exp %218 : vector<8x8xf32>
    %cst_95 = arith.constant dense<0.000000e+00> : vector<8xf32>
    %220 = vector.multi_reduction <add>, %219, %cst_95 [1] : vector<8x8xf32> to vector<8xf32>
    %221 = vector.shape_cast %220 : vector<8xf32> to vector<8x1xf32>
    %222 = tpu.reciprocal %221 {approx = true} : vector<8x1xf32> -> vector<8x1xf32>
    %223 = vector.broadcast %222 : vector<8x1xf32> to vector<8x8xf32>
    %224 = arith.mulf %219, %223 : vector<8x8xf32>
    %cst_96 = arith.constant dense<0.000000e+00> : vector<8x8xf32>
    %225 = tpu.matmul %224, %209, %cst_96 {dimension_numbers = #tpu.dot_dimension_numbers<[1], [0], [0], [1], [0, 0, 1, 1], [], []>} : vector<8x8xf32>, vector<8x8xf32>, vector<8x8xf32> -> vector<8x8xf32>
    %226 = vector.extract_strided_slice %206 {offsets = [0, 8], sizes = [8, 8], strides = [1, 1]} : vector<8x96xf32> to vector<8x8xf32>
    %227 = vector.extract_strided_slice %206 {offsets = [0, 40], sizes = [8, 8], strides = [1, 1]} : vector<8x96xf32> to vector<8x8xf32>
    %228 = vector.extract_strided_slice %206 {offsets = [0, 72], sizes = [8, 8], strides = [1, 1]} : vector<8x96xf32> to vector<8x8xf32>
    %cst_97 = arith.constant dense<0.000000e+00> : vector<8x8xf32>
    %229 = tpu.matmul %226, %227, %cst_97 {dimension_numbers = #tpu.dot_dimension_numbers<[1], [1], [0], [0], [0, 0, 1, 0], [], []>} : vector<8x8xf32>, vector<8x8xf32>, vector<8x8xf32> -> vector<8x8xf32>
    %cst_98 = arith.constant 0.353553385 : f32
    %230 = vector.broadcast %cst_98 : f32 to vector<8x8xf32>
    %231 = arith.mulf %229, %230 : vector<8x8xf32>
    %232 = vector.broadcast %6 : vector<1x8xf32> to vector<8x8xf32>
    %233 = arith.addf %231, %232 : vector<8x8xf32>
    %cst_99 = arith.constant dense<0xFF800000> : vector<8xf32>
    %234 = vector.multi_reduction <maximumf>, %233, %cst_99 [1] : vector<8x8xf32> to vector<8xf32>
    %235 = vector.shape_cast %234 : vector<8xf32> to vector<8x1xf32>
    %236 = vector.broadcast %235 : vector<8x1xf32> to vector<8x8xf32>
    %237 = arith.subf %233, %236 : vector<8x8xf32>
    %238 = math.exp %237 : vector<8x8xf32>
    %cst_100 = arith.constant dense<0.000000e+00> : vector<8xf32>
    %239 = vector.multi_reduction <add>, %238, %cst_100 [1] : vector<8x8xf32> to vector<8xf32>
    %240 = vector.shape_cast %239 : vector<8xf32> to vector<8x1xf32>
    %241 = tpu.reciprocal %240 {approx = true} : vector<8x1xf32> -> vector<8x1xf32>
    %242 = vector.broadcast %241 : vector<8x1xf32> to vector<8x8xf32>
    %243 = arith.mulf %238, %242 : vector<8x8xf32>
    %cst_101 = arith.constant dense<0.000000e+00> : vector<8x8xf32>
    %244 = tpu.matmul %243, %228, %cst_101 {dimension_numbers = #tpu.dot_dimension_numbers<[1], [0], [0], [1], [0, 0, 1, 1], [], []>} : vector<8x8xf32>, vector<8x8xf32>, vector<8x8xf32> -> vector<8x8xf32>
    %245 = vector.extract_strided_slice %206 {offsets = [0, 16], sizes = [8, 8], strides = [1, 1]} : vector<8x96xf32> to vector<8x8xf32>
    %246 = vector.extract_strided_slice %206 {offsets = [0, 48], sizes = [8, 8], strides = [1, 1]} : vector<8x96xf32> to vector<8x8xf32>
    %247 = vector.extract_strided_slice %206 {offsets = [0, 80], sizes = [8, 8], strides = [1, 1]} : vector<8x96xf32> to vector<8x8xf32>
    %cst_102 = arith.constant dense<0.000000e+00> : vector<8x8xf32>
    %248 = tpu.matmul %245, %246, %cst_102 {dimension_numbers = #tpu.dot_dimension_numbers<[1], [1], [0], [0], [0, 0, 1, 0], [], []>} : vector<8x8xf32>, vector<8x8xf32>, vector<8x8xf32> -> vector<8x8xf32>
    %cst_103 = arith.constant 0.353553385 : f32
    %249 = vector.broadcast %cst_103 : f32 to vector<8x8xf32>
    %250 = arith.mulf %248, %249 : vector<8x8xf32>
    %251 = vector.broadcast %6 : vector<1x8xf32> to vector<8x8xf32>
    %252 = arith.addf %250, %251 : vector<8x8xf32>
    %cst_104 = arith.constant dense<0xFF800000> : vector<8xf32>
    %253 = vector.multi_reduction <maximumf>, %252, %cst_104 [1] : vector<8x8xf32> to vector<8xf32>
    %254 = vector.shape_cast %253 : vector<8xf32> to vector<8x1xf32>
    %255 = vector.broadcast %254 : vector<8x1xf32> to vector<8x8xf32>
    %256 = arith.subf %252, %255 : vector<8x8xf32>
    %257 = math.exp %256 : vector<8x8xf32>
    %cst_105 = arith.constant dense<0.000000e+00> : vector<8xf32>
    %258 = vector.multi_reduction <add>, %257, %cst_105 [1] : vector<8x8xf32> to vector<8xf32>
    %259 = vector.shape_cast %258 : vector<8xf32> to vector<8x1xf32>
    %260 = tpu.reciprocal %259 {approx = true} : vector<8x1xf32> -> vector<8x1xf32>
    %261 = vector.broadcast %260 : vector<8x1xf32> to vector<8x8xf32>
    %262 = arith.mulf %257, %261 : vector<8x8xf32>
    %cst_106 = arith.constant dense<0.000000e+00> : vector<8x8xf32>
    %263 = tpu.matmul %262, %247, %cst_106 {dimension_numbers = #tpu.dot_dimension_numbers<[1], [0], [0], [1], [0, 0, 1, 1], [], []>} : vector<8x8xf32>, vector<8x8xf32>, vector<8x8xf32> -> vector<8x8xf32>
    %264 = vector.extract_strided_slice %206 {offsets = [0, 24], sizes = [8, 8], strides = [1, 1]} : vector<8x96xf32> to vector<8x8xf32>
    %265 = vector.extract_strided_slice %206 {offsets = [0, 56], sizes = [8, 8], strides = [1, 1]} : vector<8x96xf32> to vector<8x8xf32>
    %266 = vector.extract_strided_slice %206 {offsets = [0, 88], sizes = [8, 8], strides = [1, 1]} : vector<8x96xf32> to vector<8x8xf32>
    %cst_107 = arith.constant dense<0.000000e+00> : vector<8x8xf32>
    %267 = tpu.matmul %264, %265, %cst_107 {dimension_numbers = #tpu.dot_dimension_numbers<[1], [1], [0], [0], [0, 0, 1, 0], [], []>} : vector<8x8xf32>, vector<8x8xf32>, vector<8x8xf32> -> vector<8x8xf32>
    %cst_108 = arith.constant 0.353553385 : f32
    %268 = vector.broadcast %cst_108 : f32 to vector<8x8xf32>
    %269 = arith.mulf %267, %268 : vector<8x8xf32>
    %270 = vector.broadcast %6 : vector<1x8xf32> to vector<8x8xf32>
    %271 = arith.addf %269, %270 : vector<8x8xf32>
    %cst_109 = arith.constant dense<0xFF800000> : vector<8xf32>
    %272 = vector.multi_reduction <maximumf>, %271, %cst_109 [1] : vector<8x8xf32> to vector<8xf32>
    %273 = vector.shape_cast %272 : vector<8xf32> to vector<8x1xf32>
    %274 = vector.broadcast %273 : vector<8x1xf32> to vector<8x8xf32>
    %275 = arith.subf %271, %274 : vector<8x8xf32>
    %276 = math.exp %275 : vector<8x8xf32>
    %cst_110 = arith.constant dense<0.000000e+00> : vector<8xf32>
    %277 = vector.multi_reduction <add>, %276, %cst_110 [1] : vector<8x8xf32> to vector<8xf32>
    %278 = vector.shape_cast %277 : vector<8xf32> to vector<8x1xf32>
    %279 = tpu.reciprocal %278 {approx = true} : vector<8x1xf32> -> vector<8x1xf32>
    %280 = vector.broadcast %279 : vector<8x1xf32> to vector<8x8xf32>
    %281 = arith.mulf %276, %280 : vector<8x8xf32>
    %cst_111 = arith.constant dense<0.000000e+00> : vector<8x8xf32>
    %282 = tpu.matmul %281, %266, %cst_111 {dimension_numbers = #tpu.dot_dimension_numbers<[1], [0], [0], [1], [0, 0, 1, 1], [], []>} : vector<8x8xf32>, vector<8x8xf32>, vector<8x8xf32> -> vector<8x8xf32>
    %283 = tpu.concatenate %225, %244, %263, %282 in 1 : vector<8x8xf32>, vector<8x8xf32>, vector<8x8xf32>, vector<8x8xf32> -> vector<8x32xf32>
    %c1_112 = arith.constant 1 : index
    %c0_113 = arith.constant 0 : index
    %c0_114 = arith.constant 0 : index
    %284 = vector.load %arg6[%c1_112, %c0_113, %c0_114] : memref<2x32x32xf32, #tpu.memory_space<vmem>>, vector<1x32x32xf32>
    %285 = vector.shape_cast %284 : vector<1x32x32xf32> to vector<32x32xf32>
    %cst_115 = arith.constant dense<0.000000e+00> : vector<8x32xf32>
    %286 = tpu.matmul %283, %285, %cst_115 {dimension_numbers = #tpu.dot_dimension_numbers<[1], [0], [0], [1], [0, 0, 1, 1], [], []>} : vector<8x32xf32>, vector<32x32xf32>, vector<8x32xf32> -> vector<8x32xf32>
    %c1_116 = arith.constant 1 : index
    %c0_117 = arith.constant 0 : index
    %c0_118 = arith.constant 0 : index
    %287 = vector.load %arg7[%c1_116, %c0_117, %c0_118] : memref<2x1x32xf32, #tpu.memory_space<vmem>>, vector<1x1x32xf32>
    %288 = vector.shape_cast %287 : vector<1x1x32xf32> to vector<1x32xf32>
    %289 = vector.broadcast %288 : vector<1x32xf32> to vector<8x32xf32>
    %290 = arith.addf %286, %289 : vector<8x32xf32>
    %291 = arith.addf %173, %290 : vector<8x32xf32>
    %c1_119 = arith.constant 1 : index
    %c0_120 = arith.constant 0 : index
    %c0_121 = arith.constant 0 : index
    %292 = vector.load %arg8[%c1_119, %c0_120, %c0_121] : memref<2x1x32xf32, #tpu.memory_space<vmem>>, vector<1x1x32xf32>
    %293 = vector.shape_cast %292 : vector<1x1x32xf32> to vector<1x32xf32>
    %c1_122 = arith.constant 1 : index
    %c0_123 = arith.constant 0 : index
    %c0_124 = arith.constant 0 : index
    %294 = vector.load %arg9[%c1_122, %c0_123, %c0_124] : memref<2x1x32xf32, #tpu.memory_space<vmem>>, vector<1x1x32xf32>
    %295 = vector.shape_cast %294 : vector<1x1x32xf32> to vector<1x32xf32>
    %cst_125 = arith.constant dense<0.000000e+00> : vector<8xf32>
    %296 = vector.multi_reduction <add>, %291, %cst_125 [1] : vector<8x32xf32> to vector<8xf32>
    %297 = vector.shape_cast %296 : vector<8xf32> to vector<8x1xf32>
    %cst_126 = arith.constant 3.200000e+01 : f32
    %298 = vector.broadcast %cst_126 : f32 to vector<8x1xf32>
    %299 = arith.divf %297, %298 : vector<8x1xf32>
    %300 = vector.broadcast %299 : vector<8x1xf32> to vector<8x32xf32>
    %301 = arith.subf %291, %300 : vector<8x32xf32>
    %302 = arith.mulf %301, %301 : vector<8x32xf32>
    %cst_127 = arith.constant dense<0.000000e+00> : vector<8xf32>
    %303 = vector.multi_reduction <add>, %302, %cst_127 [1] : vector<8x32xf32> to vector<8xf32>
    %304 = vector.shape_cast %303 : vector<8xf32> to vector<8x1xf32>
    %cst_128 = arith.constant 3.200000e+01 : f32
    %305 = vector.broadcast %cst_128 : f32 to vector<8x1xf32>
    %306 = arith.divf %304, %305 : vector<8x1xf32>
    %307 = vector.broadcast %299 : vector<8x1xf32> to vector<8x32xf32>
    %308 = arith.subf %291, %307 : vector<8x32xf32>
    %cst_129 = arith.constant 9.99999974E-6 : f32
    %309 = vector.broadcast %cst_129 : f32 to vector<8x1xf32>
    %310 = arith.addf %306, %309 : vector<8x1xf32>
    %311 = math.rsqrt %310 : vector<8x1xf32>
    %312 = vector.broadcast %311 : vector<8x1xf32> to vector<8x32xf32>
    %313 = arith.mulf %308, %312 : vector<8x32xf32>
    %314 = vector.broadcast %293 : vector<1x32xf32> to vector<8x32xf32>
    %315 = arith.mulf %313, %314 : vector<8x32xf32>
    %316 = vector.broadcast %295 : vector<1x32xf32> to vector<8x32xf32>
    %317 = arith.addf %315, %316 : vector<8x32xf32>
    %c1_130 = arith.constant 1 : index
    %c0_131 = arith.constant 0 : index
    %c0_132 = arith.constant 0 : index
    %318 = vector.load %arg10[%c1_130, %c0_131, %c0_132] : memref<2x32x128xf32, #tpu.memory_space<vmem>>, vector<1x32x128xf32>
    %319 = vector.shape_cast %318 : vector<1x32x128xf32> to vector<32x128xf32>
    %cst_133 = arith.constant dense<0.000000e+00> : vector<8x128xf32>
    %320 = tpu.matmul %317, %319, %cst_133 {dimension_numbers = #tpu.dot_dimension_numbers<[1], [0], [0], [1], [0, 0, 1, 1], [], []>} : vector<8x32xf32>, vector<32x128xf32>, vector<8x128xf32> -> vector<8x128xf32>
    %c1_134 = arith.constant 1 : index
    %c0_135 = arith.constant 0 : index
    %c0_136 = arith.constant 0 : index
    %321 = vector.load %arg11[%c1_134, %c0_135, %c0_136] : memref<2x1x128xf32, #tpu.memory_space<vmem>>, vector<1x1x128xf32>
    %322 = vector.shape_cast %321 : vector<1x1x128xf32> to vector<1x128xf32>
    %323 = vector.broadcast %322 : vector<1x128xf32> to vector<8x128xf32>
    %324 = arith.addf %320, %323 : vector<8x128xf32>
    %cst_137 = arith.constant 5.000000e-01 : f32
    %325 = vector.broadcast %cst_137 : f32 to vector<8x128xf32>
    %326 = arith.mulf %325, %324 : vector<8x128xf32>
    %cst_138 = arith.constant 0.707106769 : f32
    %327 = vector.broadcast %cst_138 : f32 to vector<8x128xf32>
    %328 = arith.mulf %324, %327 : vector<8x128xf32>
    %329 = math.erf %328 : vector<8x128xf32>
    %cst_139 = arith.constant 1.000000e+00 : f32
    %330 = vector.broadcast %cst_139 : f32 to vector<8x128xf32>
    %331 = arith.addf %330, %329 : vector<8x128xf32>
    %332 = arith.mulf %326, %331 : vector<8x128xf32>
    %c1_140 = arith.constant 1 : index
    %c0_141 = arith.constant 0 : index
    %c0_142 = arith.constant 0 : index
    %333 = vector.load %arg12[%c1_140, %c0_141, %c0_142] : memref<2x128x32xf32, #tpu.memory_space<vmem>>, vector<1x128x32xf32>
    %334 = vector.shape_cast %333 : vector<1x128x32xf32> to vector<128x32xf32>
    %cst_143 = arith.constant dense<0.000000e+00> : vector<8x32xf32>
    %335 = tpu.matmul %332, %334, %cst_143 {dimension_numbers = #tpu.dot_dimension_numbers<[1], [0], [0], [1], [0, 0, 1, 1], [], []>} : vector<8x128xf32>, vector<128x32xf32>, vector<8x32xf32> -> vector<8x32xf32>
    %c1_144 = arith.constant 1 : index
    %c0_145 = arith.constant 0 : index
    %c0_146 = arith.constant 0 : index
    %336 = vector.load %arg13[%c1_144, %c0_145, %c0_146] : memref<2x1x32xf32, #tpu.memory_space<vmem>>, vector<1x1x32xf32>
    %337 = vector.shape_cast %336 : vector<1x1x32xf32> to vector<1x32xf32>
    %338 = vector.broadcast %337 : vector<1x32xf32> to vector<8x32xf32>
    %339 = arith.addf %335, %338 : vector<8x32xf32>
    %340 = arith.addf %291, %339 : vector<8x32xf32>
    %c0_147 = arith.constant 0 : index
    %c0_148 = arith.constant 0 : index
    %341 = vector.load %arg14[%c0_147, %c0_148] : memref<1x32xf32, #tpu.memory_space<vmem>>, vector<1x32xf32>
    %c0_149 = arith.constant 0 : index
    %c0_150 = arith.constant 0 : index
    %342 = vector.load %arg15[%c0_149, %c0_150] : memref<1x32xf32, #tpu.memory_space<vmem>>, vector<1x32xf32>
    %cst_151 = arith.constant dense<0.000000e+00> : vector<8xf32>
    %343 = vector.multi_reduction <add>, %340, %cst_151 [1] : vector<8x32xf32> to vector<8xf32>
    %344 = vector.shape_cast %343 : vector<8xf32> to vector<8x1xf32>
    %cst_152 = arith.constant 3.200000e+01 : f32
    %345 = vector.broadcast %cst_152 : f32 to vector<8x1xf32>
    %346 = arith.divf %344, %345 : vector<8x1xf32>
    %347 = vector.broadcast %346 : vector<8x1xf32> to vector<8x32xf32>
    %348 = arith.subf %340, %347 : vector<8x32xf32>
    %349 = arith.mulf %348, %348 : vector<8x32xf32>
    %cst_153 = arith.constant dense<0.000000e+00> : vector<8xf32>
    %350 = vector.multi_reduction <add>, %349, %cst_153 [1] : vector<8x32xf32> to vector<8xf32>
    %351 = vector.shape_cast %350 : vector<8xf32> to vector<8x1xf32>
    %cst_154 = arith.constant 3.200000e+01 : f32
    %352 = vector.broadcast %cst_154 : f32 to vector<8x1xf32>
    %353 = arith.divf %351, %352 : vector<8x1xf32>
    %354 = vector.broadcast %346 : vector<8x1xf32> to vector<8x32xf32>
    %355 = arith.subf %340, %354 : vector<8x32xf32>
    %cst_155 = arith.constant 9.99999974E-6 : f32
    %356 = vector.broadcast %cst_155 : f32 to vector<8x1xf32>
    %357 = arith.addf %353, %356 : vector<8x1xf32>
    %358 = math.rsqrt %357 : vector<8x1xf32>
    %359 = vector.broadcast %358 : vector<8x1xf32> to vector<8x32xf32>
    %360 = arith.mulf %355, %359 : vector<8x32xf32>
    %361 = vector.broadcast %341 : vector<1x32xf32> to vector<8x32xf32>
    %362 = arith.mulf %360, %361 : vector<8x32xf32>
    %363 = vector.broadcast %342 : vector<1x32xf32> to vector<8x32xf32>
    %364 = arith.addf %362, %363 : vector<8x32xf32>
    %c0_156 = arith.constant 0 : index
    %c0_157 = arith.constant 0 : index
    %365 = vector.load %arg16[%c0_156, %c0_157] : memref<32x32xf32, #tpu.memory_space<vmem>>, vector<32x32xf32>
    %cst_158 = arith.constant dense<0.000000e+00> : vector<8x32xf32>
    %366 = tpu.matmul %364, %365, %cst_158 {dimension_numbers = #tpu.dot_dimension_numbers<[1], [0], [0], [1], [0, 0, 1, 1], [], []>} : vector<8x32xf32>, vector<32x32xf32>, vector<8x32xf32> -> vector<8x32xf32>
    %c0_159 = arith.constant 0 : index
    %c0_160 = arith.constant 0 : index
    %367 = vector.load %arg17[%c0_159, %c0_160] : memref<1x32xf32, #tpu.memory_space<vmem>>, vector<1x32xf32>
    %368 = vector.broadcast %367 : vector<1x32xf32> to vector<8x32xf32>
    %369 = arith.addf %366, %368 : vector<8x32xf32>
    %c0_161 = arith.constant 0 : index
    %c0_162 = arith.constant 0 : index
    %370 = vector.load %arg18[%c0_161, %c0_162] : memref<8x32xf32, #tpu.memory_space<vmem>>, vector<8x32xf32>
    tpu.vector_store %arg18[%c0_161, %c0_162], %369 {strides = array<i32>} : memref<8x32xf32, #tpu.memory_space<vmem>>, vector<8x32xf32>,
    return
  }
  func.func @transform_0(%arg0: i32) -> (i32, i32) {
    %c0_i32 = arith.constant 0 : i32
    %c0_i32_0 = arith.constant 0 : i32
    return %arg0, %c0_i32 : i32, i32
  }
  func.func @transform_1(%arg0: i32) -> (i32, i32, i32) {
    %c0_i32 = arith.constant 0 : i32
    %c0_i32_0 = arith.constant 0 : i32
    %c0_i32_1 = arith.constant 0 : i32
    %c0_i32_2 = arith.constant 0 : i32
    return %c0_i32, %c0_i32_0, %c0_i32_1 : i32, i32, i32
  }
  func.func @transform_2(%arg0: i32) -> (i32, i32, i32) {
    %c0_i32 = arith.constant 0 : i32
    %c0_i32_0 = arith.constant 0 : i32
    %c0_i32_1 = arith.constant 0 : i32
    %c0_i32_2 = arith.constant 0 : i32
    return %c0_i32, %c0_i32_0, %c0_i32_1 : i32, i32, i32
  }
  func.func @transform_3(%arg0: i32) -> (i32, i32, i32) {
    %c0_i32 = arith.constant 0 : i32
    %c0_i32_0 = arith.constant 0 : i32
    %c0_i32_1 = arith.constant 0 : i32
    %c0_i32_2 = arith.constant 0 : i32
    return %c0_i32, %c0_i32_0, %c0_i32_1 : i32, i32, i32
  }
  func.func @transform_4(%arg0: i32) -> (i32, i32, i32) {
    %c0_i32 = arith.constant 0 : i32
    %c0_i32_0 = arith.constant 0 : i32
    %c0_i32_1 = arith.constant 0 : i32
    %c0_i32_2 = arith.constant 0 : i32
    return %c0_i32, %c0_i32_0, %c0_i32_1 : i32, i32, i32
  }
  func.func @transform_5(%arg0: i32) -> (i32, i32, i32) {
    %c0_i32 = arith.constant 0 : i32
    %c0_i32_0 = arith.constant 0 : i32
    %c0_i32_1 = arith.constant 0 : i32
    %c0_i32_2 = arith.constant 0 : i32
    return %c0_i32, %c0_i32_0, %c0_i32_1 : i32, i32, i32
  }
  func.func @transform_6(%arg0: i32) -> (i32, i32, i32) {
    %c0_i32 = arith.constant 0 : i32
    %c0_i32_0 = arith.constant 0 : i32
    %c0_i32_1 = arith.constant 0 : i32
    %c0_i32_2 = arith.constant 0 : i32
    return %c0_i32, %c0_i32_0, %c0_i32_1 : i32, i32, i32
  }
  func.func @transform_7(%arg0: i32) -> (i32, i32, i32) {
    %c0_i32 = arith.constant 0 : i32
    %c0_i32_0 = arith.constant 0 : i32
    %c0_i32_1 = arith.constant 0 : i32
    %c0_i32_2 = arith.constant 0 : i32
    return %c0_i32, %c0_i32_0, %c0_i32_1 : i32, i32, i32
  }
  func.func @transform_8(%arg0: i32) -> (i32, i32, i32) {
    %c0_i32 = arith.constant 0 : i32
    %c0_i32_0 = arith.constant 0 : i32
    %c0_i32_1 = arith.constant 0 : i32
    %c0_i32_2 = arith.constant 0 : i32
    return %c0_i32, %c0_i32_0, %c0_i32_1 : i32, i32, i32
  }
  func.func @transform_9(%arg0: i32) -> (i32, i32, i32) {
    %c0_i32 = arith.constant 0 : i32
    %c0_i32_0 = arith.constant 0 : i32
    %c0_i32_1 = arith.constant 0 : i32
    %c0_i32_2 = arith.constant 0 : i32
    return %c0_i32, %c0_i32_0, %c0_i32_1 : i32, i32, i32
  }
  func.func @transform_10(%arg0: i32) -> (i32, i32, i32) {
    %c0_i32 = arith.constant 0 : i32
    %c0_i32_0 = arith.constant 0 : i32
    %c0_i32_1 = arith.constant 0 : i32
    %c0_i32_2 = arith.constant 0 : i32
    return %c0_i32, %c0_i32_0, %c0_i32_1 : i32, i32, i32
  }
  func.func @transform_11(%arg0: i32) -> (i32, i32, i32) {
    %c0_i32 = arith.constant 0 : i32
    %c0_i32_0 = arith.constant 0 : i32
    %c0_i32_1 = arith.constant 0 : i32
    %c0_i32_2 = arith.constant 0 : i32
    return %c0_i32, %c0_i32_0, %c0_i32_1 : i32, i32, i32
  }
  func.func @transform_12(%arg0: i32) -> (i32, i32, i32) {
    %c0_i32 = arith.constant 0 : i32
    %c0_i32_0 = arith.constant 0 : i32
    %c0_i32_1 = arith.constant 0 : i32
    %c0_i32_2 = arith.constant 0 : i32
    return %c0_i32, %c0_i32_0, %c0_i32_1 : i32, i32, i32
  }
  func.func @transform_13(%arg0: i32) -> (i32, i32) {
    %c0_i32 = arith.constant 0 : i32
    %c0_i32_0 = arith.constant 0 : i32
    %c0_i32_1 = arith.constant 0 : i32
    return %c0_i32, %c0_i32_0 : i32, i32
  }
  func.func @transform_14(%arg0: i32) -> (i32, i32) {
    %c0_i32 = arith.constant 0 : i32
    %c0_i32_0 = arith.constant 0 : i32
    %c0_i32_1 = arith.constant 0 : i32
    return %c0_i32, %c0_i32_0 : i32, i32
  }
  func.func @transform_15(%arg0: i32) -> (i32, i32) {
    %c0_i32 = arith.constant 0 : i32
    %c0_i32_0 = arith.constant 0 : i32
    %c0_i32_1 = arith.constant 0 : i32
    return %c0_i32, %c0_i32_0 : i32, i32
  }
  func.func @transform_16(%arg0: i32) -> (i32, i32) {
    %c0_i32 = arith.constant 0 : i32
    %c0_i32_0 = arith.constant 0 : i32
    %c0_i32_1 = arith.constant 0 : i32
    return %c0_i32, %c0_i32_0 : i32, i32
  }
  func.func @transform_17(%arg0: i32) -> (i32, i32) {
    %c0_i32 = arith.constant 0 : i32
    %c0_i32_0 = arith.constant 0 : i32
    return %arg0, %c0_i32 : i32, i32
  }
}

module attributes {stable_mosaic.version = 11 : i64} {
  func.func @_stack_kernel(%arg0: i32, %arg1: memref<8x32xf32, #tpu.memory_space<vmem>>, %arg2: memref<2x1x32xf32, #tpu.memory_space<vmem>>, %arg3: memref<2x1x32xf32, #tpu.memory_space<vmem>>, %arg4: memref<2x32x96xf32, #tpu.memory_space<vmem>>, %arg5: memref<2x1x96xf32, #tpu.memory_space<vmem>>, %arg6: memref<2x32x32xf32, #tpu.memory_space<vmem>>, %arg7: memref<2x1x32xf32, #tpu.memory_space<vmem>>, %arg8: memref<2x1x32xf32, #tpu.memory_space<vmem>>, %arg9: memref<2x1x32xf32, #tpu.memory_space<vmem>>, %arg10: memref<2x32x128xf32, #tpu.memory_space<vmem>>, %arg11: memref<2x1x128xf32, #tpu.memory_space<vmem>>, %arg12: memref<2x128x32xf32, #tpu.memory_space<vmem>>, %arg13: memref<2x1x32xf32, #tpu.memory_space<vmem>>, %arg14: memref<1x32xf32, #tpu.memory_space<vmem>>, %arg15: memref<1x32xf32, #tpu.memory_space<vmem>>, %arg16: memref<8x32xf32, #tpu.memory_space<vmem>>) attributes {dimension_semantics = [#tpu.dimension_semantics<parallel>], iteration_bounds = array<i64: 2>, scalar_prefetch = 0 : i64, scratch_operands = 0 : i64, tpu.core_type = #tpu.core_type<tc>, window_params = [{transform_indices = @transform_0, window_bounds = array<i64: 8, 32>}, {pipeline_mode = #tpu.pipeline_mode<synchronous>, transform_indices = @transform_1, window_bounds = array<i64: 2, 1, 32>}, {pipeline_mode = #tpu.pipeline_mode<synchronous>, transform_indices = @transform_2, window_bounds = array<i64: 2, 1, 32>}, {pipeline_mode = #tpu.pipeline_mode<synchronous>, transform_indices = @transform_3, window_bounds = array<i64: 2, 32, 96>}, {pipeline_mode = #tpu.pipeline_mode<synchronous>, transform_indices = @transform_4, window_bounds = array<i64: 2, 1, 96>}, {pipeline_mode = #tpu.pipeline_mode<synchronous>, transform_indices = @transform_5, window_bounds = array<i64: 2, 32, 32>}, {pipeline_mode = #tpu.pipeline_mode<synchronous>, transform_indices = @transform_6, window_bounds = array<i64: 2, 1, 32>}, {pipeline_mode = #tpu.pipeline_mode<synchronous>, transform_indices = @transform_7, window_bounds = array<i64: 2, 1, 32>}, {pipeline_mode = #tpu.pipeline_mode<synchronous>, transform_indices = @transform_8, window_bounds = array<i64: 2, 1, 32>}, {pipeline_mode = #tpu.pipeline_mode<synchronous>, transform_indices = @transform_9, window_bounds = array<i64: 2, 32, 128>}, {pipeline_mode = #tpu.pipeline_mode<synchronous>, transform_indices = @transform_10, window_bounds = array<i64: 2, 1, 128>}, {pipeline_mode = #tpu.pipeline_mode<synchronous>, transform_indices = @transform_11, window_bounds = array<i64: 2, 128, 32>}, {pipeline_mode = #tpu.pipeline_mode<synchronous>, transform_indices = @transform_12, window_bounds = array<i64: 2, 1, 32>}, {pipeline_mode = #tpu.pipeline_mode<synchronous>, transform_indices = @transform_13, window_bounds = array<i64: 1, 32>}, {pipeline_mode = #tpu.pipeline_mode<synchronous>, transform_indices = @transform_14, window_bounds = array<i64: 1, 32>}, {transform_indices = @transform_15, window_bounds = array<i64: 8, 32>}]} {
    %c0 = arith.constant 0 : index
    %c0_0 = arith.constant 0 : index
    %0 = vector.load %arg1[%c0, %c0_0] : memref<8x32xf32, #tpu.memory_space<vmem>>, vector<8x32xf32>
    %1 = tpu.iota {dimensions = array<i32: 1>} : vector<1x8xi32>
    %c4_i32 = arith.constant 4 : i32
    %2 = vector.broadcast %c4_i32 : i32 to vector<1x8xi32>
    %3 = arith.cmpi slt, %1, %2 : vector<1x8xi32>
    %cst = arith.constant 0.000000e+00 : f32
    %cst_1 = arith.constant -1.000000e+30 : f32
    %4 = vector.broadcast %cst : f32 to vector<1x8xf32>
    %5 = vector.broadcast %cst_1 : f32 to vector<1x8xf32>
    %6 = arith.select %3, %4, %5 : vector<1x8xi1>, vector<1x8xf32>
    %c0_2 = arith.constant 0 : index
    %c0_3 = arith.constant 0 : index
    %c0_4 = arith.constant 0 : index
    %7 = vector.load %arg2[%c0_2, %c0_3, %c0_4] : memref<2x1x32xf32, #tpu.memory_space<vmem>>, vector<1x1x32xf32>
    %8 = vector.shape_cast %7 : vector<1x1x32xf32> to vector<1x32xf32>
    %c0_5 = arith.constant 0 : index
    %c0_6 = arith.constant 0 : index
    %c0_7 = arith.constant 0 : index
    %9 = vector.load %arg3[%c0_5, %c0_6, %c0_7] : memref<2x1x32xf32, #tpu.memory_space<vmem>>, vector<1x1x32xf32>
    %10 = vector.shape_cast %9 : vector<1x1x32xf32> to vector<1x32xf32>
    %cst_8 = arith.constant dense<0.000000e+00> : vector<8xf32>
    %11 = vector.multi_reduction <add>, %0, %cst_8 [1] : vector<8x32xf32> to vector<8xf32>
    %12 = vector.shape_cast %11 : vector<8xf32> to vector<8x1xf32>
    %cst_9 = arith.constant 3.200000e+01 : f32
    %13 = vector.broadcast %cst_9 : f32 to vector<8x1xf32>
    %14 = arith.divf %12, %13 : vector<8x1xf32>
    %15 = vector.broadcast %14 : vector<8x1xf32> to vector<8x32xf32>
    %16 = arith.subf %0, %15 : vector<8x32xf32>
    %17 = arith.mulf %16, %16 : vector<8x32xf32>
    %cst_10 = arith.constant dense<0.000000e+00> : vector<8xf32>
    %18 = vector.multi_reduction <add>, %17, %cst_10 [1] : vector<8x32xf32> to vector<8xf32>
    %19 = vector.shape_cast %18 : vector<8xf32> to vector<8x1xf32>
    %cst_11 = arith.constant 3.200000e+01 : f32
    %20 = vector.broadcast %cst_11 : f32 to vector<8x1xf32>
    %21 = arith.divf %19, %20 : vector<8x1xf32>
    %22 = vector.broadcast %14 : vector<8x1xf32> to vector<8x32xf32>
    %23 = arith.subf %0, %22 : vector<8x32xf32>
    %cst_12 = arith.constant 9.99999974E-6 : f32
    %24 = vector.broadcast %cst_12 : f32 to vector<8x1xf32>
    %25 = arith.addf %21, %24 : vector<8x1xf32>
    %26 = math.rsqrt %25 : vector<8x1xf32>
    %27 = vector.broadcast %26 : vector<8x1xf32> to vector<8x32xf32>
    %28 = arith.mulf %23, %27 : vector<8x32xf32>
    %29 = vector.broadcast %8 : vector<1x32xf32> to vector<8x32xf32>
    %30 = arith.mulf %28, %29 : vector<8x32xf32>
    %31 = vector.broadcast %10 : vector<1x32xf32> to vector<8x32xf32>
    %32 = arith.addf %30, %31 : vector<8x32xf32>
    %c0_13 = arith.constant 0 : index
    %c0_14 = arith.constant 0 : index
    %c0_15 = arith.constant 0 : index
    %33 = vector.load %arg4[%c0_13, %c0_14, %c0_15] : memref<2x32x96xf32, #tpu.memory_space<vmem>>, vector<1x32x96xf32>
    %34 = vector.shape_cast %33 : vector<1x32x96xf32> to vector<32x96xf32>
    %cst_16 = arith.constant dense<0.000000e+00> : vector<8x96xf32>
    %35 = tpu.matmul %32, %34, %cst_16 {dimension_numbers = #tpu.dot_dimension_numbers<[1], [0], [0], [1], [0, 0, 1, 1], [], []>} : vector<8x32xf32>, vector<32x96xf32>, vector<8x96xf32> -> vector<8x96xf32>
    %c0_17 = arith.constant 0 : index
    %c0_18 = arith.constant 0 : index
    %c0_19 = arith.constant 0 : index
    %36 = vector.load %arg5[%c0_17, %c0_18, %c0_19] : memref<2x1x96xf32, #tpu.memory_space<vmem>>, vector<1x1x96xf32>
    %37 = vector.shape_cast %36 : vector<1x1x96xf32> to vector<1x96xf32>
    %38 = vector.broadcast %37 : vector<1x96xf32> to vector<8x96xf32>
    %39 = arith.addf %35, %38 : vector<8x96xf32>
    %40 = vector.extract_strided_slice %39 {offsets = [0, 0], sizes = [8, 8], strides = [1, 1]} : vector<8x96xf32> to vector<8x8xf32>
    %41 = vector.extract_strided_slice %39 {offsets = [0, 32], sizes = [8, 8], strides = [1, 1]} : vector<8x96xf32> to vector<8x8xf32>
    %42 = vector.extract_strided_slice %39 {offsets = [0, 64], sizes = [8, 8], strides = [1, 1]} : vector<8x96xf32> to vector<8x8xf32>
    %cst_20 = arith.constant dense<0.000000e+00> : vector<8x8xf32>
    %43 = tpu.matmul %40, %41, %cst_20 {dimension_numbers = #tpu.dot_dimension_numbers<[1], [1], [0], [0], [0, 0, 1, 0], [], []>} : vector<8x8xf32>, vector<8x8xf32>, vector<8x8xf32> -> vector<8x8xf32>
    %cst_21 = arith.constant 0.353553385 : f32
    %44 = vector.broadcast %cst_21 : f32 to vector<8x8xf32>
    %45 = arith.mulf %43, %44 : vector<8x8xf32>
    %46 = vector.broadcast %6 : vector<1x8xf32> to vector<8x8xf32>
    %47 = arith.addf %45, %46 : vector<8x8xf32>
    %cst_22 = arith.constant dense<0xFF800000> : vector<8xf32>
    %48 = vector.multi_reduction <maximumf>, %47, %cst_22 [1] : vector<8x8xf32> to vector<8xf32>
    %49 = vector.shape_cast %48 : vector<8xf32> to vector<8x1xf32>
    %50 = vector.broadcast %49 : vector<8x1xf32> to vector<8x8xf32>
    %51 = arith.subf %47, %50 : vector<8x8xf32>
    %52 = math.exp %51 : vector<8x8xf32>
    %cst_23 = arith.constant dense<0.000000e+00> : vector<8xf32>
    %53 = vector.multi_reduction <add>, %52, %cst_23 [1] : vector<8x8xf32> to vector<8xf32>
    %54 = vector.shape_cast %53 : vector<8xf32> to vector<8x1xf32>
    %55 = tpu.reciprocal %54 {approx = true} : vector<8x1xf32> -> vector<8x1xf32>
    %56 = vector.broadcast %55 : vector<8x1xf32> to vector<8x8xf32>
    %57 = arith.mulf %52, %56 : vector<8x8xf32>
    %cst_24 = arith.constant dense<0.000000e+00> : vector<8x8xf32>
    %58 = tpu.matmul %57, %42, %cst_24 {dimension_numbers = #tpu.dot_dimension_numbers<[1], [0], [0], [1], [0, 0, 1, 1], [], []>} : vector<8x8xf32>, vector<8x8xf32>, vector<8x8xf32> -> vector<8x8xf32>
    %59 = vector.extract_strided_slice %39 {offsets = [0, 8], sizes = [8, 8], strides = [1, 1]} : vector<8x96xf32> to vector<8x8xf32>
    %60 = vector.extract_strided_slice %39 {offsets = [0, 40], sizes = [8, 8], strides = [1, 1]} : vector<8x96xf32> to vector<8x8xf32>
    %61 = vector.extract_strided_slice %39 {offsets = [0, 72], sizes = [8, 8], strides = [1, 1]} : vector<8x96xf32> to vector<8x8xf32>
    %cst_25 = arith.constant dense<0.000000e+00> : vector<8x8xf32>
    %62 = tpu.matmul %59, %60, %cst_25 {dimension_numbers = #tpu.dot_dimension_numbers<[1], [1], [0], [0], [0, 0, 1, 0], [], []>} : vector<8x8xf32>, vector<8x8xf32>, vector<8x8xf32> -> vector<8x8xf32>
    %cst_26 = arith.constant 0.353553385 : f32
    %63 = vector.broadcast %cst_26 : f32 to vector<8x8xf32>
    %64 = arith.mulf %62, %63 : vector<8x8xf32>
    %65 = vector.broadcast %6 : vector<1x8xf32> to vector<8x8xf32>
    %66 = arith.addf %64, %65 : vector<8x8xf32>
    %cst_27 = arith.constant dense<0xFF800000> : vector<8xf32>
    %67 = vector.multi_reduction <maximumf>, %66, %cst_27 [1] : vector<8x8xf32> to vector<8xf32>
    %68 = vector.shape_cast %67 : vector<8xf32> to vector<8x1xf32>
    %69 = vector.broadcast %68 : vector<8x1xf32> to vector<8x8xf32>
    %70 = arith.subf %66, %69 : vector<8x8xf32>
    %71 = math.exp %70 : vector<8x8xf32>
    %cst_28 = arith.constant dense<0.000000e+00> : vector<8xf32>
    %72 = vector.multi_reduction <add>, %71, %cst_28 [1] : vector<8x8xf32> to vector<8xf32>
    %73 = vector.shape_cast %72 : vector<8xf32> to vector<8x1xf32>
    %74 = tpu.reciprocal %73 {approx = true} : vector<8x1xf32> -> vector<8x1xf32>
    %75 = vector.broadcast %74 : vector<8x1xf32> to vector<8x8xf32>
    %76 = arith.mulf %71, %75 : vector<8x8xf32>
    %cst_29 = arith.constant dense<0.000000e+00> : vector<8x8xf32>
    %77 = tpu.matmul %76, %61, %cst_29 {dimension_numbers = #tpu.dot_dimension_numbers<[1], [0], [0], [1], [0, 0, 1, 1], [], []>} : vector<8x8xf32>, vector<8x8xf32>, vector<8x8xf32> -> vector<8x8xf32>
    %78 = vector.extract_strided_slice %39 {offsets = [0, 16], sizes = [8, 8], strides = [1, 1]} : vector<8x96xf32> to vector<8x8xf32>
    %79 = vector.extract_strided_slice %39 {offsets = [0, 48], sizes = [8, 8], strides = [1, 1]} : vector<8x96xf32> to vector<8x8xf32>
    %80 = vector.extract_strided_slice %39 {offsets = [0, 80], sizes = [8, 8], strides = [1, 1]} : vector<8x96xf32> to vector<8x8xf32>
    %cst_30 = arith.constant dense<0.000000e+00> : vector<8x8xf32>
    %81 = tpu.matmul %78, %79, %cst_30 {dimension_numbers = #tpu.dot_dimension_numbers<[1], [1], [0], [0], [0, 0, 1, 0], [], []>} : vector<8x8xf32>, vector<8x8xf32>, vector<8x8xf32> -> vector<8x8xf32>
    %cst_31 = arith.constant 0.353553385 : f32
    %82 = vector.broadcast %cst_31 : f32 to vector<8x8xf32>
    %83 = arith.mulf %81, %82 : vector<8x8xf32>
    %84 = vector.broadcast %6 : vector<1x8xf32> to vector<8x8xf32>
    %85 = arith.addf %83, %84 : vector<8x8xf32>
    %cst_32 = arith.constant dense<0xFF800000> : vector<8xf32>
    %86 = vector.multi_reduction <maximumf>, %85, %cst_32 [1] : vector<8x8xf32> to vector<8xf32>
    %87 = vector.shape_cast %86 : vector<8xf32> to vector<8x1xf32>
    %88 = vector.broadcast %87 : vector<8x1xf32> to vector<8x8xf32>
    %89 = arith.subf %85, %88 : vector<8x8xf32>
    %90 = math.exp %89 : vector<8x8xf32>
    %cst_33 = arith.constant dense<0.000000e+00> : vector<8xf32>
    %91 = vector.multi_reduction <add>, %90, %cst_33 [1] : vector<8x8xf32> to vector<8xf32>
    %92 = vector.shape_cast %91 : vector<8xf32> to vector<8x1xf32>
    %93 = tpu.reciprocal %92 {approx = true} : vector<8x1xf32> -> vector<8x1xf32>
    %94 = vector.broadcast %93 : vector<8x1xf32> to vector<8x8xf32>
    %95 = arith.mulf %90, %94 : vector<8x8xf32>
    %cst_34 = arith.constant dense<0.000000e+00> : vector<8x8xf32>
    %96 = tpu.matmul %95, %80, %cst_34 {dimension_numbers = #tpu.dot_dimension_numbers<[1], [0], [0], [1], [0, 0, 1, 1], [], []>} : vector<8x8xf32>, vector<8x8xf32>, vector<8x8xf32> -> vector<8x8xf32>
    %97 = vector.extract_strided_slice %39 {offsets = [0, 24], sizes = [8, 8], strides = [1, 1]} : vector<8x96xf32> to vector<8x8xf32>
    %98 = vector.extract_strided_slice %39 {offsets = [0, 56], sizes = [8, 8], strides = [1, 1]} : vector<8x96xf32> to vector<8x8xf32>
    %99 = vector.extract_strided_slice %39 {offsets = [0, 88], sizes = [8, 8], strides = [1, 1]} : vector<8x96xf32> to vector<8x8xf32>
    %cst_35 = arith.constant dense<0.000000e+00> : vector<8x8xf32>
    %100 = tpu.matmul %97, %98, %cst_35 {dimension_numbers = #tpu.dot_dimension_numbers<[1], [1], [0], [0], [0, 0, 1, 0], [], []>} : vector<8x8xf32>, vector<8x8xf32>, vector<8x8xf32> -> vector<8x8xf32>
    %cst_36 = arith.constant 0.353553385 : f32
    %101 = vector.broadcast %cst_36 : f32 to vector<8x8xf32>
    %102 = arith.mulf %100, %101 : vector<8x8xf32>
    %103 = vector.broadcast %6 : vector<1x8xf32> to vector<8x8xf32>
    %104 = arith.addf %102, %103 : vector<8x8xf32>
    %cst_37 = arith.constant dense<0xFF800000> : vector<8xf32>
    %105 = vector.multi_reduction <maximumf>, %104, %cst_37 [1] : vector<8x8xf32> to vector<8xf32>
    %106 = vector.shape_cast %105 : vector<8xf32> to vector<8x1xf32>
    %107 = vector.broadcast %106 : vector<8x1xf32> to vector<8x8xf32>
    %108 = arith.subf %104, %107 : vector<8x8xf32>
    %109 = math.exp %108 : vector<8x8xf32>
    %cst_38 = arith.constant dense<0.000000e+00> : vector<8xf32>
    %110 = vector.multi_reduction <add>, %109, %cst_38 [1] : vector<8x8xf32> to vector<8xf32>
    %111 = vector.shape_cast %110 : vector<8xf32> to vector<8x1xf32>
    %112 = tpu.reciprocal %111 {approx = true} : vector<8x1xf32> -> vector<8x1xf32>
    %113 = vector.broadcast %112 : vector<8x1xf32> to vector<8x8xf32>
    %114 = arith.mulf %109, %113 : vector<8x8xf32>
    %cst_39 = arith.constant dense<0.000000e+00> : vector<8x8xf32>
    %115 = tpu.matmul %114, %99, %cst_39 {dimension_numbers = #tpu.dot_dimension_numbers<[1], [0], [0], [1], [0, 0, 1, 1], [], []>} : vector<8x8xf32>, vector<8x8xf32>, vector<8x8xf32> -> vector<8x8xf32>
    %116 = tpu.concatenate %58, %77, %96, %115 in 1 : vector<8x8xf32>, vector<8x8xf32>, vector<8x8xf32>, vector<8x8xf32> -> vector<8x32xf32>
    %c0_40 = arith.constant 0 : index
    %c0_41 = arith.constant 0 : index
    %c0_42 = arith.constant 0 : index
    %117 = vector.load %arg6[%c0_40, %c0_41, %c0_42] : memref<2x32x32xf32, #tpu.memory_space<vmem>>, vector<1x32x32xf32>
    %118 = vector.shape_cast %117 : vector<1x32x32xf32> to vector<32x32xf32>
    %cst_43 = arith.constant dense<0.000000e+00> : vector<8x32xf32>
    %119 = tpu.matmul %116, %118, %cst_43 {dimension_numbers = #tpu.dot_dimension_numbers<[1], [0], [0], [1], [0, 0, 1, 1], [], []>} : vector<8x32xf32>, vector<32x32xf32>, vector<8x32xf32> -> vector<8x32xf32>
    %c0_44 = arith.constant 0 : index
    %c0_45 = arith.constant 0 : index
    %c0_46 = arith.constant 0 : index
    %120 = vector.load %arg7[%c0_44, %c0_45, %c0_46] : memref<2x1x32xf32, #tpu.memory_space<vmem>>, vector<1x1x32xf32>
    %121 = vector.shape_cast %120 : vector<1x1x32xf32> to vector<1x32xf32>
    %122 = vector.broadcast %121 : vector<1x32xf32> to vector<8x32xf32>
    %123 = arith.addf %119, %122 : vector<8x32xf32>
    %124 = arith.addf %0, %123 : vector<8x32xf32>
    %c0_47 = arith.constant 0 : index
    %c0_48 = arith.constant 0 : index
    %c0_49 = arith.constant 0 : index
    %125 = vector.load %arg8[%c0_47, %c0_48, %c0_49] : memref<2x1x32xf32, #tpu.memory_space<vmem>>, vector<1x1x32xf32>
    %126 = vector.shape_cast %125 : vector<1x1x32xf32> to vector<1x32xf32>
    %c0_50 = arith.constant 0 : index
    %c0_51 = arith.constant 0 : index
    %c0_52 = arith.constant 0 : index
    %127 = vector.load %arg9[%c0_50, %c0_51, %c0_52] : memref<2x1x32xf32, #tpu.memory_space<vmem>>, vector<1x1x32xf32>
    %128 = vector.shape_cast %127 : vector<1x1x32xf32> to vector<1x32xf32>
    %cst_53 = arith.constant dense<0.000000e+00> : vector<8xf32>
    %129 = vector.multi_reduction <add>, %124, %cst_53 [1] : vector<8x32xf32> to vector<8xf32>
    %130 = vector.shape_cast %129 : vector<8xf32> to vector<8x1xf32>
    %cst_54 = arith.constant 3.200000e+01 : f32
    %131 = vector.broadcast %cst_54 : f32 to vector<8x1xf32>
    %132 = arith.divf %130, %131 : vector<8x1xf32>
    %133 = vector.broadcast %132 : vector<8x1xf32> to vector<8x32xf32>
    %134 = arith.subf %124, %133 : vector<8x32xf32>
    %135 = arith.mulf %134, %134 : vector<8x32xf32>
    %cst_55 = arith.constant dense<0.000000e+00> : vector<8xf32>
    %136 = vector.multi_reduction <add>, %135, %cst_55 [1] : vector<8x32xf32> to vector<8xf32>
    %137 = vector.shape_cast %136 : vector<8xf32> to vector<8x1xf32>
    %cst_56 = arith.constant 3.200000e+01 : f32
    %138 = vector.broadcast %cst_56 : f32 to vector<8x1xf32>
    %139 = arith.divf %137, %138 : vector<8x1xf32>
    %140 = vector.broadcast %132 : vector<8x1xf32> to vector<8x32xf32>
    %141 = arith.subf %124, %140 : vector<8x32xf32>
    %cst_57 = arith.constant 9.99999974E-6 : f32
    %142 = vector.broadcast %cst_57 : f32 to vector<8x1xf32>
    %143 = arith.addf %139, %142 : vector<8x1xf32>
    %144 = math.rsqrt %143 : vector<8x1xf32>
    %145 = vector.broadcast %144 : vector<8x1xf32> to vector<8x32xf32>
    %146 = arith.mulf %141, %145 : vector<8x32xf32>
    %147 = vector.broadcast %126 : vector<1x32xf32> to vector<8x32xf32>
    %148 = arith.mulf %146, %147 : vector<8x32xf32>
    %149 = vector.broadcast %128 : vector<1x32xf32> to vector<8x32xf32>
    %150 = arith.addf %148, %149 : vector<8x32xf32>
    %c0_58 = arith.constant 0 : index
    %c0_59 = arith.constant 0 : index
    %c0_60 = arith.constant 0 : index
    %151 = vector.load %arg10[%c0_58, %c0_59, %c0_60] : memref<2x32x128xf32, #tpu.memory_space<vmem>>, vector<1x32x128xf32>
    %152 = vector.shape_cast %151 : vector<1x32x128xf32> to vector<32x128xf32>
    %cst_61 = arith.constant dense<0.000000e+00> : vector<8x128xf32>
    %153 = tpu.matmul %150, %152, %cst_61 {dimension_numbers = #tpu.dot_dimension_numbers<[1], [0], [0], [1], [0, 0, 1, 1], [], []>} : vector<8x32xf32>, vector<32x128xf32>, vector<8x128xf32> -> vector<8x128xf32>
    %c0_62 = arith.constant 0 : index
    %c0_63 = arith.constant 0 : index
    %c0_64 = arith.constant 0 : index
    %154 = vector.load %arg11[%c0_62, %c0_63, %c0_64] : memref<2x1x128xf32, #tpu.memory_space<vmem>>, vector<1x1x128xf32>
    %155 = vector.shape_cast %154 : vector<1x1x128xf32> to vector<1x128xf32>
    %156 = vector.broadcast %155 : vector<1x128xf32> to vector<8x128xf32>
    %157 = arith.addf %153, %156 : vector<8x128xf32>
    %cst_65 = arith.constant 5.000000e-01 : f32
    %158 = vector.broadcast %cst_65 : f32 to vector<8x128xf32>
    %159 = arith.mulf %158, %157 : vector<8x128xf32>
    %cst_66 = arith.constant 0.707106769 : f32
    %160 = vector.broadcast %cst_66 : f32 to vector<8x128xf32>
    %161 = arith.mulf %157, %160 : vector<8x128xf32>
    %162 = math.erf %161 : vector<8x128xf32>
    %cst_67 = arith.constant 1.000000e+00 : f32
    %163 = vector.broadcast %cst_67 : f32 to vector<8x128xf32>
    %164 = arith.addf %163, %162 : vector<8x128xf32>
    %165 = arith.mulf %159, %164 : vector<8x128xf32>
    %c0_68 = arith.constant 0 : index
    %c0_69 = arith.constant 0 : index
    %c0_70 = arith.constant 0 : index
    %166 = vector.load %arg12[%c0_68, %c0_69, %c0_70] : memref<2x128x32xf32, #tpu.memory_space<vmem>>, vector<1x128x32xf32>
    %167 = vector.shape_cast %166 : vector<1x128x32xf32> to vector<128x32xf32>
    %cst_71 = arith.constant dense<0.000000e+00> : vector<8x32xf32>
    %168 = tpu.matmul %165, %167, %cst_71 {dimension_numbers = #tpu.dot_dimension_numbers<[1], [0], [0], [1], [0, 0, 1, 1], [], []>} : vector<8x128xf32>, vector<128x32xf32>, vector<8x32xf32> -> vector<8x32xf32>
    %c0_72 = arith.constant 0 : index
    %c0_73 = arith.constant 0 : index
    %c0_74 = arith.constant 0 : index
    %169 = vector.load %arg13[%c0_72, %c0_73, %c0_74] : memref<2x1x32xf32, #tpu.memory_space<vmem>>, vector<1x1x32xf32>
    %170 = vector.shape_cast %169 : vector<1x1x32xf32> to vector<1x32xf32>
    %171 = vector.broadcast %170 : vector<1x32xf32> to vector<8x32xf32>
    %172 = arith.addf %168, %171 : vector<8x32xf32>
    %173 = arith.addf %124, %172 : vector<8x32xf32>
    %c1 = arith.constant 1 : index
    %c0_75 = arith.constant 0 : index
    %c0_76 = arith.constant 0 : index
    %174 = vector.load %arg2[%c1, %c0_75, %c0_76] : memref<2x1x32xf32, #tpu.memory_space<vmem>>, vector<1x1x32xf32>
    %175 = vector.shape_cast %174 : vector<1x1x32xf32> to vector<1x32xf32>
    %c1_77 = arith.constant 1 : index
    %c0_78 = arith.constant 0 : index
    %c0_79 = arith.constant 0 : index
    %176 = vector.load %arg3[%c1_77, %c0_78, %c0_79] : memref<2x1x32xf32, #tpu.memory_space<vmem>>, vector<1x1x32xf32>
    %177 = vector.shape_cast %176 : vector<1x1x32xf32> to vector<1x32xf32>
    %cst_80 = arith.constant dense<0.000000e+00> : vector<8xf32>
    %178 = vector.multi_reduction <add>, %173, %cst_80 [1] : vector<8x32xf32> to vector<8xf32>
    %179 = vector.shape_cast %178 : vector<8xf32> to vector<8x1xf32>
    %cst_81 = arith.constant 3.200000e+01 : f32
    %180 = vector.broadcast %cst_81 : f32 to vector<8x1xf32>
    %181 = arith.divf %179, %180 : vector<8x1xf32>
    %182 = vector.broadcast %181 : vector<8x1xf32> to vector<8x32xf32>
    %183 = arith.subf %173, %182 : vector<8x32xf32>
    %184 = arith.mulf %183, %183 : vector<8x32xf32>
    %cst_82 = arith.constant dense<0.000000e+00> : vector<8xf32>
    %185 = vector.multi_reduction <add>, %184, %cst_82 [1] : vector<8x32xf32> to vector<8xf32>
    %186 = vector.shape_cast %185 : vector<8xf32> to vector<8x1xf32>
    %cst_83 = arith.constant 3.200000e+01 : f32
    %187 = vector.broadcast %cst_83 : f32 to vector<8x1xf32>
    %188 = arith.divf %186, %187 : vector<8x1xf32>
    %189 = vector.broadcast %181 : vector<8x1xf32> to vector<8x32xf32>
    %190 = arith.subf %173, %189 : vector<8x32xf32>
    %cst_84 = arith.constant 9.99999974E-6 : f32
    %191 = vector.broadcast %cst_84 : f32 to vector<8x1xf32>
    %192 = arith.addf %188, %191 : vector<8x1xf32>
    %193 = math.rsqrt %192 : vector<8x1xf32>
    %194 = vector.broadcast %193 : vector<8x1xf32> to vector<8x32xf32>
    %195 = arith.mulf %190, %194 : vector<8x32xf32>
    %196 = vector.broadcast %175 : vector<1x32xf32> to vector<8x32xf32>
    %197 = arith.mulf %195, %196 : vector<8x32xf32>
    %198 = vector.broadcast %177 : vector<1x32xf32> to vector<8x32xf32>
    %199 = arith.addf %197, %198 : vector<8x32xf32>
    %c1_85 = arith.constant 1 : index
    %c0_86 = arith.constant 0 : index
    %c0_87 = arith.constant 0 : index
    %200 = vector.load %arg4[%c1_85, %c0_86, %c0_87] : memref<2x32x96xf32, #tpu.memory_space<vmem>>, vector<1x32x96xf32>
    %201 = vector.shape_cast %200 : vector<1x32x96xf32> to vector<32x96xf32>
    %cst_88 = arith.constant dense<0.000000e+00> : vector<8x96xf32>
    %202 = tpu.matmul %199, %201, %cst_88 {dimension_numbers = #tpu.dot_dimension_numbers<[1], [0], [0], [1], [0, 0, 1, 1], [], []>} : vector<8x32xf32>, vector<32x96xf32>, vector<8x96xf32> -> vector<8x96xf32>
    %c1_89 = arith.constant 1 : index
    %c0_90 = arith.constant 0 : index
    %c0_91 = arith.constant 0 : index
    %203 = vector.load %arg5[%c1_89, %c0_90, %c0_91] : memref<2x1x96xf32, #tpu.memory_space<vmem>>, vector<1x1x96xf32>
    %204 = vector.shape_cast %203 : vector<1x1x96xf32> to vector<1x96xf32>
    %205 = vector.broadcast %204 : vector<1x96xf32> to vector<8x96xf32>
    %206 = arith.addf %202, %205 : vector<8x96xf32>
    %207 = vector.extract_strided_slice %206 {offsets = [0, 0], sizes = [8, 8], strides = [1, 1]} : vector<8x96xf32> to vector<8x8xf32>
    %208 = vector.extract_strided_slice %206 {offsets = [0, 32], sizes = [8, 8], strides = [1, 1]} : vector<8x96xf32> to vector<8x8xf32>
    %209 = vector.extract_strided_slice %206 {offsets = [0, 64], sizes = [8, 8], strides = [1, 1]} : vector<8x96xf32> to vector<8x8xf32>
    %cst_92 = arith.constant dense<0.000000e+00> : vector<8x8xf32>
    %210 = tpu.matmul %207, %208, %cst_92 {dimension_numbers = #tpu.dot_dimension_numbers<[1], [1], [0], [0], [0, 0, 1, 0], [], []>} : vector<8x8xf32>, vector<8x8xf32>, vector<8x8xf32> -> vector<8x8xf32>
    %cst_93 = arith.constant 0.353553385 : f32
    %211 = vector.broadcast %cst_93 : f32 to vector<8x8xf32>
    %212 = arith.mulf %210, %211 : vector<8x8xf32>
    %213 = vector.broadcast %6 : vector<1x8xf32> to vector<8x8xf32>
    %214 = arith.addf %212, %213 : vector<8x8xf32>
    %cst_94 = arith.constant dense<0xFF800000> : vector<8xf32>
    %215 = vector.multi_reduction <maximumf>, %214, %cst_94 [1] : vector<8x8xf32> to vector<8xf32>
    %216 = vector.shape_cast %215 : vector<8xf32> to vector<8x1xf32>
    %217 = vector.broadcast %216 : vector<8x1xf32> to vector<8x8xf32>
    %218 = arith.subf %214, %217 : vector<8x8xf32>
    %219 = math.exp %218 : vector<8x8xf32>
    %cst_95 = arith.constant dense<0.000000e+00> : vector<8xf32>
    %220 = vector.multi_reduction <add>, %219, %cst_95 [1] : vector<8x8xf32> to vector<8xf32>
    %221 = vector.shape_cast %220 : vector<8xf32> to vector<8x1xf32>
    %222 = tpu.reciprocal %221 {approx = true} : vector<8x1xf32> -> vector<8x1xf32>
    %223 = vector.broadcast %222 : vector<8x1xf32> to vector<8x8xf32>
    %224 = arith.mulf %219, %223 : vector<8x8xf32>
    %cst_96 = arith.constant dense<0.000000e+00> : vector<8x8xf32>
    %225 = tpu.matmul %224, %209, %cst_96 {dimension_numbers = #tpu.dot_dimension_numbers<[1], [0], [0], [1], [0, 0, 1, 1], [], []>} : vector<8x8xf32>, vector<8x8xf32>, vector<8x8xf32> -> vector<8x8xf32>
    %226 = vector.extract_strided_slice %206 {offsets = [0, 8], sizes = [8, 8], strides = [1, 1]} : vector<8x96xf32> to vector<8x8xf32>
    %227 = vector.extract_strided_slice %206 {offsets = [0, 40], sizes = [8, 8], strides = [1, 1]} : vector<8x96xf32> to vector<8x8xf32>
    %228 = vector.extract_strided_slice %206 {offsets = [0, 72], sizes = [8, 8], strides = [1, 1]} : vector<8x96xf32> to vector<8x8xf32>
    %cst_97 = arith.constant dense<0.000000e+00> : vector<8x8xf32>
    %229 = tpu.matmul %226, %227, %cst_97 {dimension_numbers = #tpu.dot_dimension_numbers<[1], [1], [0], [0], [0, 0, 1, 0], [], []>} : vector<8x8xf32>, vector<8x8xf32>, vector<8x8xf32> -> vector<8x8xf32>
    %cst_98 = arith.constant 0.353553385 : f32
    %230 = vector.broadcast %cst_98 : f32 to vector<8x8xf32>
    %231 = arith.mulf %229, %230 : vector<8x8xf32>
    %232 = vector.broadcast %6 : vector<1x8xf32> to vector<8x8xf32>
    %233 = arith.addf %231, %232 : vector<8x8xf32>
    %cst_99 = arith.constant dense<0xFF800000> : vector<8xf32>
    %234 = vector.multi_reduction <maximumf>, %233, %cst_99 [1] : vector<8x8xf32> to vector<8xf32>
    %235 = vector.shape_cast %234 : vector<8xf32> to vector<8x1xf32>
    %236 = vector.broadcast %235 : vector<8x1xf32> to vector<8x8xf32>
    %237 = arith.subf %233, %236 : vector<8x8xf32>
    %238 = math.exp %237 : vector<8x8xf32>
    %cst_100 = arith.constant dense<0.000000e+00> : vector<8xf32>
    %239 = vector.multi_reduction <add>, %238, %cst_100 [1] : vector<8x8xf32> to vector<8xf32>
    %240 = vector.shape_cast %239 : vector<8xf32> to vector<8x1xf32>
    %241 = tpu.reciprocal %240 {approx = true} : vector<8x1xf32> -> vector<8x1xf32>
    %242 = vector.broadcast %241 : vector<8x1xf32> to vector<8x8xf32>
    %243 = arith.mulf %238, %242 : vector<8x8xf32>
    %cst_101 = arith.constant dense<0.000000e+00> : vector<8x8xf32>
    %244 = tpu.matmul %243, %228, %cst_101 {dimension_numbers = #tpu.dot_dimension_numbers<[1], [0], [0], [1], [0, 0, 1, 1], [], []>} : vector<8x8xf32>, vector<8x8xf32>, vector<8x8xf32> -> vector<8x8xf32>
    %245 = vector.extract_strided_slice %206 {offsets = [0, 16], sizes = [8, 8], strides = [1, 1]} : vector<8x96xf32> to vector<8x8xf32>
    %246 = vector.extract_strided_slice %206 {offsets = [0, 48], sizes = [8, 8], strides = [1, 1]} : vector<8x96xf32> to vector<8x8xf32>
    %247 = vector.extract_strided_slice %206 {offsets = [0, 80], sizes = [8, 8], strides = [1, 1]} : vector<8x96xf32> to vector<8x8xf32>
    %cst_102 = arith.constant dense<0.000000e+00> : vector<8x8xf32>
    %248 = tpu.matmul %245, %246, %cst_102 {dimension_numbers = #tpu.dot_dimension_numbers<[1], [1], [0], [0], [0, 0, 1, 0], [], []>} : vector<8x8xf32>, vector<8x8xf32>, vector<8x8xf32> -> vector<8x8xf32>
    %cst_103 = arith.constant 0.353553385 : f32
    %249 = vector.broadcast %cst_103 : f32 to vector<8x8xf32>
    %250 = arith.mulf %248, %249 : vector<8x8xf32>
    %251 = vector.broadcast %6 : vector<1x8xf32> to vector<8x8xf32>
    %252 = arith.addf %250, %251 : vector<8x8xf32>
    %cst_104 = arith.constant dense<0xFF800000> : vector<8xf32>
    %253 = vector.multi_reduction <maximumf>, %252, %cst_104 [1] : vector<8x8xf32> to vector<8xf32>
    %254 = vector.shape_cast %253 : vector<8xf32> to vector<8x1xf32>
    %255 = vector.broadcast %254 : vector<8x1xf32> to vector<8x8xf32>
    %256 = arith.subf %252, %255 : vector<8x8xf32>
    %257 = math.exp %256 : vector<8x8xf32>
    %cst_105 = arith.constant dense<0.000000e+00> : vector<8xf32>
    %258 = vector.multi_reduction <add>, %257, %cst_105 [1] : vector<8x8xf32> to vector<8xf32>
    %259 = vector.shape_cast %258 : vector<8xf32> to vector<8x1xf32>
    %260 = tpu.reciprocal %259 {approx = true} : vector<8x1xf32> -> vector<8x1xf32>
    %261 = vector.broadcast %260 : vector<8x1xf32> to vector<8x8xf32>
    %262 = arith.mulf %257, %261 : vector<8x8xf32>
    %cst_106 = arith.constant dense<0.000000e+00> : vector<8x8xf32>
    %263 = tpu.matmul %262, %247, %cst_106 {dimension_numbers = #tpu.dot_dimension_numbers<[1], [0], [0], [1], [0, 0, 1, 1], [], []>} : vector<8x8xf32>, vector<8x8xf32>, vector<8x8xf32> -> vector<8x8xf32>
    %264 = vector.extract_strided_slice %206 {offsets = [0, 24], sizes = [8, 8], strides = [1, 1]} : vector<8x96xf32> to vector<8x8xf32>
    %265 = vector.extract_strided_slice %206 {offsets = [0, 56], sizes = [8, 8], strides = [1, 1]} : vector<8x96xf32> to vector<8x8xf32>
    %266 = vector.extract_strided_slice %206 {offsets = [0, 88], sizes = [8, 8], strides = [1, 1]} : vector<8x96xf32> to vector<8x8xf32>
    %cst_107 = arith.constant dense<0.000000e+00> : vector<8x8xf32>
    %267 = tpu.matmul %264, %265, %cst_107 {dimension_numbers = #tpu.dot_dimension_numbers<[1], [1], [0], [0], [0, 0, 1, 0], [], []>} : vector<8x8xf32>, vector<8x8xf32>, vector<8x8xf32> -> vector<8x8xf32>
    %cst_108 = arith.constant 0.353553385 : f32
    %268 = vector.broadcast %cst_108 : f32 to vector<8x8xf32>
    %269 = arith.mulf %267, %268 : vector<8x8xf32>
    %270 = vector.broadcast %6 : vector<1x8xf32> to vector<8x8xf32>
    %271 = arith.addf %269, %270 : vector<8x8xf32>
    %cst_109 = arith.constant dense<0xFF800000> : vector<8xf32>
    %272 = vector.multi_reduction <maximumf>, %271, %cst_109 [1] : vector<8x8xf32> to vector<8xf32>
    %273 = vector.shape_cast %272 : vector<8xf32> to vector<8x1xf32>
    %274 = vector.broadcast %273 : vector<8x1xf32> to vector<8x8xf32>
    %275 = arith.subf %271, %274 : vector<8x8xf32>
    %276 = math.exp %275 : vector<8x8xf32>
    %cst_110 = arith.constant dense<0.000000e+00> : vector<8xf32>
    %277 = vector.multi_reduction <add>, %276, %cst_110 [1] : vector<8x8xf32> to vector<8xf32>
    %278 = vector.shape_cast %277 : vector<8xf32> to vector<8x1xf32>
    %279 = tpu.reciprocal %278 {approx = true} : vector<8x1xf32> -> vector<8x1xf32>
    %280 = vector.broadcast %279 : vector<8x1xf32> to vector<8x8xf32>
    %281 = arith.mulf %276, %280 : vector<8x8xf32>
    %cst_111 = arith.constant dense<0.000000e+00> : vector<8x8xf32>
    %282 = tpu.matmul %281, %266, %cst_111 {dimension_numbers = #tpu.dot_dimension_numbers<[1], [0], [0], [1], [0, 0, 1, 1], [], []>} : vector<8x8xf32>, vector<8x8xf32>, vector<8x8xf32> -> vector<8x8xf32>
    %283 = tpu.concatenate %225, %244, %263, %282 in 1 : vector<8x8xf32>, vector<8x8xf32>, vector<8x8xf32>, vector<8x8xf32> -> vector<8x32xf32>
    %c1_112 = arith.constant 1 : index
    %c0_113 = arith.constant 0 : index
    %c0_114 = arith.constant 0 : index
    %284 = vector.load %arg6[%c1_112, %c0_113, %c0_114] : memref<2x32x32xf32, #tpu.memory_space<vmem>>, vector<1x32x32xf32>
    %285 = vector.shape_cast %284 : vector<1x32x32xf32> to vector<32x32xf32>
    %cst_115 = arith.constant dense<0.000000e+00> : vector<8x32xf32>
    %286 = tpu.matmul %283, %285, %cst_115 {dimension_numbers = #tpu.dot_dimension_numbers<[1], [0], [0], [1], [0, 0, 1, 1], [], []>} : vector<8x32xf32>, vector<32x32xf32>, vector<8x32xf32> -> vector<8x32xf32>
    %c1_116 = arith.constant 1 : index
    %c0_117 = arith.constant 0 : index
    %c0_118 = arith.constant 0 : index
    %287 = vector.load %arg7[%c1_116, %c0_117, %c0_118] : memref<2x1x32xf32, #tpu.memory_space<vmem>>, vector<1x1x32xf32>
    %288 = vector.shape_cast %287 : vector<1x1x32xf32> to vector<1x32xf32>
    %289 = vector.broadcast %288 : vector<1x32xf32> to vector<8x32xf32>
    %290 = arith.addf %286, %289 : vector<8x32xf32>
    %291 = arith.addf %173, %290 : vector<8x32xf32>
    %c1_119 = arith.constant 1 : index
    %c0_120 = arith.constant 0 : index
    %c0_121 = arith.constant 0 : index
    %292 = vector.load %arg8[%c1_119, %c0_120, %c0_121] : memref<2x1x32xf32, #tpu.memory_space<vmem>>, vector<1x1x32xf32>
    %293 = vector.shape_cast %292 : vector<1x1x32xf32> to vector<1x32xf32>
    %c1_122 = arith.constant 1 : index
    %c0_123 = arith.constant 0 : index
    %c0_124 = arith.constant 0 : index
    %294 = vector.load %arg9[%c1_122, %c0_123, %c0_124] : memref<2x1x32xf32, #tpu.memory_space<vmem>>, vector<1x1x32xf32>
    %295 = vector.shape_cast %294 : vector<1x1x32xf32> to vector<1x32xf32>
    %cst_125 = arith.constant dense<0.000000e+00> : vector<8xf32>
    %296 = vector.multi_reduction <add>, %291, %cst_125 [1] : vector<8x32xf32> to vector<8xf32>
    %297 = vector.shape_cast %296 : vector<8xf32> to vector<8x1xf32>
    %cst_126 = arith.constant 3.200000e+01 : f32
    %298 = vector.broadcast %cst_126 : f32 to vector<8x1xf32>
    %299 = arith.divf %297, %298 : vector<8x1xf32>
    %300 = vector.broadcast %299 : vector<8x1xf32> to vector<8x32xf32>
    %301 = arith.subf %291, %300 : vector<8x32xf32>
    %302 = arith.mulf %301, %301 : vector<8x32xf32>
    %cst_127 = arith.constant dense<0.000000e+00> : vector<8xf32>
    %303 = vector.multi_reduction <add>, %302, %cst_127 [1] : vector<8x32xf32> to vector<8xf32>
    %304 = vector.shape_cast %303 : vector<8xf32> to vector<8x1xf32>
    %cst_128 = arith.constant 3.200000e+01 : f32
    %305 = vector.broadcast %cst_128 : f32 to vector<8x1xf32>
    %306 = arith.divf %304, %305 : vector<8x1xf32>
    %307 = vector.broadcast %299 : vector<8x1xf32> to vector<8x32xf32>
    %308 = arith.subf %291, %307 : vector<8x32xf32>
    %cst_129 = arith.constant 9.99999974E-6 : f32
    %309 = vector.broadcast %cst_129 : f32 to vector<8x1xf32>
    %310 = arith.addf %306, %309 : vector<8x1xf32>
    %311 = math.rsqrt %310 : vector<8x1xf32>
    %312 = vector.broadcast %311 : vector<8x1xf32> to vector<8x32xf32>
    %313 = arith.mulf %308, %312 : vector<8x32xf32>
    %314 = vector.broadcast %293 : vector<1x32xf32> to vector<8x32xf32>
    %315 = arith.mulf %313, %314 : vector<8x32xf32>
    %316 = vector.broadcast %295 : vector<1x32xf32> to vector<8x32xf32>
    %317 = arith.addf %315, %316 : vector<8x32xf32>
    %c1_130 = arith.constant 1 : index
    %c0_131 = arith.constant 0 : index
    %c0_132 = arith.constant 0 : index
    %318 = vector.load %arg10[%c1_130, %c0_131, %c0_132] : memref<2x32x128xf32, #tpu.memory_space<vmem>>, vector<1x32x128xf32>
    %319 = vector.shape_cast %318 : vector<1x32x128xf32> to vector<32x128xf32>
    %cst_133 = arith.constant dense<0.000000e+00> : vector<8x128xf32>
    %320 = tpu.matmul %317, %319, %cst_133 {dimension_numbers = #tpu.dot_dimension_numbers<[1], [0], [0], [1], [0, 0, 1, 1], [], []>} : vector<8x32xf32>, vector<32x128xf32>, vector<8x128xf32> -> vector<8x128xf32>
    %c1_134 = arith.constant 1 : index
    %c0_135 = arith.constant 0 : index
    %c0_136 = arith.constant 0 : index
    %321 = vector.load %arg11[%c1_134, %c0_135, %c0_136] : memref<2x1x128xf32, #tpu.memory_space<vmem>>, vector<1x1x128xf32>
    %322 = vector.shape_cast %321 : vector<1x1x128xf32> to vector<1x128xf32>
    %323 = vector.broadcast %322 : vector<1x128xf32> to vector<8x128xf32>
    %324 = arith.addf %320, %323 : vector<8x128xf32>
    %cst_137 = arith.constant 5.000000e-01 : f32
    %325 = vector.broadcast %cst_137 : f32 to vector<8x128xf32>
    %326 = arith.mulf %325, %324 : vector<8x128xf32>
    %cst_138 = arith.constant 0.707106769 : f32
    %327 = vector.broadcast %cst_138 : f32 to vector<8x128xf32>
    %328 = arith.mulf %324, %327 : vector<8x128xf32>
    %329 = math.erf %328 : vector<8x128xf32>
    %cst_139 = arith.constant 1.000000e+00 : f32
    %330 = vector.broadcast %cst_139 : f32 to vector<8x128xf32>
    %331 = arith.addf %330, %329 : vector<8x128xf32>
    %332 = arith.mulf %326, %331 : vector<8x128xf32>
    %c1_140 = arith.constant 1 : index
    %c0_141 = arith.constant 0 : index
    %c0_142 = arith.constant 0 : index
    %333 = vector.load %arg12[%c1_140, %c0_141, %c0_142] : memref<2x128x32xf32, #tpu.memory_space<vmem>>, vector<1x128x32xf32>
    %334 = vector.shape_cast %333 : vector<1x128x32xf32> to vector<128x32xf32>
    %cst_143 = arith.constant dense<0.000000e+00> : vector<8x32xf32>
    %335 = tpu.matmul %332, %334, %cst_143 {dimension_numbers = #tpu.dot_dimension_numbers<[1], [0], [0], [1], [0, 0, 1, 1], [], []>} : vector<8x128xf32>, vector<128x32xf32>, vector<8x32xf32> -> vector<8x32xf32>
    %c1_144 = arith.constant 1 : index
    %c0_145 = arith.constant 0 : index
    %c0_146 = arith.constant 0 : index
    %336 = vector.load %arg13[%c1_144, %c0_145, %c0_146] : memref<2x1x32xf32, #tpu.memory_space<vmem>>, vector<1x1x32xf32>
    %337 = vector.shape_cast %336 : vector<1x1x32xf32> to vector<1x32xf32>
    %338 = vector.broadcast %337 : vector<1x32xf32> to vector<8x32xf32>
    %339 = arith.addf %335, %338 : vector<8x32xf32>
    %340 = arith.addf %291, %339 : vector<8x32xf32>
    %c0_147 = arith.constant 0 : index
    %c0_148 = arith.constant 0 : index
    %341 = vector.load %arg14[%c0_147, %c0_148] : memref<1x32xf32, #tpu.memory_space<vmem>>, vector<1x32xf32>
    %c0_149 = arith.constant 0 : index
    %c0_150 = arith.constant 0 : index
    %342 = vector.load %arg15[%c0_149, %c0_150] : memref<1x32xf32, #tpu.memory_space<vmem>>, vector<1x32xf32>
    %cst_151 = arith.constant dense<0.000000e+00> : vector<8xf32>
    %343 = vector.multi_reduction <add>, %340, %cst_151 [1] : vector<8x32xf32> to vector<8xf32>
    %344 = vector.shape_cast %343 : vector<8xf32> to vector<8x1xf32>
    %cst_152 = arith.constant 3.200000e+01 : f32
    %345 = vector.broadcast %cst_152 : f32 to vector<8x1xf32>
    %346 = arith.divf %344, %345 : vector<8x1xf32>
    %347 = vector.broadcast %346 : vector<8x1xf32> to vector<8x32xf32>
    %348 = arith.subf %340, %347 : vector<8x32xf32>
    %349 = arith.mulf %348, %348 : vector<8x32xf32>
    %cst_153 = arith.constant dense<0.000000e+00> : vector<8xf32>
    %350 = vector.multi_reduction <add>, %349, %cst_153 [1] : vector<8x32xf32> to vector<8xf32>
    %351 = vector.shape_cast %350 : vector<8xf32> to vector<8x1xf32>
    %cst_154 = arith.constant 3.200000e+01 : f32
    %352 = vector.broadcast %cst_154 : f32 to vector<8x1xf32>
    %353 = arith.divf %351, %352 : vector<8x1xf32>
    %354 = vector.broadcast %346 : vector<8x1xf32> to vector<8x32xf32>
    %355 = arith.subf %340, %354 : vector<8x32xf32>
    %cst_155 = arith.constant 9.99999974E-6 : f32
    %356 = vector.broadcast %cst_155 : f32 to vector<8x1xf32>
    %357 = arith.addf %353, %356 : vector<8x1xf32>
    %358 = math.rsqrt %357 : vector<8x1xf32>
    %359 = vector.broadcast %358 : vector<8x1xf32> to vector<8x32xf32>
    %360 = arith.mulf %355, %359 : vector<8x32xf32>
    %361 = vector.broadcast %341 : vector<1x32xf32> to vector<8x32xf32>
    %362 = arith.mulf %360, %361 : vector<8x32xf32>
    %363 = vector.broadcast %342 : vector<1x32xf32> to vector<8x32xf32>
    %364 = arith.addf %362, %363 : vector<8x32xf32>
    %c0_156 = arith.constant 0 : index
    %c0_157 = arith.constant 0 : index
    %365 = vector.load %arg16[%c0_156, %c0_157] : memref<8x32xf32, #tpu.memory_space<vmem>>, vector<8x32xf32>
    tpu.vector_store %arg16[%c0_156, %c0_157], %364 {strides = array<i32>} : memref<8x32xf32, #tpu.memory_space<vmem>>, vector<8x32xf32>,
    return
  }
  func.func @transform_0(%arg0: i32) -> (i32, i32) {
    %c0_i32 = arith.constant 0 : i32
    %c0_i32_0 = arith.constant 0 : i32
    return %arg0, %c0_i32 : i32, i32
  }
  func.func @transform_1(%arg0: i32) -> (i32, i32, i32) {
    %c0_i32 = arith.constant 0 : i32
    %c0_i32_0 = arith.constant 0 : i32
    %c0_i32_1 = arith.constant 0 : i32
    %c0_i32_2 = arith.constant 0 : i32
    return %c0_i32, %c0_i32_0, %c0_i32_1 : i32, i32, i32
  }
  func.func @transform_2(%arg0: i32) -> (i32, i32, i32) {
    %c0_i32 = arith.constant 0 : i32
    %c0_i32_0 = arith.constant 0 : i32
    %c0_i32_1 = arith.constant 0 : i32
    %c0_i32_2 = arith.constant 0 : i32
    return %c0_i32, %c0_i32_0, %c0_i32_1 : i32, i32, i32
  }
  func.func @transform_3(%arg0: i32) -> (i32, i32, i32) {
    %c0_i32 = arith.constant 0 : i32
    %c0_i32_0 = arith.constant 0 : i32
    %c0_i32_1 = arith.constant 0 : i32
    %c0_i32_2 = arith.constant 0 : i32
    return %c0_i32, %c0_i32_0, %c0_i32_1 : i32, i32, i32
  }
  func.func @transform_4(%arg0: i32) -> (i32, i32, i32) {
    %c0_i32 = arith.constant 0 : i32
    %c0_i32_0 = arith.constant 0 : i32
    %c0_i32_1 = arith.constant 0 : i32
    %c0_i32_2 = arith.constant 0 : i32
    return %c0_i32, %c0_i32_0, %c0_i32_1 : i32, i32, i32
  }
  func.func @transform_5(%arg0: i32) -> (i32, i32, i32) {
    %c0_i32 = arith.constant 0 : i32
    %c0_i32_0 = arith.constant 0 : i32
    %c0_i32_1 = arith.constant 0 : i32
    %c0_i32_2 = arith.constant 0 : i32
    return %c0_i32, %c0_i32_0, %c0_i32_1 : i32, i32, i32
  }
  func.func @transform_6(%arg0: i32) -> (i32, i32, i32) {
    %c0_i32 = arith.constant 0 : i32
    %c0_i32_0 = arith.constant 0 : i32
    %c0_i32_1 = arith.constant 0 : i32
    %c0_i32_2 = arith.constant 0 : i32
    return %c0_i32, %c0_i32_0, %c0_i32_1 : i32, i32, i32
  }
  func.func @transform_7(%arg0: i32) -> (i32, i32, i32) {
    %c0_i32 = arith.constant 0 : i32
    %c0_i32_0 = arith.constant 0 : i32
    %c0_i32_1 = arith.constant 0 : i32
    %c0_i32_2 = arith.constant 0 : i32
    return %c0_i32, %c0_i32_0, %c0_i32_1 : i32, i32, i32
  }
  func.func @transform_8(%arg0: i32) -> (i32, i32, i32) {
    %c0_i32 = arith.constant 0 : i32
    %c0_i32_0 = arith.constant 0 : i32
    %c0_i32_1 = arith.constant 0 : i32
    %c0_i32_2 = arith.constant 0 : i32
    return %c0_i32, %c0_i32_0, %c0_i32_1 : i32, i32, i32
  }
  func.func @transform_9(%arg0: i32) -> (i32, i32, i32) {
    %c0_i32 = arith.constant 0 : i32
    %c0_i32_0 = arith.constant 0 : i32
    %c0_i32_1 = arith.constant 0 : i32
    %c0_i32_2 = arith.constant 0 : i32
    return %c0_i32, %c0_i32_0, %c0_i32_1 : i32, i32, i32
  }
  func.func @transform_10(%arg0: i32) -> (i32, i32, i32) {
    %c0_i32 = arith.constant 0 : i32
    %c0_i32_0 = arith.constant 0 : i32
    %c0_i32_1 = arith.constant 0 : i32
    %c0_i32_2 = arith.constant 0 : i32
    return %c0_i32, %c0_i32_0, %c0_i32_1 : i32, i32, i32
  }
  func.func @transform_11(%arg0: i32) -> (i32, i32, i32) {
    %c0_i32 = arith.constant 0 : i32
    %c0_i32_0 = arith.constant 0 : i32
    %c0_i32_1 = arith.constant 0 : i32
    %c0_i32_2 = arith.constant 0 : i32
    return %c0_i32, %c0_i32_0, %c0_i32_1 : i32, i32, i32
  }
  func.func @transform_12(%arg0: i32) -> (i32, i32, i32) {
    %c0_i32 = arith.constant 0 : i32
    %c0_i32_0 = arith.constant 0 : i32
    %c0_i32_1 = arith.constant 0 : i32
    %c0_i32_2 = arith.constant 0 : i32
    return %c0_i32, %c0_i32_0, %c0_i32_1 : i32, i32, i32
  }
  func.func @transform_13(%arg0: i32) -> (i32, i32) {
    %c0_i32 = arith.constant 0 : i32
    %c0_i32_0 = arith.constant 0 : i32
    %c0_i32_1 = arith.constant 0 : i32
    return %c0_i32, %c0_i32_0 : i32, i32
  }
  func.func @transform_14(%arg0: i32) -> (i32, i32) {
    %c0_i32 = arith.constant 0 : i32
    %c0_i32_0 = arith.constant 0 : i32
    %c0_i32_1 = arith.constant 0 : i32
    return %c0_i32, %c0_i32_0 : i32, i32
  }
  func.func @transform_15(%arg0: i32) -> (i32, i32) {
    %c0_i32 = arith.constant 0 : i32
    %c0_i32_0 = arith.constant 0 : i32
    return %arg0, %c0_i32 : i32, i32
  }
}

</mosaic_0001>

<llo_original>
// kernel: squeeze.14
$region0: #{squeeze.14}
  %s0 = inlined_call_operand.vmem [shape: f32[1,2,4,4], index: 0, kind: input, shape index: {}]
  %s1 = inlined_call_operand.vmem [shape: f32[32], index: 1, kind: output, shape index: {}]
  $region1: #{squeeze.14} parent=0
    #allocation0 [shape = 'u8[4096]{0}', space=vmem, size = 0x1000, scoped, tag = 'scoped mem for output reshape']
    #allocation1 [shape = 'u8[8192]{0}', space=vmem, size = 0x2000, scoped, tag = 'scoped mem for input reshape']
    %s3 = ssub.s32 16, 1
    %s4 = scalar_lea.vmem %s0, 4
    %v5 = vld [vmem:[%s4] sm:%s3]
    %s6 = scalar_lea.vmem [#allocation1], 8
    %7 = vst [vmem:[%s6] sm:%s3] %v5
    %v8 = vld [vmem:[%s0] sm:%s3]
    %9 = vst [vmem:[#allocation1] sm:%s3] %v8
    %v10 = vld [vmem:[#allocation1] sm:$0x1]
    %vm11 = vcmask 31744
    %12 = vst.msk [vmem:[#allocation0] sm:$0x1] %vm11, %v10
    %s13 = scalar_lea.vmem [#allocation1], 11
    %v14 = vld [vmem:[%s13] sm:$0x1]
    %15 = vrot.lane.b32.xlu0 %v14, 28
    %v16 = vpop.permute.xlu0 %15
    %vm17 = vcmask 261344
    %18 = vst.msk [vmem:[#allocation0] sm:$0x1] %vm17, %v16
    %s19 = scalar_lea.vmem [#allocation1], 10
    %v20 = vld [vmem:[%s19] sm:$0x1]
    %21 = vrot.lane.b32.xlu0 %v20, 24
    %v22 = vpop.permute.xlu0 %21
    %vm23 = vcmask 228544
    %24 = vst.msk [vmem:[#allocation0] sm:$0x1] %vm23, %v22
    %s25 = scalar_lea.vmem [#allocation1], 9
    %v26 = vld [vmem:[%s25] sm:$0x1]
    %27 = vrot.lane.b32.xlu0 %v26, 20
    %v28 = vpop.permute.xlu0 %27
    %vm29 = vcmask 195744
    %30 = vst.msk [vmem:[#allocation0] sm:$0x1] %vm29, %v28
    %s31 = scalar_lea.vmem [#allocation1], 8
    %v32 = vld [vmem:[%s31] sm:$0x1]
    %33 = vrot.lane.b32.xlu0 %v32, 16
    %v34 = vpop.permute.xlu0 %33
    %vm35 = vcmask 162944
    %36 = vst.msk [vmem:[#allocation0] sm:$0x1] %vm35, %v34
    %s37 = scalar_lea.vmem [#allocation1], 3
    %v38 = vld [vmem:[%s37] sm:$0x1]
    %39 = vrot.lane.b32.xlu0 %v38, 12
    %v40 = vpop.permute.xlu0 %39
    %vm41 = vcmask 130144
    %42 = vst.msk [vmem:[#allocation0] sm:$0x1] %vm41, %v40
    %s43 = scalar_lea.vmem [#allocation1], 2
    %v44 = vld [vmem:[%s43] sm:$0x1]
    %45 = vrot.lane.b32.xlu0 %v44, 8
    %v46 = vpop.permute.xlu0 %45
    %vm47 = vcmask 97344
    %48 = vst.msk [vmem:[#allocation0] sm:$0x1] %vm47, %v46
    %s49 = scalar_lea.vmem [#allocation1], 1
    %v50 = vld [vmem:[%s49] sm:$0x1]
    %51 = vrot.lane.b32.xlu0 %v50, 4
    %v52 = vpop.permute.xlu0 %51
    %vm53 = vcmask 64544
    %54 = vst.msk [vmem:[#allocation0] sm:$0x1] %vm53, %v52
    %s56 = ssub.s32 2, 1
    %v57 = vld [vmem:[#allocation0] sm:%s56]
    %s59 = ssub.s32 2, 1
    %60 = vst [vmem:[%s1] sm:%s59] %v57

// kernel: forward.3
$region0: #{forward.3}
  #allocation0 [shape = 'u32[]', space=smem, size = 0x4, offset = 0x4, fixed_abs, tag = 'smem constant byte address 0x4 - core index']
  #allocation1 [shape = 'u32[72,128]{1,0:T(1,128)}', space=vmem, size = 0x9000, scoped, tag = 'internal scratch']
  %s0 = inlined_call_operand.vmem [shape: f32[32,192], index: 0, kind: input, shape index: {}]
  %s1 = inlined_call_operand.vmem [shape: f32[192,32], index: 1, kind: input, shape index: {}]
  %s2 = inlined_call_operand.vmem [shape: f32[1,32], index: 2, kind: input, shape index: {}]
  %s3 = inlined_call_operand.vmem [shape: f32[32,32], index: 3, kind: input, shape index: {}]
  %s4 = inlined_call_operand.vmem [shape: f32[32,32], index: 4, kind: output, shape index: {}]
  %s5 = sld [smem:[#allocation0]]
  $region49: #{forward.3} parent=0
    _
  %s7 = ssub.s32 1, %s5
  %s8 = scalar_select 0, %s7, %s5
  loop: start=0, step=1, limit=4
  $region2: #{forward.3} parent=0 // loop_pre_header
    _
  $region3: #{forward.3} parent=0 // loop_header
    %s10 = sphi 0, %s14
    %p11 = scmp.ge.s32.totalorder %s10, 4
    %s20 = sphi 0, %s22
    %s23 = sphi 0, %s20
    %s24 = sphi 0, %s23
    %s40 = sphi 0, %s24
    %s44 = sphi 0, %s44
    %s46 = sphi 0, %s44
    %s47 = sphi 0, %s46
    %s61 = sphi 0, %s47
    %s65 = sphi 0, %s65
    %s67 = sphi 0, %s65
    %s68 = sphi 0, %s67
    %s82 = sphi 0, %s68
    %s88 = sphi 0, %s90
    %s91 = sphi 0, %s88
    %s92 = sphi 0, %s91
    %s108 = sphi 0, %s92
    %s114 = sphi 0, %s116
    %s117 = sphi 0, %s114
    %s118 = sphi 0, %s117
    %s134 = sphi 0, %s118
  $region4: #{forward.3} parent=0 // loop_header_branch
    %13 = sbr.rel (%p11) target = $region8
  $region5: #{forward.3} parent=0 // loop_body
    %s15 = ssub.s32 %s10, 1
    %s16 = ssub.s32 %s10, 2
    %s17 = sadd.s32 %s10, 1
    %s18 = ssub.s32 %s10, %s17
    %p19 = scmp.eq.s32.totalorder %s18, 0
    %s21 = sadd.s32 %s20, 1
    %s22 = scalar_select %p19, %s20, %s21
    %p25 = pneg %p19
    %p26 = scmp.eq.s32.totalorder %s10, 1
    %p27 = por %p25, %p26
    %p28 = scmp.ne.s32.totalorder %s20, %s23
    %p29 = scmp.eq.s32.totalorder %s10, 0
    %p30 = por %p28, %p29
    %p31 = scmp.ne.s32.totalorder %s20, %s23
    %p32 = scmp.eq.s32.totalorder %s15, 1
    %p33 = por %p31, %p32
    %p34 = scmp.ne.s32.totalorder %s23, %s24
    %p35 = scmp.eq.s32.totalorder %s15, 0
    %p36 = por %p34, %p35
    %p37 = scmp.ne.s32.totalorder %s23, %s24
    %p38 = scmp.eq.s32.totalorder %s16, 1
    %p39 = por %p37, %p38
    %p41 = scmp.ne.s32.totalorder %s24, %s40
    %p42 = scmp.eq.s32.totalorder %s16, 0
    %p43 = por %p41, %p42
    %s45 = sadd.s32 %s44, 1
    %p48 = scmp.eq.s32.totalorder %s10, 1
    %p49 = scmp.ne.s32.totalorder %s44, %s46
    %p50 = scmp.eq.s32.totalorder %s10, 0
    %p51 = por %p49, %p50
    %p52 = scmp.ne.s32.totalorder %s44, %s46
    %p53 = scmp.eq.s32.totalorder %s15, 1
    %p54 = por %p52, %p53
    %p55 = scmp.ne.s32.totalorder %s46, %s47
    %p56 = scmp.eq.s32.totalorder %s15, 0
    %p57 = por %p55, %p56
    %p58 = scmp.ne.s32.totalorder %s46, %s47
    %p59 = scmp.eq.s32.totalorder %s16, 1
    %p60 = por %p58, %p59
    %p62 = scmp.ne.s32.totalorder %s47, %s61
    %p63 = scmp.eq.s32.totalorder %s16, 0
    %p64 = por %p62, %p63
    %s66 = sadd.s32 %s65, 1
    %p69 = scmp.eq.s32.totalorder %s10, 1
    %p70 = scmp.ne.s32.totalorder %s65, %s67
    %p71 = scmp.eq.s32.totalorder %s10, 0
    %p72 = por %p70, %p71
    %p73 = scmp.ne.s32.totalorder %s65, %s67
    %p74 = scmp.eq.s32.totalorder %s15, 1
    %p75 = por %p73, %p74
    %p76 = scmp.ne.s32.totalorder %s67, %s68
    %p77 = scmp.eq.s32.totalorder %s15, 0
    %p78 = por %p76, %p77
    %p79 = scmp.ne.s32.totalorder %s67, %s68
    %p80 = scmp.eq.s32.totalorder %s16, 1
    %p81 = por %p79, %p80
    %p83 = scmp.ne.s32.totalorder %s68, %s82
    %p84 = scmp.eq.s32.totalorder %s16, 0
    %p85 = por %p83, %p84
    %s86 = ssub.s32 %s10, %s17
    %p87 = scmp.eq.s32.totalorder %s86, 0
    %s89 = sadd.s32 %s88, 1
    %s90 = scalar_select %p87, %s88, %s89
    %p93 = pneg %p87
    %p94 = scmp.eq.s32.totalorder %s10, 1
    %p95 = por %p93, %p94
    %p96 = scmp.ne.s32.totalorder %s88, %s91
    %p97 = scmp.eq.s32.totalorder %s10, 0
    %p98 = por %p96, %p97
    %p99 = scmp.ne.s32.totalorder %s88, %s91
    %p100 = scmp.eq.s32.totalorder %s15, 1
    %p101 = por %p99, %p100
    %p102 = scmp.ne.s32.totalorder %s91, %s92
    %p103 = scmp.eq.s32.totalorder %s15, 0
    %p104 = por %p102, %p103
    %p105 = scmp.ne.s32.totalorder %s91, %s92
    %p106 = scmp.eq.s32.totalorder %s16, 1
    %p107 = por %p105, %p106
    %p109 = scmp.ne.s32.totalorder %s92, %s108
    %p110 = scmp.eq.s32.totalorder %s16, 0
    %p111 = por %p109, %p110
    %s112 = ssub.s32 %s10, %s17
    %p113 = scmp.eq.s32.totalorder %s112, 0
    %s115 = sadd.s32 %s114, 1
    %s116 = scalar_select %p113, %s114, %s115
    %p119 = pneg %p113
    %p120 = scmp.eq.s32.totalorder %s10, 1
    %p121 = por %p119, %p120
    %p122 = scmp.ne.s32.totalorder %s114, %s117
    %p123 = scmp.eq.s32.totalorder %s10, 0
    %p124 = por %p122, %p123
    %p125 = scmp.ne.s32.totalorder %s114, %s117
    %p126 = scmp.eq.s32.totalorder %s15, 1
    %p127 = por %p125, %p126
    %p128 = scmp.ne.s32.totalorder %s117, %s118
    %p129 = scmp.eq.s32.totalorder %s15, 0
    %p130 = por %p128, %p129
    %p131 = scmp.ne.s32.totalorder %s117, %s118
    %p132 = scmp.eq.s32.totalorder %s16, 1
    %p133 = por %p131, %p132
    %p135 = scmp.ne.s32.totalorder %s118, %s134
    %p136 = scmp.eq.s32.totalorder %s16, 0
    %p137 = por %p135, %p136
    %p138 = scmp.le.s32.totalorder 1, %s10
    %p139 = scmp.lt.s32.totalorder %s10, 3
    %p140 = pnand %p138, %p139
    %p141 = pneg %p140
    // Predicated region
    $region9: #{forward.3} parent=5 // pred_check
      _
    $region10: #{forward.3} parent=5 // pred_check_branch
      %143 = sbr.rel (%p140) target = $region12
    $region11: #{forward.3} parent=5 // pred_region
      %s144 = ssub.s32 %s10, 1
      // Predicated region
      $region13: #{forward.3} parent=11 // pred_check
        %p145 = pneg %p57
      $region14: #{forward.3} parent=11 // pred_check_branch
        %147 = sbr.rel (%p145) target = $region16
      $region15: #{forward.3} parent=11 // pred_region
        _
      $region16: #{forward.3} parent=11 // pred_fallthru
        _
      // Predicated region
      $region17: #{forward.3} parent=11 // pred_check
        %p148 = pneg %p78
      $region18: #{forward.3} parent=11 // pred_check_branch
        %150 = sbr.rel (%p148) target = $region20
      $region19: #{forward.3} parent=11 // pred_region
        _
      $region20: #{forward.3} parent=11 // pred_fallthru
        _
    $region12: #{forward.3} parent=5 // pred_fallthru
      _
    %p151 = scmp.lt.s32.totalorder %s10, 2
    // Predicated region
    $region21: #{forward.3} parent=5 // pred_check
      %p152 = pneg %p151
    $region22: #{forward.3} parent=5 // pred_check_branch
      %154 = sbr.rel (%p152) target = $region24
    $region23: #{forward.3} parent=5 // pred_region
      // Predicated region
      $region25: #{forward.3} parent=23 // pred_check
        %p155 = pneg %p30
      $region26: #{forward.3} parent=23 // pred_check_branch
        %157 = sbr.rel (%p155) target = $region28
      $region27: #{forward.3} parent=23 // pred_region
        %s158 = smul.u32 2, %s10
        %p159 = scmp.lt.s32.totalorder %s158, 3
        %s160 = scalar_select %p159, %s158, 3
        %s161 = smul.addr %s160, 2
        %s162 = smul.addr %s161, 8
        %s163 = scalar_lea.vmem %s0, %s162
        %s164 = smul.u32 2, %s10
      $region28: #{forward.3} parent=23 // pred_fallthru
        _
      // Predicated region
      $region29: #{forward.3} parent=23 // pred_check
        %p165 = pneg %p98
      $region30: #{forward.3} parent=23 // pred_check_branch
        %167 = sbr.rel (%p165) target = $region32
      $region31: #{forward.3} parent=23 // pred_region
        %s168 = smul.u32 2, %s10
        %p169 = scmp.lt.s32.totalorder %s168, 3
        %s170 = scalar_select %p169, %s168, 3
        %s171 = smul.addr %s170, 8
        %s172 = scalar_lea.vmem %s3, %s171
        %s173 = smul.u32 2, %s10
      $region32: #{forward.3} parent=23 // pred_fallthru
        _
    $region24: #{forward.3} parent=5 // pred_fallthru
      _
    %p174 = scmp.le.s32.totalorder 1, %s10
    %p175 = scmp.lt.s32.totalorder %s10, 3
    %p176 = pnand %p174, %p175
    %p177 = pneg %p176
    // Predicated region
    $region33: #{forward.3} parent=5 // pred_check
      _
    $region34: #{forward.3} parent=5 // pred_check_branch
      %179 = sbr.rel (%p176) target = $region36
    $region35: #{forward.3} parent=5 // pred_region
      %s180 = ssub.s32 %s10, 1
      %s181 = smul.u32 2, %s15
      %p182 = scmp.lt.s32.totalorder %s181, 3
      %s183 = scalar_select %p182, %s181, 3
      %s184 = smul.addr %s183, 2
      %s185 = smul.addr %s184, 8
      %s186 = scalar_lea.vmem %s0, %s185
      %p187 = pneg %p36
      %p188 = pneg %p33
      %p189 = pneg %p57
      %p190 = pneg %p54
      %p191 = pneg %p78
      %p192 = pneg %p75
      %s193 = smul.u32 2, %s15
      %p194 = scmp.lt.s32.totalorder %s193, 3
      %s195 = scalar_select %p194, %s193, 3
      %s196 = smul.addr %s195, 8
      %s197 = scalar_lea.vmem %s3, %s196
      %p198 = pneg %p104
      %p199 = pneg %p101
      %p200 = pneg %p130
      %p201 = pneg %p127
      %s202 = smul.u32 2, %s15
      %p203 = scmp.lt.s32.totalorder %s202, 3
      %s204 = scalar_select %p203, %s202, 3
      %s205 = smul.addr %s204, 8
      %s206 = scalar_lea.vmem %s4, %s205
      %s207 = smul.u32 2, %s15
      %p208 = scmp.lt.s32.totalorder %s207, 3
      %s209 = scalar_select %p208, %s207, 3
      %s210 = smul.addr %s209, 2
      %s211 = smul.addr %s210, 8
      %s212 = scalar_lea.vmem %s0, %s211
      %s213 = smul.u32 2, %s15
      %s214 = smul.u32 2, %s15
      %p215 = scmp.lt.s32.totalorder %s214, 3
      %s216 = scalar_select %p215, %s214, 3
      %s217 = smul.addr %s216, 8
      %s218 = scalar_lea.vmem %s3, %s217
      %s219 = smul.u32 2, %s15
      %s220 = smul.u32 2, %s15
      %p221 = scmp.lt.s32.totalorder %s220, 3
      %s222 = scalar_select %p221, %s220, 3
      %s223 = smul.addr %s222, 8
      %s224 = scalar_lea.vmem %s4, %s223
      %s225 = smul.u32 2, %s15
      %v226 = vld [vmem:[%s212] sm:$0xff]
      %v227 = vld [vmem:[%s212 + $0x8] sm:$0xff]
      %v228 = vld [vmem:[%s212 + $0x10] sm:$0xff]
      %v229 = vld [vmem:[%s212 + $0x18] sm:$0xff]
      %v230 = vld [vmem:[%s1] sm:$0xff]
      %v231 = vld [vmem:[%s1 + $0x8] sm:$0xff]
      %v232 = vld [vmem:[%s1 + $0x10] sm:$0xff]
      %v233 = vld [vmem:[%s1 + $0x18] sm:$0xff]
      %v234 = vld [vmem:[%s1 + $0x20] sm:$0xff]
      %v235 = vld [vmem:[%s1 + $0x28] sm:$0xff]
      %v236 = vld [vmem:[%s1 + $0x30] sm:$0xff]
      %v237 = vld [vmem:[%s1 + $0x38] sm:$0xff]
      %v238 = vld [vmem:[%s1 + $0x40] sm:$0xff]
      %v239 = vld [vmem:[%s1 + $0x48] sm:$0xff]
      %v240 = vld [vmem:[%s1 + $0x50] sm:$0xff]
      %v241 = vld [vmem:[%s1 + $0x58] sm:$0xff]
      %v242 = vld [vmem:[%s1 + $0x60] sm:$0xff]
      %v243 = vld [vmem:[%s1 + $0x68] sm:$0xff]
      %v244 = vld [vmem:[%s1 + $0x70] sm:$0xff]
      %v245 = vld [vmem:[%s1 + $0x78] sm:$0xff]
      %v246 = vld [vmem:[%s1 + $0x80] sm:$0xff]
      %v247 = vld [vmem:[%s1 + $0x88] sm:$0xff]
      %v248 = vld [vmem:[%s1 + $0x90] sm:$0xff]
      %v249 = vld [vmem:[%s1 + $0x98] sm:$0xff]
      %v250 = vld [vmem:[%s1 + $0xa0] sm:$0xff]
      %v251 = vld [vmem:[%s1 + $0xa8] sm:$0xff]
      %v252 = vld [vmem:[%s1 + $0xb0] sm:$0xff]
      %v253 = vld [vmem:[%s1 + $0xb8] sm:$0xff]
      %v254 = vld [vmem:[%s2] sm:$0x1]
      %v256 = vperm.slane %v254, 0
      %vm258 = vcmask 523264
      %v260 = vsel %vm258, %v227, 0
      %v263 = vsel %vm258, %v229, 0
      %265 = vmatpush.msra.mxu0 %v245
      %266 = vmatpush.msra.mxu0 %v244
      %267 = vmatpush.msra.mxu0 %v243
      %268 = vmatpush.msra.mxu0 %v242
      %269 = vmatpush.msra.mxu0 %v241
      %270 = vmatpush.msra.mxu0 %v240
      %271 = vmatpush.msra.mxu0 %v239
      %272 = vmatpush.msra.mxu0 %v238
      %273 = vmatpush.msra.mxu0 %v237
      %274 = vmatpush.msra.mxu0 %v236
      %275 = vmatpush.msra.mxu0 %v235
      %276 = vmatpush.msra.mxu0 %v234
      %277 = vmatpush.msra.mxu0 %v233
      %278 = vmatpush.msra.mxu0 %v232
      %279 = vmatpush.msra.mxu0 %v231
      %280 = vmatpush.msra.mxu0 %v230
      %281 = vmatmul.f32.gmra.mxu0 %v226
      %v282 = vpop.f32.mrf.mxu0
      %v283 = vadd.f32 %v256, %v282
      %284 = vmatmul.f32.gmra.mxu0 %v228
      %v285 = vpop.f32.mrf.mxu0
      %v286 = vadd.f32 %v256, %v285
      %287 = vdwg.mxu0
      %288 = vmatpush.msra.mxu0 0.0
      %289 = vmatpush.msra.mxu0 0.0
      %290 = vmatpush.msra.mxu0 0.0
      %291 = vmatpush.msra.mxu0 0.0
      %292 = vmatpush.msra.mxu0 0.0
      %293 = vmatpush.msra.mxu0 0.0
      %294 = vmatpush.msra.mxu0 0.0
      %295 = vmatpush.msra.mxu0 0.0
      %296 = vmatpush.msra.mxu0 %v253
      %297 = vmatpush.msra.mxu0 %v252
      %298 = vmatpush.msra.mxu0 %v251
      %299 = vmatpush.msra.mxu0 %v250
      %300 = vmatpush.msra.mxu0 %v249
      %301 = vmatpush.msra.mxu0 %v248
      %302 = vmatpush.msra.mxu0 %v247
      %303 = vmatpush.msra.mxu0 %v246
      %304 = vmatmul.f32.gmra.mxu0 %v260
      %v305 = vpop.f32.mrf.mxu0
      %v306 = vadd.f32 %v283, %v305
      %307 = vmatmul.f32.gmra.mxu0 %v263
      %v308 = vpop.f32.mrf.mxu0
      %v309 = vadd.f32 %v286, %v308
      %310 = vdwg.mxu0
      %v311 = vld [vmem:[%s218] sm:$0xff]
      %v312 = vld [vmem:[%s218 + $0x8] sm:$0xff]
      %v313 = vadd.f32 %v306, %v311
      %v314 = vadd.f32 %v309, %v312
      %vm315 = vcmask 261120
      %316 = vst.msk [vmem:[%s224] sm:$0xff] %vm315, %v313
      %317 = vst.msk [vmem:[%s224 + $0x8] sm:$0xff] %vm315, %v314
      %s318 = smul.u32 2, %s15
      %p319 = scmp.lt.s32.totalorder %s318, 3
      %s320 = scalar_select %p319, %s318, 3
      %s321 = smul.addr %s320, 8
      %s322 = scalar_lea.vmem %s4, %s321
      // Predicated region
      $region37: #{forward.3} parent=35 // pred_check
        %p323 = pneg %p127
      $region38: #{forward.3} parent=35 // pred_check_branch
        %325 = sbr.rel (%p323) target = $region40
      $region39: #{forward.3} parent=35 // pred_region
        %s326 = smul.u32 2, %s15
      $region40: #{forward.3} parent=35 // pred_fallthru
        _
    $region36: #{forward.3} parent=5 // pred_fallthru
      _
    %p327 = scmp.le.s32.totalorder 2, %s10
    // Predicated region
    $region41: #{forward.3} parent=5 // pred_check
      %p328 = pneg %p327
    $region42: #{forward.3} parent=5 // pred_check_branch
      %330 = sbr.rel (%p328) target = $region44
    $region43: #{forward.3} parent=5 // pred_region
      %s331 = ssub.s32 %s10, 2
      // Predicated region
      $region45: #{forward.3} parent=43 // pred_check
        %p332 = pneg %p133
      $region46: #{forward.3} parent=43 // pred_check_branch
        %334 = sbr.rel (%p332) target = $region48
      $region47: #{forward.3} parent=43 // pred_region
        %s335 = smul.u32 2, %s16
        %p336 = scmp.lt.s32.totalorder %s335, 3
        %s337 = scalar_select %p336, %s335, 3
        %s338 = smul.addr %s337, 8
        %s339 = scalar_lea.vmem %s4, %s338
      $region48: #{forward.3} parent=43 // pred_fallthru
        _
    $region44: #{forward.3} parent=5 // pred_fallthru
      _
  $region6: #{forward.3} parent=0 // loop_footer
    %s14 = sadd.s32 1, %s10
  $region7: #{forward.3} parent=0 // loop_footer_branch
    %9 = sbr.rel target = $region3
  $region8: #{forward.3} parent=0 // loop_exit
    _

// kernel: forward.4
$region0: #{forward.4}
  #allocation0 [shape = 'u32[]', space=smem, size = 0x4, offset = 0x4, fixed_abs, tag = 'smem constant byte address 0x4 - core index']
  #allocation1 [shape = 'u32[72,128]{1,0:T(1,128)}', space=vmem, size = 0x9000, scoped, tag = 'internal scratch']
  %s0 = inlined_call_operand.vmem [shape: f32[16,32], index: 0, kind: input, shape index: {}]
  %s1 = inlined_call_operand.vmem [shape: f32[2,1,32], index: 1, kind: input, shape index: {}]
  %s2 = inlined_call_operand.vmem [shape: f32[2,1,32], index: 2, kind: input, shape index: {}]
  %s3 = inlined_call_operand.vmem [shape: f32[2,32,96], index: 3, kind: input, shape index: {}]
  %s4 = inlined_call_operand.vmem [shape: f32[2,1,96], index: 4, kind: input, shape index: {}]
  %s5 = inlined_call_operand.vmem [shape: f32[2,32,32], index: 5, kind: input, shape index: {}]
  %s6 = inlined_call_operand.vmem [shape: f32[2,1,32], index: 6, kind: input, shape index: {}]
  %s7 = inlined_call_operand.vmem [shape: f32[2,1,32], index: 7, kind: input, shape index: {}]
  %s8 = inlined_call_operand.vmem [shape: f32[2,1,32], index: 8, kind: input, shape index: {}]
  %s9 = inlined_call_operand.vmem [shape: f32[2,32,128], index: 9, kind: input, shape index: {}]
  %s10 = inlined_call_operand.vmem [shape: f32[2,1,128], index: 10, kind: input, shape index: {}]
  %s11 = inlined_call_operand.vmem [shape: f32[2,128,32], index: 11, kind: input, shape index: {}]
  %s12 = inlined_call_operand.vmem [shape: f32[2,1,32], index: 12, kind: input, shape index: {}]
  %s13 = inlined_call_operand.vmem [shape: f32[1,32], index: 13, kind: input, shape index: {}]
  %s14 = inlined_call_operand.vmem [shape: f32[1,32], index: 14, kind: input, shape index: {}]
  %s15 = inlined_call_operand.vmem [shape: f32[32,32], index: 15, kind: input, shape index: {}]
  %s16 = inlined_call_operand.vmem [shape: f32[1,32], index: 16, kind: input, shape index: {}]
  %s17 = inlined_call_operand.vmem [shape: f32[16,32], index: 17, kind: output, shape index: {}]
  %s18 = sld [smem:[#allocation0]]
  $region101: #{forward.4} parent=0
    _
  %s20 = ssub.s32 1, %s18
  %s21 = scalar_select 0, %s20, %s18
  loop: start=0, step=1, limit=4
  $region2: #{forward.4} parent=0 // loop_pre_header
    _
  $region3: #{forward.4} parent=0 // loop_header
    %s23 = sphi 0, %s27
    %p24 = scmp.ge.s32.totalorder %s23, 4
    %s33 = sphi 0, %s35
    %s36 = sphi 0, %s33
    %s37 = sphi 0, %s36
    %s53 = sphi 0, %s37
    %s57 = sphi 0, %s57
    %s59 = sphi 0, %s57
    %s60 = sphi 0, %s59
    %s74 = sphi 0, %s60
    %s78 = sphi 0, %s78
    %s80 = sphi 0, %s78
    %s81 = sphi 0, %s80
    %s95 = sphi 0, %s81
    %s99 = sphi 0, %s99
    %s101 = sphi 0, %s99
    %s102 = sphi 0, %s101
    %s116 = sphi 0, %s102
    %s120 = sphi 0, %s120
    %s122 = sphi 0, %s120
    %s123 = sphi 0, %s122
    %s137 = sphi 0, %s123
    %s141 = sphi 0, %s141
    %s143 = sphi 0, %s141
    %s144 = sphi 0, %s143
    %s158 = sphi 0, %s144
    %s162 = sphi 0, %s162
    %s164 = sphi 0, %s162
    %s165 = sphi 0, %s164
    %s179 = sphi 0, %s165
    %s183 = sphi 0, %s183
    %s185 = sphi 0, %s183
    %s186 = sphi 0, %s185
    %s200 = sphi 0, %s186
    %s204 = sphi 0, %s204
    %s206 = sphi 0, %s204
    %s207 = sphi 0, %s206
    %s221 = sphi 0, %s207
    %s225 = sphi 0, %s225
    %s227 = sphi 0, %s225
    %s228 = sphi 0, %s227
    %s242 = sphi 0, %s228
    %s246 = sphi 0, %s246
    %s248 = sphi 0, %s246
    %s249 = sphi 0, %s248
    %s263 = sphi 0, %s249
    %s267 = sphi 0, %s267
    %s269 = sphi 0, %s267
    %s270 = sphi 0, %s269
    %s284 = sphi 0, %s270
    %s288 = sphi 0, %s288
    %s290 = sphi 0, %s288
    %s291 = sphi 0, %s290
    %s305 = sphi 0, %s291
    %s309 = sphi 0, %s309
    %s311 = sphi 0, %s309
    %s312 = sphi 0, %s311
    %s326 = sphi 0, %s312
    %s330 = sphi 0, %s330
    %s332 = sphi 0, %s330
    %s333 = sphi 0, %s332
    %s347 = sphi 0, %s333
    %s351 = sphi 0, %s351
    %s353 = sphi 0, %s351
    %s354 = sphi 0, %s353
    %s368 = sphi 0, %s354
    %s372 = sphi 0, %s372
    %s374 = sphi 0, %s372
    %s375 = sphi 0, %s374
    %s389 = sphi 0, %s375
    %s395 = sphi 0, %s397
    %s398 = sphi 0, %s395
    %s399 = sphi 0, %s398
    %s415 = sphi 0, %s399
  $region4: #{forward.4} parent=0 // loop_header_branch
    %26 = sbr.rel (%p24) target = $region8
  $region5: #{forward.4} parent=0 // loop_body
    %s28 = ssub.s32 %s23, 1
    %s29 = ssub.s32 %s23, 2
    %s30 = sadd.s32 %s23, 1
    %s31 = ssub.s32 %s23, %s30
    %p32 = scmp.eq.s32.totalorder %s31, 0
    %s34 = sadd.s32 %s33, 1
    %s35 = scalar_select %p32, %s33, %s34
    %p38 = pneg %p32
    %p39 = scmp.eq.s32.totalorder %s23, 1
    %p40 = por %p38, %p39
    %p41 = scmp.ne.s32.totalorder %s33, %s36
    %p42 = scmp.eq.s32.totalorder %s23, 0
    %p43 = por %p41, %p42
    %p44 = scmp.ne.s32.totalorder %s33, %s36
    %p45 = scmp.eq.s32.totalorder %s28, 1
    %p46 = por %p44, %p45
    %p47 = scmp.ne.s32.totalorder %s36, %s37
    %p48 = scmp.eq.s32.totalorder %s28, 0
    %p49 = por %p47, %p48
    %p50 = scmp.ne.s32.totalorder %s36, %s37
    %p51 = scmp.eq.s32.totalorder %s29, 1
    %p52 = por %p50, %p51
    %p54 = scmp.ne.s32.totalorder %s37, %s53
    %p55 = scmp.eq.s32.totalorder %s29, 0
    %p56 = por %p54, %p55
    %s58 = sadd.s32 %s57, 1
    %p61 = scmp.eq.s32.totalorder %s23, 1
    %p62 = scmp.ne.s32.totalorder %s57, %s59
    %p63 = scmp.eq.s32.totalorder %s23, 0
    %p64 = por %p62, %p63
    %p65 = scmp.ne.s32.totalorder %s57, %s59
    %p66 = scmp.eq.s32.totalorder %s28, 1
    %p67 = por %p65, %p66
    %p68 = scmp.ne.s32.totalorder %s59, %s60
    %p69 = scmp.eq.s32.totalorder %s28, 0
    %p70 = por %p68, %p69
    %p71 = scmp.ne.s32.totalorder %s59, %s60
    %p72 = scmp.eq.s32.totalorder %s29, 1
    %p73 = por %p71, %p72
    %p75 = scmp.ne.s32.totalorder %s60, %s74
    %p76 = scmp.eq.s32.totalorder %s29, 0
    %p77 = por %p75, %p76
    %s79 = sadd.s32 %s78, 1
    %p82 = scmp.eq.s32.totalorder %s23, 1
    %p83 = scmp.ne.s32.totalorder %s78, %s80
    %p84 = scmp.eq.s32.totalorder %s23, 0
    %p85 = por %p83, %p84
    %p86 = scmp.ne.s32.totalorder %s78, %s80
    %p87 = scmp.eq.s32.totalorder %s28, 1
    %p88 = por %p86, %p87
    %p89 = scmp.ne.s32.totalorder %s80, %s81
    %p90 = scmp.eq.s32.totalorder %s28, 0
    %p91 = por %p89, %p90
    %p92 = scmp.ne.s32.totalorder %s80, %s81
    %p93 = scmp.eq.s32.totalorder %s29, 1
    %p94 = por %p92, %p93
    %p96 = scmp.ne.s32.totalorder %s81, %s95
    %p97 = scmp.eq.s32.totalorder %s29, 0
    %p98 = por %p96, %p97
    %s100 = sadd.s32 %s99, 1
    %p103 = scmp.eq.s32.totalorder %s23, 1
    %p104 = scmp.ne.s32.totalorder %s99, %s101
    %p105 = scmp.eq.s32.totalorder %s23, 0
    %p106 = por %p104, %p105
    %p107 = scmp.ne.s32.totalorder %s99, %s101
    %p108 = scmp.eq.s32.totalorder %s28, 1
    %p109 = por %p107, %p108
    %p110 = scmp.ne.s32.totalorder %s101, %s102
    %p111 = scmp.eq.s32.totalorder %s28, 0
    %p112 = por %p110, %p111
    %p113 = scmp.ne.s32.totalorder %s101, %s102
    %p114 = scmp.eq.s32.totalorder %s29, 1
    %p115 = por %p113, %p114
    %p117 = scmp.ne.s32.totalorder %s102, %s116
    %p118 = scmp.eq.s32.totalorder %s29, 0
    %p119 = por %p117, %p118
    %s121 = sadd.s32 %s120, 1
    %p124 = scmp.eq.s32.totalorder %s23, 1
    %p125 = scmp.ne.s32.totalorder %s120, %s122
    %p126 = scmp.eq.s32.totalorder %s23, 0
    %p127 = por %p125, %p126
    %p128 = scmp.ne.s32.totalorder %s120, %s122
    %p129 = scmp.eq.s32.totalorder %s28, 1
    %p130 = por %p128, %p129
    %p131 = scmp.ne.s32.totalorder %s122, %s123
    %p132 = scmp.eq.s32.totalorder %s28, 0
    %p133 = por %p131, %p132
    %p134 = scmp.ne.s32.totalorder %s122, %s123
    %p135 = scmp.eq.s32.totalorder %s29, 1
    %p136 = por %p134, %p135
    %p138 = scmp.ne.s32.totalorder %s123, %s137
    %p139 = scmp.eq.s32.totalorder %s29, 0
    %p140 = por %p138, %p139
    %s142 = sadd.s32 %s141, 1
    %p145 = scmp.eq.s32.totalorder %s23, 1
    %p146 = scmp.ne.s32.totalorder %s141, %s143
    %p147 = scmp.eq.s32.totalorder %s23, 0
    %p148 = por %p146, %p147
    %p149 = scmp.ne.s32.totalorder %s141, %s143
    %p150 = scmp.eq.s32.totalorder %s28, 1
    %p151 = por %p149, %p150
    %p152 = scmp.ne.s32.totalorder %s143, %s144
    %p153 = scmp.eq.s32.totalorder %s28, 0
    %p154 = por %p152, %p153
    %p155 = scmp.ne.s32.totalorder %s143, %s144
    %p156 = scmp.eq.s32.totalorder %s29, 1
    %p157 = por %p155, %p156
    %p159 = scmp.ne.s32.totalorder %s144, %s158
    %p160 = scmp.eq.s32.totalorder %s29, 0
    %p161 = por %p159, %p160
    %s163 = sadd.s32 %s162, 1
    %p166 = scmp.eq.s32.totalorder %s23, 1
    %p167 = scmp.ne.s32.totalorder %s162, %s164
    %p168 = scmp.eq.s32.totalorder %s23, 0
    %p169 = por %p167, %p168
    %p170 = scmp.ne.s32.totalorder %s162, %s164
    %p171 = scmp.eq.s32.totalorder %s28, 1
    %p172 = por %p170, %p171
    %p173 = scmp.ne.s32.totalorder %s164, %s165
    %p174 = scmp.eq.s32.totalorder %s28, 0
    %p175 = por %p173, %p174
    %p176 = scmp.ne.s32.totalorder %s164, %s165
    %p177 = scmp.eq.s32.totalorder %s29, 1
    %p178 = por %p176, %p177
    %p180 = scmp.ne.s32.totalorder %s165, %s179
    %p181 = scmp.eq.s32.totalorder %s29, 0
    %p182 = por %p180, %p181
    %s184 = sadd.s32 %s183, 1
    %p187 = scmp.eq.s32.totalorder %s23, 1
    %p188 = scmp.ne.s32.totalorder %s183, %s185
    %p189 = scmp.eq.s32.totalorder %s23, 0
    %p190 = por %p188, %p189
    %p191 = scmp.ne.s32.totalorder %s183, %s185
    %p192 = scmp.eq.s32.totalorder %s28, 1
    %p193 = por %p191, %p192
    %p194 = scmp.ne.s32.totalorder %s185, %s186
    %p195 = scmp.eq.s32.totalorder %s28, 0
    %p196 = por %p194, %p195
    %p197 = scmp.ne.s32.totalorder %s185, %s186
    %p198 = scmp.eq.s32.totalorder %s29, 1
    %p199 = por %p197, %p198
    %p201 = scmp.ne.s32.totalorder %s186, %s200
    %p202 = scmp.eq.s32.totalorder %s29, 0
    %p203 = por %p201, %p202
    %s205 = sadd.s32 %s204, 1
    %p208 = scmp.eq.s32.totalorder %s23, 1
    %p209 = scmp.ne.s32.totalorder %s204, %s206
    %p210 = scmp.eq.s32.totalorder %s23, 0
    %p211 = por %p209, %p210
    %p212 = scmp.ne.s32.totalorder %s204, %s206
    %p213 = scmp.eq.s32.totalorder %s28, 1
    %p214 = por %p212, %p213
    %p215 = scmp.ne.s32.totalorder %s206, %s207
    %p216 = scmp.eq.s32.totalorder %s28, 0
    %p217 = por %p215, %p216
    %p218 = scmp.ne.s32.totalorder %s206, %s207
    %p219 = scmp.eq.s32.totalorder %s29, 1
    %p220 = por %p218, %p219
    %p222 = scmp.ne.s32.totalorder %s207, %s221
    %p223 = scmp.eq.s32.totalorder %s29, 0
    %p224 = por %p222, %p223
    %s226 = sadd.s32 %s225, 1
    %p229 = scmp.eq.s32.totalorder %s23, 1
    %p230 = scmp.ne.s32.totalorder %s225, %s227
    %p231 = scmp.eq.s32.totalorder %s23, 0
    %p232 = por %p230, %p231
    %p233 = scmp.ne.s32.totalorder %s225, %s227
    %p234 = scmp.eq.s32.totalorder %s28, 1
    %p235 = por %p233, %p234
    %p236 = scmp.ne.s32.totalorder %s227, %s228
    %p237 = scmp.eq.s32.totalorder %s28, 0
    %p238 = por %p236, %p237
    %p239 = scmp.ne.s32.totalorder %s227, %s228
    %p240 = scmp.eq.s32.totalorder %s29, 1
    %p241 = por %p239, %p240
    %p243 = scmp.ne.s32.totalorder %s228, %s242
    %p244 = scmp.eq.s32.totalorder %s29, 0
    %p245 = por %p243, %p244
    %s247 = sadd.s32 %s246, 1
    %p250 = scmp.eq.s32.totalorder %s23, 1
    %p251 = scmp.ne.s32.totalorder %s246, %s248
    %p252 = scmp.eq.s32.totalorder %s23, 0
    %p253 = por %p251, %p252
    %p254 = scmp.ne.s32.totalorder %s246, %s248
    %p255 = scmp.eq.s32.totalorder %s28, 1
    %p256 = por %p254, %p255
    %p257 = scmp.ne.s32.totalorder %s248, %s249
    %p258 = scmp.eq.s32.totalorder %s28, 0
    %p259 = por %p257, %p258
    %p260 = scmp.ne.s32.totalorder %s248, %s249
    %p261 = scmp.eq.s32.totalorder %s29, 1
    %p262 = por %p260, %p261
    %p264 = scmp.ne.s32.totalorder %s249, %s263
    %p265 = scmp.eq.s32.totalorder %s29, 0
    %p266 = por %p264, %p265
    %s268 = sadd.s32 %s267, 1
    %p271 = scmp.eq.s32.totalorder %s23, 1
    %p272 = scmp.ne.s32.totalorder %s267, %s269
    %p273 = scmp.eq.s32.totalorder %s23, 0
    %p274 = por %p272, %p273
    %p275 = scmp.ne.s32.totalorder %s267, %s269
    %p276 = scmp.eq.s32.totalorder %s28, 1
    %p277 = por %p275, %p276
    %p278 = scmp.ne.s32.totalorder %s269, %s270
    %p279 = scmp.eq.s32.totalorder %s28, 0
    %p280 = por %p278, %p279
    %p281 = scmp.ne.s32.totalorder %s269, %s270
    %p282 = scmp.eq.s32.totalorder %s29, 1
    %p283 = por %p281, %p282
    %p285 = scmp.ne.s32.totalorder %s270, %s284
    %p286 = scmp.eq.s32.totalorder %s29, 0
    %p287 = por %p285, %p286
    %s289 = sadd.s32 %s288, 1
    %p292 = scmp.eq.s32.totalorder %s23, 1
    %p293 = scmp.ne.s32.totalorder %s288, %s290
    %p294 = scmp.eq.s32.totalorder %s23, 0
    %p295 = por %p293, %p294
    %p296 = scmp.ne.s32.totalorder %s288, %s290
    %p297 = scmp.eq.s32.totalorder %s28, 1
    %p298 = por %p296, %p297
    %p299 = scmp.ne.s32.totalorder %s290, %s291
    %p300 = scmp.eq.s32.totalorder %s28, 0
    %p301 = por %p299, %p300
    %p302 = scmp.ne.s32.totalorder %s290, %s291
    %p303 = scmp.eq.s32.totalorder %s29, 1
    %p304 = por %p302, %p303
    %p306 = scmp.ne.s32.totalorder %s291, %s305
    %p307 = scmp.eq.s32.totalorder %s29, 0
    %p308 = por %p306, %p307
    %s310 = sadd.s32 %s309, 1
    %p313 = scmp.eq.s32.totalorder %s23, 1
    %p314 = scmp.ne.s32.totalorder %s309, %s311
    %p315 = scmp.eq.s32.totalorder %s23, 0
    %p316 = por %p314, %p315
    %p317 = scmp.ne.s32.totalorder %s309, %s311
    %p318 = scmp.eq.s32.totalorder %s28, 1
    %p319 = por %p317, %p318
    %p320 = scmp.ne.s32.totalorder %s311, %s312
    %p321 = scmp.eq.s32.totalorder %s28, 0
    %p322 = por %p320, %p321
    %p323 = scmp.ne.s32.totalorder %s311, %s312
    %p324 = scmp.eq.s32.totalorder %s29, 1
    %p325 = por %p323, %p324
    %p327 = scmp.ne.s32.totalorder %s312, %s326
    %p328 = scmp.eq.s32.totalorder %s29, 0
    %p329 = por %p327, %p328
    %s331 = sadd.s32 %s330, 1
    %p334 = scmp.eq.s32.totalorder %s23, 1
    %p335 = scmp.ne.s32.totalorder %s330, %s332
    %p336 = scmp.eq.s32.totalorder %s23, 0
    %p337 = por %p335, %p336
    %p338 = scmp.ne.s32.totalorder %s330, %s332
    %p339 = scmp.eq.s32.totalorder %s28, 1
    %p340 = por %p338, %p339
    %p341 = scmp.ne.s32.totalorder %s332, %s333
    %p342 = scmp.eq.s32.totalorder %s28, 0
    %p343 = por %p341, %p342
    %p344 = scmp.ne.s32.totalorder %s332, %s333
    %p345 = scmp.eq.s32.totalorder %s29, 1
    %p346 = por %p344, %p345
    %p348 = scmp.ne.s32.totalorder %s333, %s347
    %p349 = scmp.eq.s32.totalorder %s29, 0
    %p350 = por %p348, %p349
    %s352 = sadd.s32 %s351, 1
    %p355 = scmp.eq.s32.totalorder %s23, 1
    %p356 = scmp.ne.s32.totalorder %s351, %s353
    %p357 = scmp.eq.s32.totalorder %s23, 0
    %p358 = por %p356, %p357
    %p359 = scmp.ne.s32.totalorder %s351, %s353
    %p360 = scmp.eq.s32.totalorder %s28, 1
    %p361 = por %p359, %p360
    %p362 = scmp.ne.s32.totalorder %s353, %s354
    %p363 = scmp.eq.s32.totalorder %s28, 0
    %p364 = por %p362, %p363
    %p365 = scmp.ne.s32.totalorder %s353, %s354
    %p366 = scmp.eq.s32.totalorder %s29, 1
    %p367 = por %p365, %p366
    %p369 = scmp.ne.s32.totalorder %s354, %s368
    %p370 = scmp.eq.s32.totalorder %s29, 0
    %p371 = por %p369, %p370
    %s373 = sadd.s32 %s372, 1
    %p376 = scmp.eq.s32.totalorder %s23, 1
    %p377 = scmp.ne.s32.totalorder %s372, %s374
    %p378 = scmp.eq.s32.totalorder %s23, 0
    %p379 = por %p377, %p378
    %p380 = scmp.ne.s32.totalorder %s372, %s374
    %p381 = scmp.eq.s32.totalorder %s28, 1
    %p382 = por %p380, %p381
    %p383 = scmp.ne.s32.totalorder %s374, %s375
    %p384 = scmp.eq.s32.totalorder %s28, 0
    %p385 = por %p383, %p384
    %p386 = scmp.ne.s32.totalorder %s374, %s375
    %p387 = scmp.eq.s32.totalorder %s29, 1
    %p388 = por %p386, %p387
    %p390 = scmp.ne.s32.totalorder %s375, %s389
    %p391 = scmp.eq.s32.totalorder %s29, 0
    %p392 = por %p390, %p391
    %s393 = ssub.s32 %s23, %s30
    %p394 = scmp.eq.s32.totalorder %s393, 0
    %s396 = sadd.s32 %s395, 1
    %s397 = scalar_select %p394, %s395, %s396
    %p400 = pneg %p394
    %p401 = scmp.eq.s32.totalorder %s23, 1
    %p402 = por %p400, %p401
    %p403 = scmp.ne.s32.totalorder %s395, %s398
    %p404 = scmp.eq.s32.totalorder %s23, 0
    %p405 = por %p403, %p404
    %p406 = scmp.ne.s32.totalorder %s395, %s398
    %p407 = scmp.eq.s32.totalorder %s28, 1
    %p408 = por %p406, %p407
    %p409 = scmp.ne.s32.totalorder %s398, %s399
    %p410 = scmp.eq.s32.totalorder %s28, 0
    %p411 = por %p409, %p410
    %p412 = scmp.ne.s32.totalorder %s398, %s399
    %p413 = scmp.eq.s32.totalorder %s29, 1
    %p414 = por %p412, %p413
    %p416 = scmp.ne.s32.totalorder %s399, %s415
    %p417 = scmp.eq.s32.totalorder %s29, 0
    %p418 = por %p416, %p417
    %p419 = scmp.le.s32.totalorder 1, %s23
    %p420 = scmp.lt.s32.totalorder %s23, 3
    %p421 = pnand %p419, %p420
    %p422 = pneg %p421
    // Predicated region
    $region9: #{forward.4} parent=5 // pred_check
      _
    $region10: #{forward.4} parent=5 // pred_check_branch
      %424 = sbr.rel (%p421) target = $region12
    $region11: #{forward.4} parent=5 // pred_region
      %s425 = ssub.s32 %s23, 1
      // Predicated region
      $region13: #{forward.4} parent=11 // pred_check
        %p426 = pneg %p70
      $region14: #{forward.4} parent=11 // pred_check_branch
        %428 = sbr.rel (%p426) target = $region16
      $region15: #{forward.4} parent=11 // pred_region
        _
      $region16: #{forward.4} parent=11 // pred_fallthru
        _
      // Predicated region
      $region17: #{forward.4} parent=11 // pred_check
        %p429 = pneg %p91
      $region18: #{forward.4} parent=11 // pred_check_branch
        %431 = sbr.rel (%p429) target = $region20
      $region19: #{forward.4} parent=11 // pred_region
        _
      $region20: #{forward.4} parent=11 // pred_fallthru
        _
      // Predicated region
      $region21: #{forward.4} parent=11 // pred_check
        %p432 = pneg %p112
      $region22: #{forward.4} parent=11 // pred_check_branch
        %434 = sbr.rel (%p432) target = $region24
      $region23: #{forward.4} parent=11 // pred_region
        _
      $region24: #{forward.4} parent=11 // pred_fallthru
        _
      // Predicated region
      $region25: #{forward.4} parent=11 // pred_check
        %p435 = pneg %p133
      $region26: #{forward.4} parent=11 // pred_check_branch
        %437 = sbr.rel (%p435) target = $region28
      $region27: #{forward.4} parent=11 // pred_region
        _
      $region28: #{forward.4} parent=11 // pred_fallthru
        _
      // Predicated region
      $region29: #{forward.4} parent=11 // pred_check
        %p438 = pneg %p154
      $region30: #{forward.4} parent=11 // pred_check_branch
        %440 = sbr.rel (%p438) target = $region32
      $region31: #{forward.4} parent=11 // pred_region
        _
      $region32: #{forward.4} parent=11 // pred_fallthru
        _
      // Predicated region
      $region33: #{forward.4} parent=11 // pred_check
        %p441 = pneg %p175
      $region34: #{forward.4} parent=11 // pred_check_branch
        %443 = sbr.rel (%p441) target = $region36
      $region35: #{forward.4} parent=11 // pred_region
        _
      $region36: #{forward.4} parent=11 // pred_fallthru
        _
      // Predicated region
      $region37: #{forward.4} parent=11 // pred_check
        %p444 = pneg %p196
      $region38: #{forward.4} parent=11 // pred_check_branch
        %446 = sbr.rel (%p444) target = $region40
      $region39: #{forward.4} parent=11 // pred_region
        _
      $region40: #{forward.4} parent=11 // pred_fallthru
        _
      // Predicated region
      $region41: #{forward.4} parent=11 // pred_check
        %p447 = pneg %p217
      $region42: #{forward.4} parent=11 // pred_check_branch
        %449 = sbr.rel (%p447) target = $region44
      $region43: #{forward.4} parent=11 // pred_region
        _
      $region44: #{forward.4} parent=11 // pred_fallthru
        _
      // Predicated region
      $region45: #{forward.4} parent=11 // pred_check
        %p450 = pneg %p238
      $region46: #{forward.4} parent=11 // pred_check_branch
        %452 = sbr.rel (%p450) target = $region48
      $region47: #{forward.4} parent=11 // pred_region
        _
      $region48: #{forward.4} parent=11 // pred_fallthru
        _
      // Predicated region
      $region49: #{forward.4} parent=11 // pred_check
        %p453 = pneg %p259
      $region50: #{forward.4} parent=11 // pred_check_branch
        %455 = sbr.rel (%p453) target = $region52
      $region51: #{forward.4} parent=11 // pred_region
        _
      $region52: #{forward.4} parent=11 // pred_fallthru
        _
      // Predicated region
      $region53: #{forward.4} parent=11 // pred_check
        %p456 = pneg %p280
      $region54: #{forward.4} parent=11 // pred_check_branch
        %458 = sbr.rel (%p456) target = $region56
      $region55: #{forward.4} parent=11 // pred_region
        _
      $region56: #{forward.4} parent=11 // pred_fallthru
        _
      // Predicated region
      $region57: #{forward.4} parent=11 // pred_check
        %p459 = pneg %p301
      $region58: #{forward.4} parent=11 // pred_check_branch
        %461 = sbr.rel (%p459) target = $region60
      $region59: #{forward.4} parent=11 // pred_region
        _
      $region60: #{forward.4} parent=11 // pred_fallthru
        _
      // Predicated region
      $region61: #{forward.4} parent=11 // pred_check
        %p462 = pneg %p322
      $region62: #{forward.4} parent=11 // pred_check_branch
        %464 = sbr.rel (%p462) target = $region64
      $region63: #{forward.4} parent=11 // pred_region
        _
      $region64: #{forward.4} parent=11 // pred_fallthru
        _
      // Predicated region
      $region65: #{forward.4} parent=11 // pred_check
        %p465 = pneg %p343
      $region66: #{forward.4} parent=11 // pred_check_branch
        %467 = sbr.rel (%p465) target = $region68
      $region67: #{forward.4} parent=11 // pred_region
        _
      $region68: #{forward.4} parent=11 // pred_fallthru
        _
      // Predicated region
      $region69: #{forward.4} parent=11 // pred_check
        %p468 = pneg %p364
      $region70: #{forward.4} parent=11 // pred_check_branch
        %470 = sbr.rel (%p468) target = $region72
      $region71: #{forward.4} parent=11 // pred_region
        _
      $region72: #{forward.4} parent=11 // pred_fallthru
        _
      // Predicated region
      $region73: #{forward.4} parent=11 // pred_check
        %p471 = pneg %p385
      $region74: #{forward.4} parent=11 // pred_check_branch
        %473 = sbr.rel (%p471) target = $region76
      $region75: #{forward.4} parent=11 // pred_region
        _
      $region76: #{forward.4} parent=11 // pred_fallthru
        _
    $region12: #{forward.4} parent=5 // pred_fallthru
      _
    %p474 = scmp.lt.s32.totalorder %s23, 2
    // Predicated region
    $region77: #{forward.4} parent=5 // pred_check
      %p475 = pneg %p474
    $region78: #{forward.4} parent=5 // pred_check_branch
      %477 = sbr.rel (%p475) target = $region80
    $region79: #{forward.4} parent=5 // pred_region
      // Predicated region
      $region81: #{forward.4} parent=79 // pred_check
        %p478 = pneg %p43
      $region82: #{forward.4} parent=79 // pred_check_branch
        %480 = sbr.rel (%p478) target = $region84
      $region83: #{forward.4} parent=79 // pred_region
        %p481 = scmp.lt.s32.totalorder %s23, 1
        %s482 = scalar_select %p481, %s23, 1
        %s483 = smul.addr %s482, 8
        %s484 = scalar_lea.vmem %s0, %s483
      $region84: #{forward.4} parent=79 // pred_fallthru
        _
    $region80: #{forward.4} parent=5 // pred_fallthru
      _
    %p485 = scmp.le.s32.totalorder 1, %s23
    %p486 = scmp.lt.s32.totalorder %s23, 3
    %p487 = pnand %p485, %p486
    %p488 = pneg %p487
    // Predicated region
    $region85: #{forward.4} parent=5 // pred_check
      _
    $region86: #{forward.4} parent=5 // pred_check_branch
      %490 = sbr.rel (%p487) target = $region88
    $region87: #{forward.4} parent=5 // pred_region
      %s491 = ssub.s32 %s23, 1
      %p492 = scmp.lt.s32.totalorder %s28, 1
      %s493 = scalar_select %p492, %s28, 1
      %s494 = smul.addr %s493, 8
      %s495 = scalar_lea.vmem %s0, %s494
      %p496 = pneg %p49
      %p497 = pneg %p46
      %p498 = pneg %p70
      %p499 = pneg %p67
      %p500 = pneg %p91
      %p501 = pneg %p88
      %p502 = pneg %p112
      %p503 = pneg %p109
      %p504 = pneg %p133
      %p505 = pneg %p130
      %p506 = pneg %p154
      %p507 = pneg %p151
      %p508 = pneg %p175
      %p509 = pneg %p172
      %p510 = pneg %p196
      %p511 = pneg %p193
      %p512 = pneg %p217
      %p513 = pneg %p214
      %p514 = pneg %p238
      %p515 = pneg %p235
      %p516 = pneg %p259
      %p517 = pneg %p256
      %p518 = pneg %p280
      %p519 = pneg %p277
      %p520 = pneg %p301
      %p521 = pneg %p298
      %p522 = pneg %p322
      %p523 = pneg %p319
      %p524 = pneg %p343
      %p525 = pneg %p340
      %p526 = pneg %p364
      %p527 = pneg %p361
      %p528 = pneg %p385
      %p529 = pneg %p382
      %p530 = pneg %p411
      %p531 = pneg %p408
      %p532 = scmp.lt.s32.totalorder %s28, 1
      %s533 = scalar_select %p532, %s28, 1
      %s534 = smul.addr %s533, 8
      %s535 = scalar_lea.vmem %s17, %s534
      %p536 = scmp.lt.s32.totalorder %s28, 1
      %s537 = scalar_select %p536, %s28, 1
      %s538 = smul.addr %s537, 8
      %s539 = scalar_lea.vmem %s0, %s538
      %p540 = scmp.lt.s32.totalorder %s28, 1
      %s541 = scalar_select %p540, %s28, 1
      %s542 = smul.addr %s541, 8
      %s543 = scalar_lea.vmem %s17, %s542
      %v544 = vld [vmem:[%s539] sm:$0xff]
      %v545 = vlaneseq
      %v546 = vand.u32 %v545, 127
      %vm547 = vcmp.lt.s32.totalorder %v546, 6
      %v548 = vsel %vm547, 0.0, -1e+30
      %v549 = vld [vmem:[%s1] sm:$0x1]
      %v550 = vld [vmem:[%s2] sm:$0x1]
      %vm551 = vcmask 261120
      %v552 = vsel %vm551, %v544, 0.0
      %553 = vadd.xlane.f32.xlu0 %v552
      %v554 = vpop.xlane.xlu0 %553
      %v555 = vrcp.pop 32.0
      %v556 = vmul.f32 32.0, %v555
      %v557 = vsub.f32 1.0, %v556
      %v558 = vmul.f32 %v555, %v557
      %v559 = vadd.f32 %v555, %v558
      %vm560 = vweird.f32 %v555
      %v561 = vsel %vm560, %v555, %v559
      %v562 = vmul.f32 %v554, %v561
      %v563 = vsub.f32 %v544, %v562
      %v564 = vmul.f32 %v563, %v563
      %v565 = vsel %vm551, %v564, 0.0
      %566 = vadd.xlane.f32.xlu0 %v565
      %v567 = vpop.xlane.xlu0 %566
      %v568 = vmul.f32 %v567, %v561
      %v569 = vadd.f32 %v568, 1e-05
      %v570 = vrsqrt.pop %v569
      %v571 = vmul.f32 %v570, %v569
      %v572 = vmul.f32 %v571, %v570
      %v573 = vmul.f32 0.5, %v572
      %v574 = vsub.f32 1.5, %v573
      %v575 = vmul.f32 %v570, %v574
      %vm576 = vweird.f32 %v569
      %vm577 = vweird.f32 %v570
      %vm578 = vmor %vm576, %vm577
      %v579 = vsel %vm578, %v570, %v575
      %v580 = vmul.f32 %v563, %v579
      %v582 = vperm.slane %v549, 0
      %v584 = vmul.f32 %v580, %v582
      %v586 = vperm.slane %v550, 0
      %v588 = vadd.f32 %v584, %v586
      %v589 = vld [vmem:[%s3] sm:$0xff]
      %v590 = vld [vmem:[%s3 + $0x8] sm:$0xff]
      %v591 = vld [vmem:[%s3 + $0x10] sm:$0xff]
      %v592 = vld [vmem:[%s3 + $0x18] sm:$0xff]
      %v593 = vld [vmem:[%s4] sm:$0x1]
      %v595 = vperm.slane %v593, 0
      %v598 = vsel %vm551, %v588, 0
      %600 = vmatpush.msra.mxu0 0.0
      %601 = vmatpush.msra.mxu0 0.0
      %602 = vmatpush.msra.mxu0 0.0
      %603 = vmatpush.msra.mxu0 0.0
      %604 = vmatpush.msra.mxu0 0.0
      %605 = vmatpush.msra.mxu0 0.0
      %606 = vmatpush.msra.mxu0 0.0
      %607 = vmatpush.msra.mxu0 0.0
      %608 = vmatpush.msra.mxu0 0.0
      %609 = vmatpush.msra.mxu0 0.0
      %610 = vmatpush.msra.mxu0 0.0
      %611 = vmatpush.msra.mxu0 0.0
      %612 = vmatpush.msra.mxu0 %v592
      %613 = vmatpush.msra.mxu0 %v591
      %614 = vmatpush.msra.mxu0 %v590
      %615 = vmatpush.msra.mxu0 %v589
      %616 = vmatmul.f32.gmra.mxu0 %v598
      %v617 = vpop.f32.mrf.mxu0
      %v618 = vadd.f32 %v595, %v617
      %619 = vdwg.mxu0
      %621 = vrot.lane.b32.xlu0 %v618, 96
      %v622 = vpop.permute.xlu0 %621
      %vm623 = vcmask 64512
      %v624 = vsel %vm623, %v618, 0
      %v626 = vsel %vm623, %v622, 0
      %628 = vmatpush.xpose.msra.mxu0 0.0
      %629 = vmatpush.xpose.msra.mxu0 0.0
      %630 = vmatpush.xpose.msra.mxu0 0.0
      %631 = vmatpush.xpose.msra.mxu0 0.0
      %632 = vmatpush.xpose.msra.mxu0 0.0
      %633 = vmatpush.xpose.msra.mxu0 0.0
      %634 = vmatpush.xpose.msra.mxu0 0.0
      %635 = vmatpush.xpose.msra.mxu0 0.0
      %636 = vmatpush.xpose.msra.mxu0 0.0
      %637 = vmatpush.xpose.msra.mxu0 0.0
      %638 = vmatpush.xpose.msra.mxu0 0.0
      %639 = vmatpush.xpose.msra.mxu0 0.0
      %640 = vmatpush.xpose.msra.mxu0 0.0
      %641 = vmatpush.xpose.msra.mxu0 0.0
      %642 = vmatpush.xpose.msra.mxu0 0.0
      %643 = vmatpush.xpose.msra.mxu0 %v626
      %644 = vmatmul.f32.gmra.mxu0 %v624
      %v645 = vpop.f32.mrf.mxu0
      %v646 = vadd.f32 0.0, %v645
      %647 = vdwg.mxu0
      %v648 = vmul.f32 %v646, 0.35355338
      %v649 = vadd.f32 %v648, %v548
      %v650 = vsel %vm623, %v649, -inf
      %651 = vmax.xlane.f32.xlu0 %v650
      %v652 = vpop.xlane.xlu0 %651
      %v653 = vsub.f32 %v649, %v652
      %v654 = vmul.f32 %v653, 1.442695
      %v655 = vpow.pop %v654
      %v656 = vsel %vm623, %v655, 0.0
      %657 = vadd.xlane.f32.xlu0 %v656
      %v658 = vpop.xlane.xlu0 %657
      %v659 = vrcp.pop %v658
      %v660 = vmul.f32 %v655, %v659
      %661 = vrot.lane.b32.xlu0 %v618, 64
      %v662 = vpop.permute.xlu0 %661
      %v665 = vsel %vm623, %v660, 0
      %667 = vmatpush.msra.mxu0 0.0
      %668 = vmatpush.msra.mxu0 0.0
      %669 = vmatpush.msra.mxu0 0.0
      %670 = vmatpush.msra.mxu0 0.0
      %671 = vmatpush.msra.mxu0 0.0
      %672 = vmatpush.msra.mxu0 0.0
      %673 = vmatpush.msra.mxu0 0.0
      %674 = vmatpush.msra.mxu0 0.0
      %675 = vmatpush.msra.mxu0 0.0
      %676 = vmatpush.msra.mxu0 0.0
      %677 = vmatpush.msra.mxu0 0.0
      %678 = vmatpush.msra.mxu0 0.0
      %679 = vmatpush.msra.mxu0 0.0
      %680 = vmatpush.msra.mxu0 0.0
      %681 = vmatpush.msra.mxu0 0.0
      %682 = vmatpush.msra.mxu0 %v662
      %683 = vmatmul.f32.gmra.mxu0 %v665
      %v684 = vpop.f32.mrf.mxu0
      %v685 = vadd.f32 0.0, %v684
      %686 = vdwg.mxu0
      %687 = vrot.lane.b32.xlu0 %v618, 120
      %v688 = vpop.permute.xlu0 %687
      %689 = vrot.lane.b32.xlu0 %v618, 88
      %v690 = vpop.permute.xlu0 %689
      %v691 = vsel %vm623, %v688, 0
      %v693 = vsel %vm623, %v690, 0
      %695 = vmatpush.xpose.msra.mxu0 0.0
      %696 = vmatpush.xpose.msra.mxu0 0.0
      %697 = vmatpush.xpose.msra.mxu0 0.0
      %698 = vmatpush.xpose.msra.mxu0 0.0
      %699 = vmatpush.xpose.msra.mxu0 0.0
      %700 = vmatpush.xpose.msra.mxu0 0.0
      %701 = vmatpush.xpose.msra.mxu0 0.0
      %702 = vmatpush.xpose.msra.mxu0 0.0
      %703 = vmatpush.xpose.msra.mxu0 0.0
      %704 = vmatpush.xpose.msra.mxu0 0.0
      %705 = vmatpush.xpose.msra.mxu0 0.0
      %706 = vmatpush.xpose.msra.mxu0 0.0
      %707 = vmatpush.xpose.msra.mxu0 0.0
      %708 = vmatpush.xpose.msra.mxu0 0.0
      %709 = vmatpush.xpose.msra.mxu0 0.0
      %710 = vmatpush.xpose.msra.mxu0 %v693
      %711 = vmatmul.f32.gmra.mxu0 %v691
      %v712 = vpop.f32.mrf.mxu0
      %v713 = vadd.f32 0.0, %v712
      %714 = vdwg.mxu0
      %v715 = vmul.f32 %v713, 0.35355338
      %v716 = vadd.f32 %v715, %v548
      %v717 = vsel %vm623, %v716, -inf
      %718 = vmax.xlane.f32.xlu0 %v717
      %v719 = vpop.xlane.xlu0 %718
      %v720 = vsub.f32 %v716, %v719
      %v721 = vmul.f32 %v720, 1.442695
      %v722 = vpow.pop %v721
      %v723 = vsel %vm623, %v722, 0.0
      %724 = vadd.xlane.f32.xlu0 %v723
      %v725 = vpop.xlane.xlu0 %724
      %v726 = vrcp.pop %v725
      %v727 = vmul.f32 %v722, %v726
      %728 = vrot.lane.b32.xlu0 %v618, 56
      %v729 = vpop.permute.xlu0 %728
      %v732 = vsel %vm623, %v727, 0
      %734 = vmatpush.msra.mxu0 0.0
      %735 = vmatpush.msra.mxu0 0.0
      %736 = vmatpush.msra.mxu0 0.0
      %737 = vmatpush.msra.mxu0 0.0
      %738 = vmatpush.msra.mxu0 0.0
      %739 = vmatpush.msra.mxu0 0.0
      %740 = vmatpush.msra.mxu0 0.0
      %741 = vmatpush.msra.mxu0 0.0
      %742 = vmatpush.msra.mxu0 0.0
      %743 = vmatpush.msra.mxu0 0.0
      %744 = vmatpush.msra.mxu0 0.0
      %745 = vmatpush.msra.mxu0 0.0
      %746 = vmatpush.msra.mxu0 0.0
      %747 = vmatpush.msra.mxu0 0.0
      %748 = vmatpush.msra.mxu0 0.0
      %749 = vmatpush.msra.mxu0 %v729
      %750 = vmatmul.f32.gmra.mxu0 %v732
      %v751 = vpop.f32.mrf.mxu0
      %v752 = vadd.f32 0.0, %v751
      %753 = vdwg.mxu0
      %754 = vrot.lane.b32.xlu0 %v618, 112
      %v755 = vpop.permute.xlu0 %754
      %756 = vrot.lane.b32.xlu0 %v618, 80
      %v757 = vpop.permute.xlu0 %756
      %v758 = vsel %vm623, %v755, 0
      %v760 = vsel %vm623, %v757, 0
      %762 = vmatpush.xpose.msra.mxu0 0.0
      %763 = vmatpush.xpose.msra.mxu0 0.0
      %764 = vmatpush.xpose.msra.mxu0 0.0
      %765 = vmatpush.xpose.msra.mxu0 0.0
      %766 = vmatpush.xpose.msra.mxu0 0.0
      %767 = vmatpush.xpose.msra.mxu0 0.0
      %768 = vmatpush.xpose.msra.mxu0 0.0
      %769 = vmatpush.xpose.msra.mxu0 0.0
      %770 = vmatpush.xpose.msra.mxu0 0.0
      %771 = vmatpush.xpose.msra.mxu0 0.0
      %772 = vmatpush.xpose.msra.mxu0 0.0
      %773 = vmatpush.xpose.msra.mxu0 0.0
      %774 = vmatpush.xpose.msra.mxu0 0.0
      %775 = vmatpush.xpose.msra.mxu0 0.0
      %776 = vmatpush.xpose.msra.mxu0 0.0
      %777 = vmatpush.xpose.msra.mxu0 %v760
      %778 = vmatmul.f32.gmra.mxu0 %v758
      %v779 = vpop.f32.mrf.mxu0
      %v780 = vadd.f32 0.0, %v779
      %781 = vdwg.mxu0
      %v782 = vmul.f32 %v780, 0.35355338
      %v783 = vadd.f32 %v782, %v548
      %v784 = vsel %vm623, %v783, -inf
      %785 = vmax.xlane.f32.xlu0 %v784
      %v786 = vpop.xlane.xlu0 %785
      %v787 = vsub.f32 %v783, %v786
      %v788 = vmul.f32 %v787, 1.442695
      %v789 = vpow.pop %v788
      %v790 = vsel %vm623, %v789, 0.0
      %791 = vadd.xlane.f32.xlu0 %v790
      %v792 = vpop.xlane.xlu0 %791
      %v793 = vrcp.pop %v792
      %v794 = vmul.f32 %v789, %v793
      %795 = vrot.lane.b32.xlu0 %v618, 48
      %v796 = vpop.permute.xlu0 %795
      %v799 = vsel %vm623, %v794, 0
      %801 = vmatpush.msra.mxu0 0.0
      %802 = vmatpush.msra.mxu0 0.0
      %803 = vmatpush.msra.mxu0 0.0
      %804 = vmatpush.msra.mxu0 0.0
      %805 = vmatpush.msra.mxu0 0.0
      %806 = vmatpush.msra.mxu0 0.0
      %807 = vmatpush.msra.mxu0 0.0
      %808 = vmatpush.msra.mxu0 0.0
      %809 = vmatpush.msra.mxu0 0.0
      %810 = vmatpush.msra.mxu0 0.0
      %811 = vmatpush.msra.mxu0 0.0
      %812 = vmatpush.msra.mxu0 0.0
      %813 = vmatpush.msra.mxu0 0.0
      %814 = vmatpush.msra.mxu0 0.0
      %815 = vmatpush.msra.mxu0 0.0
      %816 = vmatpush.msra.mxu0 %v796
      %817 = vmatmul.f32.gmra.mxu0 %v799
      %v818 = vpop.f32.mrf.mxu0
      %v819 = vadd.f32 0.0, %v818
      %820 = vdwg.mxu0
      %821 = vrot.lane.b32.xlu0 %v618, 104
      %v822 = vpop.permute.xlu0 %821
      %823 = vrot.lane.b32.xlu0 %v618, 72
      %v824 = vpop.permute.xlu0 %823
      %v825 = vsel %vm623, %v822, 0
      %v827 = vsel %vm623, %v824, 0
      %829 = vmatpush.xpose.msra.mxu0 0.0
      %830 = vmatpush.xpose.msra.mxu0 0.0
      %831 = vmatpush.xpose.msra.mxu0 0.0
      %832 = vmatpush.xpose.msra.mxu0 0.0
      %833 = vmatpush.xpose.msra.mxu0 0.0
      %834 = vmatpush.xpose.msra.mxu0 0.0
      %835 = vmatpush.xpose.msra.mxu0 0.0
      %836 = vmatpush.xpose.msra.mxu0 0.0
      %837 = vmatpush.xpose.msra.mxu0 0.0
      %838 = vmatpush.xpose.msra.mxu0 0.0
      %839 = vmatpush.xpose.msra.mxu0 0.0
      %840 = vmatpush.xpose.msra.mxu0 0.0
      %841 = vmatpush.xpose.msra.mxu0 0.0
      %842 = vmatpush.xpose.msra.mxu0 0.0
      %843 = vmatpush.xpose.msra.mxu0 0.0
      %844 = vmatpush.xpose.msra.mxu0 %v827
      %845 = vmatmul.f32.gmra.mxu0 %v825
      %v846 = vpop.f32.mrf.mxu0
      %v847 = vadd.f32 0.0, %v846
      %848 = vdwg.mxu0
      %v849 = vmul.f32 %v847, 0.35355338
      %v850 = vadd.f32 %v849, %v548
      %v851 = vsel %vm623, %v850, -inf
      %852 = vmax.xlane.f32.xlu0 %v851
      %v853 = vpop.xlane.xlu0 %852
      %v854 = vsub.f32 %v850, %v853
      %v855 = vmul.f32 %v854, 1.442695
      %v856 = vpow.pop %v855
      %v857 = vsel %vm623, %v856, 0.0
      %858 = vadd.xlane.f32.xlu0 %v857
      %v859 = vpop.xlane.xlu0 %858
      %v860 = vrcp.pop %v859
      %v861 = vmul.f32 %v856, %v860
      %862 = vrot.lane.b32.xlu0 %v618, 40
      %v863 = vpop.permute.xlu0 %862
      %v866 = vsel %vm623, %v861, 0
      %868 = vmatpush.msra.mxu0 0.0
      %869 = vmatpush.msra.mxu0 0.0
      %870 = vmatpush.msra.mxu0 0.0
      %871 = vmatpush.msra.mxu0 0.0
      %872 = vmatpush.msra.mxu0 0.0
      %873 = vmatpush.msra.mxu0 0.0
      %874 = vmatpush.msra.mxu0 0.0
      %875 = vmatpush.msra.mxu0 0.0
      %876 = vmatpush.msra.mxu0 0.0
      %877 = vmatpush.msra.mxu0 0.0
      %878 = vmatpush.msra.mxu0 0.0
      %879 = vmatpush.msra.mxu0 0.0
      %880 = vmatpush.msra.mxu0 0.0
      %881 = vmatpush.msra.mxu0 0.0
      %882 = vmatpush.msra.mxu0 0.0
      %883 = vmatpush.msra.mxu0 %v863
      %884 = vmatmul.f32.gmra.mxu0 %v866
      %v885 = vpop.f32.mrf.mxu0
      %v886 = vadd.f32 0.0, %v885
      %887 = vdwg.mxu0
      %889 = vrot.lane.b32.xlu0 %v752, 8
      %v890 = vpop.permute.xlu0 %889
      %893 = vrot.lane.b32.xlu0 %v819, 16
      %v894 = vpop.permute.xlu0 %893
      %897 = vrot.lane.b32.xlu0 %v886, 24
      %v898 = vpop.permute.xlu0 %897
      %v900 = vsel %vm623, %v685, %v890
      %vm901 = vcmask 130048
      %v902 = vsel %vm901, %v900, %v894
      %vm903 = vcmask 195584
      %v904 = vsel %vm903, %v902, %v898
      %v905 = vld [vmem:[%s5] sm:$0xff]
      %v906 = vld [vmem:[%s5 + $0x8] sm:$0xff]
      %v907 = vld [vmem:[%s5 + $0x10] sm:$0xff]
      %v908 = vld [vmem:[%s5 + $0x18] sm:$0xff]
      %v909 = vld [vmem:[%s6] sm:$0x1]
      %v911 = vperm.slane %v909, 0
      %v914 = vsel %vm551, %v904, 0
      %916 = vmatpush.msra.mxu0 0.0
      %917 = vmatpush.msra.mxu0 0.0
      %918 = vmatpush.msra.mxu0 0.0
      %919 = vmatpush.msra.mxu0 0.0
      %920 = vmatpush.msra.mxu0 0.0
      %921 = vmatpush.msra.mxu0 0.0
      %922 = vmatpush.msra.mxu0 0.0
      %923 = vmatpush.msra.mxu0 0.0
      %924 = vmatpush.msra.mxu0 0.0
      %925 = vmatpush.msra.mxu0 0.0
      %926 = vmatpush.msra.mxu0 0.0
      %927 = vmatpush.msra.mxu0 0.0
      %928 = vmatpush.msra.mxu0 %v908
      %929 = vmatpush.msra.mxu0 %v907
      %930 = vmatpush.msra.mxu0 %v906
      %931 = vmatpush.msra.mxu0 %v905
      %932 = vmatmul.f32.gmra.mxu0 %v914
      %v933 = vpop.f32.mrf.mxu0
      %v934 = vadd.f32 %v911, %v933
      %935 = vdwg.mxu0
      %v936 = vadd.f32 %v544, %v934
      %v937 = vld [vmem:[%s7] sm:$0x1]
      %v938 = vld [vmem:[%s8] sm:$0x1]
      %v939 = vsel %vm551, %v936, 0.0
      %940 = vadd.xlane.f32.xlu0 %v939
      %v941 = vpop.xlane.xlu0 %940
      %v942 = vmul.f32 %v941, %v561
      %v943 = vsub.f32 %v936, %v942
      %v944 = vmul.f32 %v943, %v943
      %v945 = vsel %vm551, %v944, 0.0
      %946 = vadd.xlane.f32.xlu0 %v945
      %v947 = vpop.xlane.xlu0 %946
      %v948 = vmul.f32 %v947, %v561
      %v949 = vadd.f32 %v948, 1e-05
      %v950 = vrsqrt.pop %v949
      %v951 = vmul.f32 %v950, %v949
      %v952 = vmul.f32 %v951, %v950
      %v953 = vmul.f32 0.5, %v952
      %v954 = vsub.f32 1.5, %v953
      %v955 = vmul.f32 %v950, %v954
      %vm956 = vweird.f32 %v949
      %vm957 = vweird.f32 %v950
      %vm958 = vmor %vm956, %vm957
      %v959 = vsel %vm958, %v950, %v955
      %v960 = vmul.f32 %v943, %v959
      %v962 = vperm.slane %v937, 0
      %v964 = vmul.f32 %v960, %v962
      %v966 = vperm.slane %v938, 0
      %v968 = vadd.f32 %v964, %v966
      %v969 = vld [vmem:[%s9] sm:$0xff]
      %v970 = vld [vmem:[%s9 + $0x8] sm:$0xff]
      %v971 = vld [vmem:[%s9 + $0x10] sm:$0xff]
      %v972 = vld [vmem:[%s9 + $0x18] sm:$0xff]
      %v973 = vld [vmem:[%s10] sm:$0x1]
      %v975 = vperm.slane %v973, 0
      %v978 = vsel %vm551, %v968, 0
      %980 = vmatpush.msra.mxu0 0.0
      %981 = vmatpush.msra.mxu0 0.0
      %982 = vmatpush.msra.mxu0 0.0
      %983 = vmatpush.msra.mxu0 0.0
      %984 = vmatpush.msra.mxu0 0.0
      %985 = vmatpush.msra.mxu0 0.0
      %986 = vmatpush.msra.mxu0 0.0
      %987 = vmatpush.msra.mxu0 0.0
      %988 = vmatpush.msra.mxu0 0.0
      %989 = vmatpush.msra.mxu0 0.0
      %990 = vmatpush.msra.mxu0 0.0
      %991 = vmatpush.msra.mxu0 0.0
      %992 = vmatpush.msra.mxu0 %v972
      %993 = vmatpush.msra.mxu0 %v971
      %994 = vmatpush.msra.mxu0 %v970
      %995 = vmatpush.msra.mxu0 %v969
      %996 = vmatmul.f32.gmra.mxu0 %v978
      %v997 = vpop.f32.mrf.mxu0
      %v998 = vadd.f32 %v975, %v997
      %999 = vdwg.mxu0
      %v1000 = vmul.f32 %v998, 0.5
      %v1001 = vmul.f32 %v998, 0.70710677
      %v1002 = vmul.f32 %v1001, %v1001
      %v1003 = vmin.f32 16.0, %v1002
      %v1004 = vmul.f32 %v1003, 2.1237322e-06
      %v1005 = vadd.f32 %v1004, 0.00028619796
      %v1006 = vmul.f32 %v1003, %v1005
      %v1007 = vadd.f32 %v1006, 0.0036580483
      %v1008 = vmul.f32 %v1003, %v1007
      %v1009 = vadd.f32 %v1008, 0.05243302
      %v1010 = vmul.f32 %v1003, %v1009
      %v1011 = vadd.f32 %v1010, 0.18741608
      %v1012 = vmul.f32 %v1003, %v1011
      %v1013 = vadd.f32 %v1012, 1.1283791
      %v1014 = vmul.f32 %v1001, %v1013
      %v1015 = vmul.f32 %v1003, 3.8918573e-05
      %v1016 = vadd.f32 %v1015, 0.001143296
      %v1017 = vmul.f32 %v1003, %v1016
      %v1018 = vadd.f32 %v1017, 0.014752088
      %v1019 = vmul.f32 %v1003, %v1018
      %v1020 = vadd.f32 %v1019, 0.112945676
      %v1021 = vmul.f32 %v1003, %v1020
      %v1022 = vadd.f32 %v1021, 0.4994258
      %v1023 = vmul.f32 %v1003, %v1022
      %v1024 = vadd.f32 %v1023, 1.0
      %v1025 = vrcp.pop %v1024
      %v1026 = vmul.f32 %v1024, %v1025
      %v1027 = vsub.f32 1.0, %v1026
      %v1028 = vmul.f32 %v1025, %v1027
      %v1029 = vadd.f32 %v1025, %v1028
      %vm1030 = vweird.f32 %v1024
      %vm1031 = vweird.f32 %v1025
      %vm1032 = vmor %vm1030, %vm1031
      %v1033 = vsel %vm1032, %v1025, %v1029
      %v1034 = vand.u32 2147483647, %v1024
      %vm1035 = vcmp.eq.f32.partialorder %v1034, 8.507059e+37
      %v1036 = vand.u32 %v1024, 2147483648
      %v1037 = vor.u32 1.1754944e-38, %v1036
      %v1038 = vsel %vm1035, %v1037, %v1033
      %v1039 = vmul.f32 %v1014, %v1038
      %v1040 = vmin.f32 %v1039, 1.0
      %v1041 = vmax.f32 %v1040, -1.0
      %v1042 = vadd.f32 %v1041, 1.0
      %v1043 = vmul.f32 %v1000, %v1042
      %v1044 = vld [vmem:[%s11] sm:$0xff]
      %v1045 = vld [vmem:[%s11 + $0x8] sm:$0xff]
      %v1046 = vld [vmem:[%s11 + $0x10] sm:$0xff]
      %v1047 = vld [vmem:[%s11 + $0x18] sm:$0xff]
      %v1048 = vld [vmem:[%s11 + $0x20] sm:$0xff]
      %v1049 = vld [vmem:[%s11 + $0x28] sm:$0xff]
      %v1050 = vld [vmem:[%s11 + $0x30] sm:$0xff]
      %v1051 = vld [vmem:[%s11 + $0x38] sm:$0xff]
      %v1052 = vld [vmem:[%s11 + $0x40] sm:$0xff]
      %v1053 = vld [vmem:[%s11 + $0x48] sm:$0xff]
      %v1054 = vld [vmem:[%s11 + $0x50] sm:$0xff]
      %v1055 = vld [vmem:[%s11 + $0x58] sm:$0xff]
      %v1056 = vld [vmem:[%s11 + $0x60] sm:$0xff]
      %v1057 = vld [vmem:[%s11 + $0x68] sm:$0xff]
      %v1058 = vld [vmem:[%s11 + $0x70] sm:$0xff]
      %v1059 = vld [vmem:[%s11 + $0x78] sm:$0xff]
      %v1060 = vld [vmem:[%s12] sm:$0x1]
      %v1062 = vperm.slane %v1060, 0
      %1064 = vmatpush.msra.mxu0 %v1059
      %1065 = vmatpush.msra.mxu0 %v1058
      %1066 = vmatpush.msra.mxu0 %v1057
      %1067 = vmatpush.msra.mxu0 %v1056
      %1068 = vmatpush.msra.mxu0 %v1055
      %1069 = vmatpush.msra.mxu0 %v1054
      %1070 = vmatpush.msra.mxu0 %v1053
      %1071 = vmatpush.msra.mxu0 %v1052
      %1072 = vmatpush.msra.mxu0 %v1051
      %1073 = vmatpush.msra.mxu0 %v1050
      %1074 = vmatpush.msra.mxu0 %v1049
      %1075 = vmatpush.msra.mxu0 %v1048
      %1076 = vmatpush.msra.mxu0 %v1047
      %1077 = vmatpush.msra.mxu0 %v1046
      %1078 = vmatpush.msra.mxu0 %v1045
      %1079 = vmatpush.msra.mxu0 %v1044
      %1080 = vmatmul.f32.gmra.mxu0 %v1043
      %v1081 = vpop.f32.mrf.mxu0
      %v1082 = vadd.f32 %v1062, %v1081
      %1083 = vdwg.mxu0
      %v1084 = vadd.f32 %v936, %v1082
      %s1085 = scalar_lea.vmem %s1, 1
      %v1086 = vld [vmem:[%s1085] sm:$0x1]
      %s1087 = scalar_lea.vmem %s2, 1
      %v1088 = vld [vmem:[%s1087] sm:$0x1]
      %v1089 = vsel %vm551, %v1084, 0.0
      %1090 = vadd.xlane.f32.xlu0 %v1089
      %v1091 = vpop.xlane.xlu0 %1090
      %v1092 = vmul.f32 %v1091, %v561
      %v1093 = vsub.f32 %v1084, %v1092
      %v1094 = vmul.f32 %v1093, %v1093
      %v1095 = vsel %vm551, %v1094, 0.0
      %1096 = vadd.xlane.f32.xlu0 %v1095
      %v1097 = vpop.xlane.xlu0 %1096
      %v1098 = vmul.f32 %v1097, %v561
      %v1099 = vadd.f32 %v1098, 1e-05
      %v1100 = vrsqrt.pop %v1099
      %v1101 = vmul.f32 %v1100, %v1099
      %v1102 = vmul.f32 %v1101, %v1100
      %v1103 = vmul.f32 0.5, %v1102
      %v1104 = vsub.f32 1.5, %v1103
      %v1105 = vmul.f32 %v1100, %v1104
      %vm1106 = vweird.f32 %v1099
      %vm1107 = vweird.f32 %v1100
      %vm1108 = vmor %vm1106, %vm1107
      %v1109 = vsel %vm1108, %v1100, %v1105
      %v1110 = vmul.f32 %v1093, %v1109
      %v1112 = vperm.slane %v1086, 0
      %v1114 = vmul.f32 %v1110, %v1112
      %v1116 = vperm.slane %v1088, 0
      %v1118 = vadd.f32 %v1114, %v1116
      %s1119 = scalar_lea.vmem %s3, 32
      %v1120 = vld [vmem:[%s1119] sm:$0xff]
      %v1121 = vld [vmem:[%s1119 + $0x8] sm:$0xff]
      %v1122 = vld [vmem:[%s1119 + $0x10] sm:$0xff]
      %v1123 = vld [vmem:[%s1119 + $0x18] sm:$0xff]
      %s1124 = scalar_lea.vmem %s4, 1
      %v1125 = vld [vmem:[%s1124] sm:$0x1]
      %v1127 = vperm.slane %v1125, 0
      %v1130 = vsel %vm551, %v1118, 0
      %1132 = vmatpush.msra.mxu0 0.0
      %1133 = vmatpush.msra.mxu0 0.0
      %1134 = vmatpush.msra.mxu0 0.0
      %1135 = vmatpush.msra.mxu0 0.0
      %1136 = vmatpush.msra.mxu0 0.0
      %1137 = vmatpush.msra.mxu0 0.0
      %1138 = vmatpush.msra.mxu0 0.0
      %1139 = vmatpush.msra.mxu0 0.0
      %1140 = vmatpush.msra.mxu0 0.0
      %1141 = vmatpush.msra.mxu0 0.0
      %1142 = vmatpush.msra.mxu0 0.0
      %1143 = vmatpush.msra.mxu0 0.0
      %1144 = vmatpush.msra.mxu0 %v1123
      %1145 = vmatpush.msra.mxu0 %v1122
      %1146 = vmatpush.msra.mxu0 %v1121
      %1147 = vmatpush.msra.mxu0 %v1120
      %1148 = vmatmul.f32.gmra.mxu0 %v1130
      %v1149 = vpop.f32.mrf.mxu0
      %v1150 = vadd.f32 %v1127, %v1149
      %1151 = vdwg.mxu0
      %1153 = vrot.lane.b32.xlu0 %v1150, 96
      %v1154 = vpop.permute.xlu0 %1153
      %v1155 = vsel %vm623, %v1150, 0
      %v1157 = vsel %vm623, %v1154, 0
      %1159 = vmatpush.xpose.msra.mxu0 0.0
      %1160 = vmatpush.xpose.msra.mxu0 0.0
      %1161 = vmatpush.xpose.msra.mxu0 0.0
      %1162 = vmatpush.xpose.msra.mxu0 0.0
      %1163 = vmatpush.xpose.msra.mxu0 0.0
      %1164 = vmatpush.xpose.msra.mxu0 0.0
      %1165 = vmatpush.xpose.msra.mxu0 0.0
      %1166 = vmatpush.xpose.msra.mxu0 0.0
      %1167 = vmatpush.xpose.msra.mxu0 0.0
      %1168 = vmatpush.xpose.msra.mxu0 0.0
      %1169 = vmatpush.xpose.msra.mxu0 0.0
      %1170 = vmatpush.xpose.msra.mxu0 0.0
      %1171 = vmatpush.xpose.msra.mxu0 0.0
      %1172 = vmatpush.xpose.msra.mxu0 0.0
      %1173 = vmatpush.xpose.msra.mxu0 0.0
      %1174 = vmatpush.xpose.msra.mxu0 %v1157
      %1175 = vmatmul.f32.gmra.mxu0 %v1155
      %v1176 = vpop.f32.mrf.mxu0
      %v1177 = vadd.f32 0.0, %v1176
      %1178 = vdwg.mxu0
      %v1179 = vmul.f32 %v1177, 0.35355338
      %v1180 = vadd.f32 %v1179, %v548
      %v1181 = vsel %vm623, %v1180, -inf
      %1182 = vmax.xlane.f32.xlu0 %v1181
      %v1183 = vpop.xlane.xlu0 %1182
      %v1184 = vsub.f32 %v1180, %v1183
      %v1185 = vmul.f32 %v1184, 1.442695
      %v1186 = vpow.pop %v1185
      %v1187 = vsel %vm623, %v1186, 0.0
      %1188 = vadd.xlane.f32.xlu0 %v1187
      %v1189 = vpop.xlane.xlu0 %1188
      %v1190 = vrcp.pop %v1189
      %v1191 = vmul.f32 %v1186, %v1190
      %1192 = vrot.lane.b32.xlu0 %v1150, 64
      %v1193 = vpop.permute.xlu0 %1192
      %v1196 = vsel %vm623, %v1191, 0
      %1198 = vmatpush.msra.mxu0 0.0
      %1199 = vmatpush.msra.mxu0 0.0
      %1200 = vmatpush.msra.mxu0 0.0
      %1201 = vmatpush.msra.mxu0 0.0
      %1202 = vmatpush.msra.mxu0 0.0
      %1203 = vmatpush.msra.mxu0 0.0
      %1204 = vmatpush.msra.mxu0 0.0
      %1205 = vmatpush.msra.mxu0 0.0
      %1206 = vmatpush.msra.mxu0 0.0
      %1207 = vmatpush.msra.mxu0 0.0
      %1208 = vmatpush.msra.mxu0 0.0
      %1209 = vmatpush.msra.mxu0 0.0
      %1210 = vmatpush.msra.mxu0 0.0
      %1211 = vmatpush.msra.mxu0 0.0
      %1212 = vmatpush.msra.mxu0 0.0
      %1213 = vmatpush.msra.mxu0 %v1193
      %1214 = vmatmul.f32.gmra.mxu0 %v1196
      %v1215 = vpop.f32.mrf.mxu0
      %v1216 = vadd.f32 0.0, %v1215
      %1217 = vdwg.mxu0
      %1218 = vrot.lane.b32.xlu0 %v1150, 120
      %v1219 = vpop.permute.xlu0 %1218
      %1220 = vrot.lane.b32.xlu0 %v1150, 88
      %v1221 = vpop.permute.xlu0 %1220
      %v1222 = vsel %vm623, %v1219, 0
      %v1224 = vsel %vm623, %v1221, 0
      %1226 = vmatpush.xpose.msra.mxu0 0.0
      %1227 = vmatpush.xpose.msra.mxu0 0.0
      %1228 = vmatpush.xpose.msra.mxu0 0.0
      %1229 = vmatpush.xpose.msra.mxu0 0.0
      %1230 = vmatpush.xpose.msra.mxu0 0.0
      %1231 = vmatpush.xpose.msra.mxu0 0.0
      %1232 = vmatpush.xpose.msra.mxu0 0.0
      %1233 = vmatpush.xpose.msra.mxu0 0.0
      %1234 = vmatpush.xpose.msra.mxu0 0.0
      %1235 = vmatpush.xpose.msra.mxu0 0.0
      %1236 = vmatpush.xpose.msra.mxu0 0.0
      %1237 = vmatpush.xpose.msra.mxu0 0.0
      %1238 = vmatpush.xpose.msra.mxu0 0.0
      %1239 = vmatpush.xpose.msra.mxu0 0.0
      %1240 = vmatpush.xpose.msra.mxu0 0.0
      %1241 = vmatpush.xpose.msra.mxu0 %v1224
      %1242 = vmatmul.f32.gmra.mxu0 %v1222
      %v1243 = vpop.f32.mrf.mxu0
      %v1244 = vadd.f32 0.0, %v1243
      %1245 = vdwg.mxu0
      %v1246 = vmul.f32 %v1244, 0.35355338
      %v1247 = vadd.f32 %v1246, %v548
      %v1248 = vsel %vm623, %v1247, -inf
      %1249 = vmax.xlane.f32.xlu0 %v1248
      %v1250 = vpop.xlane.xlu0 %1249
      %v1251 = vsub.f32 %v1247, %v1250
      %v1252 = vmul.f32 %v1251, 1.442695
      %v1253 = vpow.pop %v1252
      %v1254 = vsel %vm623, %v1253, 0.0
      %1255 = vadd.xlane.f32.xlu0 %v1254
      %v1256 = vpop.xlane.xlu0 %1255
      %v1257 = vrcp.pop %v1256
      %v1258 = vmul.f32 %v1253, %v1257
      %1259 = vrot.lane.b32.xlu0 %v1150, 56
      %v1260 = vpop.permute.xlu0 %1259
      %v1263 = vsel %vm623, %v1258, 0
      %1265 = vmatpush.msra.mxu0 0.0
      %1266 = vmatpush.msra.mxu0 0.0
      %1267 = vmatpush.msra.mxu0 0.0
      %1268 = vmatpush.msra.mxu0 0.0
      %1269 = vmatpush.msra.mxu0 0.0
      %1270 = vmatpush.msra.mxu0 0.0
      %1271 = vmatpush.msra.mxu0 0.0
      %1272 = vmatpush.msra.mxu0 0.0
      %1273 = vmatpush.msra.mxu0 0.0
      %1274 = vmatpush.msra.mxu0 0.0
      %1275 = vmatpush.msra.mxu0 0.0
      %1276 = vmatpush.msra.mxu0 0.0
      %1277 = vmatpush.msra.mxu0 0.0
      %1278 = vmatpush.msra.mxu0 0.0
      %1279 = vmatpush.msra.mxu0 0.0
      %1280 = vmatpush.msra.mxu0 %v1260
      %1281 = vmatmul.f32.gmra.mxu0 %v1263
      %v1282 = vpop.f32.mrf.mxu0
      %v1283 = vadd.f32 0.0, %v1282
      %1284 = vdwg.mxu0
      %1285 = vrot.lane.b32.xlu0 %v1150, 112
      %v1286 = vpop.permute.xlu0 %1285
      %1287 = vrot.lane.b32.xlu0 %v1150, 80
      %v1288 = vpop.permute.xlu0 %1287
      %v1289 = vsel %vm623, %v1286, 0
      %v1291 = vsel %vm623, %v1288, 0
      %1293 = vmatpush.xpose.msra.mxu0 0.0
      %1294 = vmatpush.xpose.msra.mxu0 0.0
      %1295 = vmatpush.xpose.msra.mxu0 0.0
      %1296 = vmatpush.xpose.msra.mxu0 0.0
      %1297 = vmatpush.xpose.msra.mxu0 0.0
      %1298 = vmatpush.xpose.msra.mxu0 0.0
      %1299 = vmatpush.xpose.msra.mxu0 0.0
      %1300 = vmatpush.xpose.msra.mxu0 0.0
      %1301 = vmatpush.xpose.msra.mxu0 0.0
      %1302 = vmatpush.xpose.msra.mxu0 0.0
      %1303 = vmatpush.xpose.msra.mxu0 0.0
      %1304 = vmatpush.xpose.msra.mxu0 0.0
      %1305 = vmatpush.xpose.msra.mxu0 0.0
      %1306 = vmatpush.xpose.msra.mxu0 0.0
      %1307 = vmatpush.xpose.msra.mxu0 0.0
      %1308 = vmatpush.xpose.msra.mxu0 %v1291
      %1309 = vmatmul.f32.gmra.mxu0 %v1289
      %v1310 = vpop.f32.mrf.mxu0
      %v1311 = vadd.f32 0.0, %v1310
      %1312 = vdwg.mxu0
      %v1313 = vmul.f32 %v1311, 0.35355338
      %v1314 = vadd.f32 %v1313, %v548
      %v1315 = vsel %vm623, %v1314, -inf
      %1316 = vmax.xlane.f32.xlu0 %v1315
      %v1317 = vpop.xlane.xlu0 %1316
      %v1318 = vsub.f32 %v1314, %v1317
      %v1319 = vmul.f32 %v1318, 1.442695
      %v1320 = vpow.pop %v1319
      %v1321 = vsel %vm623, %v1320, 0.0
      %1322 = vadd.xlane.f32.xlu0 %v1321
      %v1323 = vpop.xlane.xlu0 %1322
      %v1324 = vrcp.pop %v1323
      %v1325 = vmul.f32 %v1320, %v1324
      %1326 = vrot.lane.b32.xlu0 %v1150, 48
      %v1327 = vpop.permute.xlu0 %1326
      %v1330 = vsel %vm623, %v1325, 0
      %1332 = vmatpush.msra.mxu0 0.0
      %1333 = vmatpush.msra.mxu0 0.0
      %1334 = vmatpush.msra.mxu0 0.0
      %1335 = vmatpush.msra.mxu0 0.0
      %1336 = vmatpush.msra.mxu0 0.0
      %1337 = vmatpush.msra.mxu0 0.0
      %1338 = vmatpush.msra.mxu0 0.0
      %1339 = vmatpush.msra.mxu0 0.0
      %1340 = vmatpush.msra.mxu0 0.0
      %1341 = vmatpush.msra.mxu0 0.0
      %1342 = vmatpush.msra.mxu0 0.0
      %1343 = vmatpush.msra.mxu0 0.0
      %1344 = vmatpush.msra.mxu0 0.0
      %1345 = vmatpush.msra.mxu0 0.0
      %1346 = vmatpush.msra.mxu0 0.0
      %1347 = vmatpush.msra.mxu0 %v1327
      %1348 = vmatmul.f32.gmra.mxu0 %v1330
      %v1349 = vpop.f32.mrf.mxu0
      %v1350 = vadd.f32 0.0, %v1349
      %1351 = vdwg.mxu0
      %1352 = vrot.lane.b32.xlu0 %v1150, 104
      %v1353 = vpop.permute.xlu0 %1352
      %1354 = vrot.lane.b32.xlu0 %v1150, 72
      %v1355 = vpop.permute.xlu0 %1354
      %v1356 = vsel %vm623, %v1353, 0
      %v1358 = vsel %vm623, %v1355, 0
      %1360 = vmatpush.xpose.msra.mxu0 0.0
      %1361 = vmatpush.xpose.msra.mxu0 0.0
      %1362 = vmatpush.xpose.msra.mxu0 0.0
      %1363 = vmatpush.xpose.msra.mxu0 0.0
      %1364 = vmatpush.xpose.msra.mxu0 0.0
      %1365 = vmatpush.xpose.msra.mxu0 0.0
      %1366 = vmatpush.xpose.msra.mxu0 0.0
      %1367 = vmatpush.xpose.msra.mxu0 0.0
      %1368 = vmatpush.xpose.msra.mxu0 0.0
      %1369 = vmatpush.xpose.msra.mxu0 0.0
      %1370 = vmatpush.xpose.msra.mxu0 0.0
      %1371 = vmatpush.xpose.msra.mxu0 0.0
      %1372 = vmatpush.xpose.msra.mxu0 0.0
      %1373 = vmatpush.xpose.msra.mxu0 0.0
      %1374 = vmatpush.xpose.msra.mxu0 0.0
      %1375 = vmatpush.xpose.msra.mxu0 %v1358
      %1376 = vmatmul.f32.gmra.mxu0 %v1356
      %v1377 = vpop.f32.mrf.mxu0
      %v1378 = vadd.f32 0.0, %v1377
      %1379 = vdwg.mxu0
      %v1380 = vmul.f32 %v1378, 0.35355338
      %v1381 = vadd.f32 %v1380, %v548
      %v1382 = vsel %vm623, %v1381, -inf
      %1383 = vmax.xlane.f32.xlu0 %v1382
      %v1384 = vpop.xlane.xlu0 %1383
      %v1385 = vsub.f32 %v1381, %v1384
      %v1386 = vmul.f32 %v1385, 1.442695
      %v1387 = vpow.pop %v1386
      %v1388 = vsel %vm623, %v1387, 0.0
      %1389 = vadd.xlane.f32.xlu0 %v1388
      %v1390 = vpop.xlane.xlu0 %1389
      %v1391 = vrcp.pop %v1390
      %v1392 = vmul.f32 %v1387, %v1391
      %1393 = vrot.lane.b32.xlu0 %v1150, 40
      %v1394 = vpop.permute.xlu0 %1393
      %v1397 = vsel %vm623, %v1392, 0
      %1399 = vmatpush.msra.mxu0 0.0
      %1400 = vmatpush.msra.mxu0 0.0
      %1401 = vmatpush.msra.mxu0 0.0
      %1402 = vmatpush.msra.mxu0 0.0
      %1403 = vmatpush.msra.mxu0 0.0
      %1404 = vmatpush.msra.mxu0 0.0
      %1405 = vmatpush.msra.mxu0 0.0
      %1406 = vmatpush.msra.mxu0 0.0
      %1407 = vmatpush.msra.mxu0 0.0
      %1408 = vmatpush.msra.mxu0 0.0
      %1409 = vmatpush.msra.mxu0 0.0
      %1410 = vmatpush.msra.mxu0 0.0
      %1411 = vmatpush.msra.mxu0 0.0
      %1412 = vmatpush.msra.mxu0 0.0
      %1413 = vmatpush.msra.mxu0 0.0
      %1414 = vmatpush.msra.mxu0 %v1394
      %1415 = vmatmul.f32.gmra.mxu0 %v1397
      %v1416 = vpop.f32.mrf.mxu0
      %v1417 = vadd.f32 0.0, %v1416
      %1418 = vdwg.mxu0
      %1420 = vrot.lane.b32.xlu0 %v1283, 8
      %v1421 = vpop.permute.xlu0 %1420
      %1424 = vrot.lane.b32.xlu0 %v1350, 16
      %v1425 = vpop.permute.xlu0 %1424
      %1428 = vrot.lane.b32.xlu0 %v1417, 24
      %v1429 = vpop.permute.xlu0 %1428
      %v1431 = vsel %vm623, %v1216, %v1421
      %v1432 = vsel %vm901, %v1431, %v1425
      %v1433 = vsel %vm903, %v1432, %v1429
      %s1434 = scalar_lea.vmem %s5, 32
      %v1435 = vld [vmem:[%s1434] sm:$0xff]
      %v1436 = vld [vmem:[%s1434 + $0x8] sm:$0xff]
      %v1437 = vld [vmem:[%s1434 + $0x10] sm:$0xff]
      %v1438 = vld [vmem:[%s1434 + $0x18] sm:$0xff]
      %s1439 = scalar_lea.vmem %s6, 1
      %v1440 = vld [vmem:[%s1439] sm:$0x1]
      %v1442 = vperm.slane %v1440, 0
      %v1445 = vsel %vm551, %v1433, 0
      %1447 = vmatpush.msra.mxu0 0.0
      %1448 = vmatpush.msra.mxu0 0.0
      %1449 = vmatpush.msra.mxu0 0.0
      %1450 = vmatpush.msra.mxu0 0.0
      %1451 = vmatpush.msra.mxu0 0.0
      %1452 = vmatpush.msra.mxu0 0.0
      %1453 = vmatpush.msra.mxu0 0.0
      %1454 = vmatpush.msra.mxu0 0.0
      %1455 = vmatpush.msra.mxu0 0.0
      %1456 = vmatpush.msra.mxu0 0.0
      %1457 = vmatpush.msra.mxu0 0.0
      %1458 = vmatpush.msra.mxu0 0.0
      %1459 = vmatpush.msra.mxu0 %v1438
      %1460 = vmatpush.msra.mxu0 %v1437
      %1461 = vmatpush.msra.mxu0 %v1436
      %1462 = vmatpush.msra.mxu0 %v1435
      %1463 = vmatmul.f32.gmra.mxu0 %v1445
      %v1464 = vpop.f32.mrf.mxu0
      %v1465 = vadd.f32 %v1442, %v1464
      %1466 = vdwg.mxu0
      %v1467 = vadd.f32 %v1084, %v1465
      %s1468 = scalar_lea.vmem %s7, 1
      %v1469 = vld [vmem:[%s1468] sm:$0x1]
      %s1470 = scalar_lea.vmem %s8, 1
      %v1471 = vld [vmem:[%s1470] sm:$0x1]
      %v1472 = vsel %vm551, %v1467, 0.0
      %1473 = vadd.xlane.f32.xlu0 %v1472
      %v1474 = vpop.xlane.xlu0 %1473
      %v1475 = vmul.f32 %v1474, %v561
      %v1476 = vsub.f32 %v1467, %v1475
      %v1477 = vmul.f32 %v1476, %v1476
      %v1478 = vsel %vm551, %v1477, 0.0
      %1479 = vadd.xlane.f32.xlu0 %v1478
      %v1480 = vpop.xlane.xlu0 %1479
      %v1481 = vmul.f32 %v1480, %v561
      %v1482 = vadd.f32 %v1481, 1e-05
      %v1483 = vrsqrt.pop %v1482
      %v1484 = vmul.f32 %v1483, %v1482
      %v1485 = vmul.f32 %v1484, %v1483
      %v1486 = vmul.f32 0.5, %v1485
      %v1487 = vsub.f32 1.5, %v1486
      %v1488 = vmul.f32 %v1483, %v1487
      %vm1489 = vweird.f32 %v1482
      %vm1490 = vweird.f32 %v1483
      %vm1491 = vmor %vm1489, %vm1490
      %v1492 = vsel %vm1491, %v1483, %v1488
      %v1493 = vmul.f32 %v1476, %v1492
      %v1495 = vperm.slane %v1469, 0
      %v1497 = vmul.f32 %v1493, %v1495
      %v1499 = vperm.slane %v1471, 0
      %v1501 = vadd.f32 %v1497, %v1499
      %s1502 = scalar_lea.vmem %s9, 32
      %v1503 = vld [vmem:[%s1502] sm:$0xff]
      %v1504 = vld [vmem:[%s1502 + $0x8] sm:$0xff]
      %v1505 = vld [vmem:[%s1502 + $0x10] sm:$0xff]
      %v1506 = vld [vmem:[%s1502 + $0x18] sm:$0xff]
      %s1507 = scalar_lea.vmem %s10, 1
      %v1508 = vld [vmem:[%s1507] sm:$0x1]
      %v1510 = vperm.slane %v1508, 0
      %v1513 = vsel %vm551, %v1501, 0
      %1515 = vmatpush.msra.mxu0 0.0
      %1516 = vmatpush.msra.mxu0 0.0
      %1517 = vmatpush.msra.mxu0 0.0
      %1518 = vmatpush.msra.mxu0 0.0
      %1519 = vmatpush.msra.mxu0 0.0
      %1520 = vmatpush.msra.mxu0 0.0
      %1521 = vmatpush.msra.mxu0 0.0
      %1522 = vmatpush.msra.mxu0 0.0
      %1523 = vmatpush.msra.mxu0 0.0
      %1524 = vmatpush.msra.mxu0 0.0
      %1525 = vmatpush.msra.mxu0 0.0
      %1526 = vmatpush.msra.mxu0 0.0
      %1527 = vmatpush.msra.mxu0 %v1506
      %1528 = vmatpush.msra.mxu0 %v1505
      %1529 = vmatpush.msra.mxu0 %v1504
      %1530 = vmatpush.msra.mxu0 %v1503
      %1531 = vmatmul.f32.gmra.mxu0 %v1513
      %v1532 = vpop.f32.mrf.mxu0
      %v1533 = vadd.f32 %v1510, %v1532
      %1534 = vdwg.mxu0
      %v1535 = vmul.f32 %v1533, 0.5
      %v1536 = vmul.f32 %v1533, 0.70710677
      %v1537 = vmul.f32 %v1536, %v1536
      %v1538 = vmin.f32 16.0, %v1537
      %v1539 = vmul.f32 %v1538, 2.1237322e-06
      %v1540 = vadd.f32 %v1539, 0.00028619796
      %v1541 = vmul.f32 %v1538, %v1540
      %v1542 = vadd.f32 %v1541, 0.0036580483
      %v1543 = vmul.f32 %v1538, %v1542
      %v1544 = vadd.f32 %v1543, 0.05243302
      %v1545 = vmul.f32 %v1538, %v1544
      %v1546 = vadd.f32 %v1545, 0.18741608
      %v1547 = vmul.f32 %v1538, %v1546
      %v1548 = vadd.f32 %v1547, 1.1283791
      %v1549 = vmul.f32 %v1536, %v1548
      %v1550 = vmul.f32 %v1538, 3.8918573e-05
      %v1551 = vadd.f32 %v1550, 0.001143296
      %v1552 = vmul.f32 %v1538, %v1551
      %v1553 = vadd.f32 %v1552, 0.014752088
      %v1554 = vmul.f32 %v1538, %v1553
      %v1555 = vadd.f32 %v1554, 0.112945676
      %v1556 = vmul.f32 %v1538, %v1555
      %v1557 = vadd.f32 %v1556, 0.4994258
      %v1558 = vmul.f32 %v1538, %v1557
      %v1559 = vadd.f32 %v1558, 1.0
      %v1560 = vrcp.pop %v1559
      %v1561 = vmul.f32 %v1559, %v1560
      %v1562 = vsub.f32 1.0, %v1561
      %v1563 = vmul.f32 %v1560, %v1562
      %v1564 = vadd.f32 %v1560, %v1563
      %vm1565 = vweird.f32 %v1559
      %vm1566 = vweird.f32 %v1560
      %vm1567 = vmor %vm1565, %vm1566
      %v1568 = vsel %vm1567, %v1560, %v1564
      %v1569 = vand.u32 2147483647, %v1559
      %vm1570 = vcmp.eq.f32.partialorder %v1569, 8.507059e+37
      %v1571 = vand.u32 %v1559, 2147483648
      %v1572 = vor.u32 1.1754944e-38, %v1571
      %v1573 = vsel %vm1570, %v1572, %v1568
      %v1574 = vmul.f32 %v1549, %v1573
      %v1575 = vmin.f32 %v1574, 1.0
      %v1576 = vmax.f32 %v1575, -1.0
      %v1577 = vadd.f32 %v1576, 1.0
      %v1578 = vmul.f32 %v1535, %v1577
      %s1579 = scalar_lea.vmem %s11, 128
      %v1580 = vld [vmem:[%s1579] sm:$0xff]
      %v1581 = vld [vmem:[%s1579 + $0x8] sm:$0xff]
      %v1582 = vld [vmem:[%s1579 + $0x10] sm:$0xff]
      %v1583 = vld [vmem:[%s1579 + $0x18] sm:$0xff]
      %v1584 = vld [vmem:[%s1579 + $0x20] sm:$0xff]
      %v1585 = vld [vmem:[%s1579 + $0x28] sm:$0xff]
      %v1586 = vld [vmem:[%s1579 + $0x30] sm:$0xff]
      %v1587 = vld [vmem:[%s1579 + $0x38] sm:$0xff]
      %v1588 = vld [vmem:[%s1579 + $0x40] sm:$0xff]
      %v1589 = vld [vmem:[%s1579 + $0x48] sm:$0xff]
      %v1590 = vld [vmem:[%s1579 + $0x50] sm:$0xff]
      %v1591 = vld [vmem:[%s1579 + $0x58] sm:$0xff]
      %v1592 = vld [vmem:[%s1579 + $0x60] sm:$0xff]
      %v1593 = vld [vmem:[%s1579 + $0x68] sm:$0xff]
      %v1594 = vld [vmem:[%s1579 + $0x70] sm:$0xff]
      %v1595 = vld [vmem:[%s1579 + $0x78] sm:$0xff]
      %s1596 = scalar_lea.vmem %s12, 1
      %v1597 = vld [vmem:[%s1596] sm:$0x1]
      %v1599 = vperm.slane %v1597, 0
      %1601 = vmatpush.msra.mxu0 %v1595
      %1602 = vmatpush.msra.mxu0 %v1594
      %1603 = vmatpush.msra.mxu0 %v1593
      %1604 = vmatpush.msra.mxu0 %v1592
      %1605 = vmatpush.msra.mxu0 %v1591
      %1606 = vmatpush.msra.mxu0 %v1590
      %1607 = vmatpush.msra.mxu0 %v1589
      %1608 = vmatpush.msra.mxu0 %v1588
      %1609 = vmatpush.msra.mxu0 %v1587
      %1610 = vmatpush.msra.mxu0 %v1586
      %1611 = vmatpush.msra.mxu0 %v1585
      %1612 = vmatpush.msra.mxu0 %v1584
      %1613 = vmatpush.msra.mxu0 %v1583
      %1614 = vmatpush.msra.mxu0 %v1582
      %1615 = vmatpush.msra.mxu0 %v1581
      %1616 = vmatpush.msra.mxu0 %v1580
      %1617 = vmatmul.f32.gmra.mxu0 %v1578
      %v1618 = vpop.f32.mrf.mxu0
      %v1619 = vadd.f32 %v1599, %v1618
      %1620 = vdwg.mxu0
      %v1621 = vadd.f32 %v1467, %v1619
      %v1622 = vld [vmem:[%s13] sm:$0x1]
      %v1623 = vld [vmem:[%s14] sm:$0x1]
      %v1624 = vsel %vm551, %v1621, 0.0
      %1625 = vadd.xlane.f32.xlu0 %v1624
      %v1626 = vpop.xlane.xlu0 %1625
      %v1627 = vmul.f32 %v1626, %v561
      %v1628 = vsub.f32 %v1621, %v1627
      %v1629 = vmul.f32 %v1628, %v1628
      %v1630 = vsel %vm551, %v1629, 0.0
      %1631 = vadd.xlane.f32.xlu0 %v1630
      %v1632 = vpop.xlane.xlu0 %1631
      %v1633 = vmul.f32 %v1632, %v561
      %v1634 = vadd.f32 %v1633, 1e-05
      %v1635 = vrsqrt.pop %v1634
      %v1636 = vmul.f32 %v1635, %v1634
      %v1637 = vmul.f32 %v1636, %v1635
      %v1638 = vmul.f32 0.5, %v1637
      %v1639 = vsub.f32 1.5, %v1638
      %v1640 = vmul.f32 %v1635, %v1639
      %vm1641 = vweird.f32 %v1634
      %vm1642 = vweird.f32 %v1635
      %vm1643 = vmor %vm1641, %vm1642
      %v1644 = vsel %vm1643, %v1635, %v1640
      %v1645 = vmul.f32 %v1628, %v1644
      %v1647 = vperm.slane %v1622, 0
      %v1649 = vmul.f32 %v1645, %v1647
      %v1651 = vperm.slane %v1623, 0
      %v1653 = vadd.f32 %v1649, %v1651
      %v1654 = vld [vmem:[%s15] sm:$0xff]
      %v1655 = vld [vmem:[%s15 + $0x8] sm:$0xff]
      %v1656 = vld [vmem:[%s15 + $0x10] sm:$0xff]
      %v1657 = vld [vmem:[%s15 + $0x18] sm:$0xff]
      %v1658 = vld [vmem:[%s16] sm:$0x1]
      %v1660 = vperm.slane %v1658, 0
      %v1663 = vsel %vm551, %v1653, 0
      %1665 = vmatpush.msra.mxu0 0.0
      %1666 = vmatpush.msra.mxu0 0.0
      %1667 = vmatpush.msra.mxu0 0.0
      %1668 = vmatpush.msra.mxu0 0.0
      %1669 = vmatpush.msra.mxu0 0.0
      %1670 = vmatpush.msra.mxu0 0.0
      %1671 = vmatpush.msra.mxu0 0.0
      %1672 = vmatpush.msra.mxu0 0.0
      %1673 = vmatpush.msra.mxu0 0.0
      %1674 = vmatpush.msra.mxu0 0.0
      %1675 = vmatpush.msra.mxu0 0.0
      %1676 = vmatpush.msra.mxu0 0.0
      %1677 = vmatpush.msra.mxu0 %v1657
      %1678 = vmatpush.msra.mxu0 %v1656
      %1679 = vmatpush.msra.mxu0 %v1655
      %1680 = vmatpush.msra.mxu0 %v1654
      %1681 = vmatmul.f32.gmra.mxu0 %v1663
      %v1682 = vpop.f32.mrf.mxu0
      %v1683 = vadd.f32 %v1660, %v1682
      %1684 = vdwg.mxu0
      %1685 = vst.msk [vmem:[%s543] sm:$0xff] %vm551, %v1683
      %p1686 = scmp.lt.s32.totalorder %s28, 1
      %s1687 = scalar_select %p1686, %s28, 1
      %s1688 = smul.addr %s1687, 8
      %s1689 = scalar_lea.vmem %s17, %s1688
      // Predicated region
      $region89: #{forward.4} parent=87 // pred_check
        %p1690 = pneg %p408
      $region90: #{forward.4} parent=87 // pred_check_branch
        %1692 = sbr.rel (%p1690) target = $region92
      $region91: #{forward.4} parent=87 // pred_region
        _
      $region92: #{forward.4} parent=87 // pred_fallthru
        _
    $region88: #{forward.4} parent=5 // pred_fallthru
      _
    %p1693 = scmp.le.s32.totalorder 2, %s23
    // Predicated region
    $region93: #{forward.4} parent=5 // pred_check
      %p1694 = pneg %p1693
    $region94: #{forward.4} parent=5 // pred_check_branch
      %1696 = sbr.rel (%p1694) target = $region96
    $region95: #{forward.4} parent=5 // pred_region
      %s1697 = ssub.s32 %s23, 2
      // Predicated region
      $region97: #{forward.4} parent=95 // pred_check
        %p1698 = pneg %p414
      $region98: #{forward.4} parent=95 // pred_check_branch
        %1700 = sbr.rel (%p1698) target = $region100
      $region99: #{forward.4} parent=95 // pred_region
        %p1701 = scmp.lt.s32.totalorder %s29, 1
        %s1702 = scalar_select %p1701, %s29, 1
        %s1703 = smul.addr %s1702, 8
        %s1704 = scalar_lea.vmem %s17, %s1703
      $region100: #{forward.4} parent=95 // pred_fallthru
        _
    $region96: #{forward.4} parent=5 // pred_fallthru
      _
  $region6: #{forward.4} parent=0 // loop_footer
    %s27 = sadd.s32 1, %s23
  $region7: #{forward.4} parent=0 // loop_footer_branch
    %22 = sbr.rel target = $region3
  $region8: #{forward.4} parent=0 // loop_exit
    _

// kernel: forward.5
$region0: #{forward.5}
  #allocation0 [shape = 'u32[]', space=smem, size = 0x4, offset = 0x4, fixed_abs, tag = 'smem constant byte address 0x4 - core index']
  #allocation1 [shape = 'u32[72,128]{1,0:T(1,128)}', space=vmem, size = 0x9000, scoped, tag = 'internal scratch']
  %s0 = inlined_call_operand.vmem [shape: f32[16,32], index: 0, kind: input, shape index: {}]
  %s1 = inlined_call_operand.vmem [shape: f32[2,1,32], index: 1, kind: input, shape index: {}]
  %s2 = inlined_call_operand.vmem [shape: f32[2,1,32], index: 2, kind: input, shape index: {}]
  %s3 = inlined_call_operand.vmem [shape: f32[2,32,96], index: 3, kind: input, shape index: {}]
  %s4 = inlined_call_operand.vmem [shape: f32[2,1,96], index: 4, kind: input, shape index: {}]
  %s5 = inlined_call_operand.vmem [shape: f32[2,32,32], index: 5, kind: input, shape index: {}]
  %s6 = inlined_call_operand.vmem [shape: f32[2,1,32], index: 6, kind: input, shape index: {}]
  %s7 = inlined_call_operand.vmem [shape: f32[2,1,32], index: 7, kind: input, shape index: {}]
  %s8 = inlined_call_operand.vmem [shape: f32[2,1,32], index: 8, kind: input, shape index: {}]
  %s9 = inlined_call_operand.vmem [shape: f32[2,32,128], index: 9, kind: input, shape index: {}]
  %s10 = inlined_call_operand.vmem [shape: f32[2,1,128], index: 10, kind: input, shape index: {}]
  %s11 = inlined_call_operand.vmem [shape: f32[2,128,32], index: 11, kind: input, shape index: {}]
  %s12 = inlined_call_operand.vmem [shape: f32[2,1,32], index: 12, kind: input, shape index: {}]
  %s13 = inlined_call_operand.vmem [shape: f32[1,32], index: 13, kind: input, shape index: {}]
  %s14 = inlined_call_operand.vmem [shape: f32[1,32], index: 14, kind: input, shape index: {}]
  %s15 = inlined_call_operand.vmem [shape: f32[16,32], index: 15, kind: output, shape index: {}]
  %s16 = sld [smem:[#allocation0]]
  $region93: #{forward.5} parent=0
    _
  %s18 = ssub.s32 1, %s16
  %s19 = scalar_select 0, %s18, %s16
  loop: start=0, step=1, limit=4
  $region2: #{forward.5} parent=0 // loop_pre_header
    _
  $region3: #{forward.5} parent=0 // loop_header
    %s21 = sphi 0, %s25
    %p22 = scmp.ge.s32.totalorder %s21, 4
    %s31 = sphi 0, %s33
    %s34 = sphi 0, %s31
    %s35 = sphi 0, %s34
    %s51 = sphi 0, %s35
    %s55 = sphi 0, %s55
    %s57 = sphi 0, %s55
    %s58 = sphi 0, %s57
    %s72 = sphi 0, %s58
    %s76 = sphi 0, %s76
    %s78 = sphi 0, %s76
    %s79 = sphi 0, %s78
    %s93 = sphi 0, %s79
    %s97 = sphi 0, %s97
    %s99 = sphi 0, %s97
    %s100 = sphi 0, %s99
    %s114 = sphi 0, %s100
    %s118 = sphi 0, %s118
    %s120 = sphi 0, %s118
    %s121 = sphi 0, %s120
    %s135 = sphi 0, %s121
    %s139 = sphi 0, %s139
    %s141 = sphi 0, %s139
    %s142 = sphi 0, %s141
    %s156 = sphi 0, %s142
    %s160 = sphi 0, %s160
    %s162 = sphi 0, %s160
    %s163 = sphi 0, %s162
    %s177 = sphi 0, %s163
    %s181 = sphi 0, %s181
    %s183 = sphi 0, %s181
    %s184 = sphi 0, %s183
    %s198 = sphi 0, %s184
    %s202 = sphi 0, %s202
    %s204 = sphi 0, %s202
    %s205 = sphi 0, %s204
    %s219 = sphi 0, %s205
    %s223 = sphi 0, %s223
    %s225 = sphi 0, %s223
    %s226 = sphi 0, %s225
    %s240 = sphi 0, %s226
    %s244 = sphi 0, %s244
    %s246 = sphi 0, %s244
    %s247 = sphi 0, %s246
    %s261 = sphi 0, %s247
    %s265 = sphi 0, %s265
    %s267 = sphi 0, %s265
    %s268 = sphi 0, %s267
    %s282 = sphi 0, %s268
    %s286 = sphi 0, %s286
    %s288 = sphi 0, %s286
    %s289 = sphi 0, %s288
    %s303 = sphi 0, %s289
    %s307 = sphi 0, %s307
    %s309 = sphi 0, %s307
    %s310 = sphi 0, %s309
    %s324 = sphi 0, %s310
    %s328 = sphi 0, %s328
    %s330 = sphi 0, %s328
    %s331 = sphi 0, %s330
    %s345 = sphi 0, %s331
    %s351 = sphi 0, %s353
    %s354 = sphi 0, %s351
    %s355 = sphi 0, %s354
    %s371 = sphi 0, %s355
  $region4: #{forward.5} parent=0 // loop_header_branch
    %24 = sbr.rel (%p22) target = $region8
  $region5: #{forward.5} parent=0 // loop_body
    %s26 = ssub.s32 %s21, 1
    %s27 = ssub.s32 %s21, 2
    %s28 = sadd.s32 %s21, 1
    %s29 = ssub.s32 %s21, %s28
    %p30 = scmp.eq.s32.totalorder %s29, 0
    %s32 = sadd.s32 %s31, 1
    %s33 = scalar_select %p30, %s31, %s32
    %p36 = pneg %p30
    %p37 = scmp.eq.s32.totalorder %s21, 1
    %p38 = por %p36, %p37
    %p39 = scmp.ne.s32.totalorder %s31, %s34
    %p40 = scmp.eq.s32.totalorder %s21, 0
    %p41 = por %p39, %p40
    %p42 = scmp.ne.s32.totalorder %s31, %s34
    %p43 = scmp.eq.s32.totalorder %s26, 1
    %p44 = por %p42, %p43
    %p45 = scmp.ne.s32.totalorder %s34, %s35
    %p46 = scmp.eq.s32.totalorder %s26, 0
    %p47 = por %p45, %p46
    %p48 = scmp.ne.s32.totalorder %s34, %s35
    %p49 = scmp.eq.s32.totalorder %s27, 1
    %p50 = por %p48, %p49
    %p52 = scmp.ne.s32.totalorder %s35, %s51
    %p53 = scmp.eq.s32.totalorder %s27, 0
    %p54 = por %p52, %p53
    %s56 = sadd.s32 %s55, 1
    %p59 = scmp.eq.s32.totalorder %s21, 1
    %p60 = scmp.ne.s32.totalorder %s55, %s57
    %p61 = scmp.eq.s32.totalorder %s21, 0
    %p62 = por %p60, %p61
    %p63 = scmp.ne.s32.totalorder %s55, %s57
    %p64 = scmp.eq.s32.totalorder %s26, 1
    %p65 = por %p63, %p64
    %p66 = scmp.ne.s32.totalorder %s57, %s58
    %p67 = scmp.eq.s32.totalorder %s26, 0
    %p68 = por %p66, %p67
    %p69 = scmp.ne.s32.totalorder %s57, %s58
    %p70 = scmp.eq.s32.totalorder %s27, 1
    %p71 = por %p69, %p70
    %p73 = scmp.ne.s32.totalorder %s58, %s72
    %p74 = scmp.eq.s32.totalorder %s27, 0
    %p75 = por %p73, %p74
    %s77 = sadd.s32 %s76, 1
    %p80 = scmp.eq.s32.totalorder %s21, 1
    %p81 = scmp.ne.s32.totalorder %s76, %s78
    %p82 = scmp.eq.s32.totalorder %s21, 0
    %p83 = por %p81, %p82
    %p84 = scmp.ne.s32.totalorder %s76, %s78
    %p85 = scmp.eq.s32.totalorder %s26, 1
    %p86 = por %p84, %p85
    %p87 = scmp.ne.s32.totalorder %s78, %s79
    %p88 = scmp.eq.s32.totalorder %s26, 0
    %p89 = por %p87, %p88
    %p90 = scmp.ne.s32.totalorder %s78, %s79
    %p91 = scmp.eq.s32.totalorder %s27, 1
    %p92 = por %p90, %p91
    %p94 = scmp.ne.s32.totalorder %s79, %s93
    %p95 = scmp.eq.s32.totalorder %s27, 0
    %p96 = por %p94, %p95
    %s98 = sadd.s32 %s97, 1
    %p101 = scmp.eq.s32.totalorder %s21, 1
    %p102 = scmp.ne.s32.totalorder %s97, %s99
    %p103 = scmp.eq.s32.totalorder %s21, 0
    %p104 = por %p102, %p103
    %p105 = scmp.ne.s32.totalorder %s97, %s99
    %p106 = scmp.eq.s32.totalorder %s26, 1
    %p107 = por %p105, %p106
    %p108 = scmp.ne.s32.totalorder %s99, %s100
    %p109 = scmp.eq.s32.totalorder %s26, 0
    %p110 = por %p108, %p109
    %p111 = scmp.ne.s32.totalorder %s99, %s100
    %p112 = scmp.eq.s32.totalorder %s27, 1
    %p113 = por %p111, %p112
    %p115 = scmp.ne.s32.totalorder %s100, %s114
    %p116 = scmp.eq.s32.totalorder %s27, 0
    %p117 = por %p115, %p116
    %s119 = sadd.s32 %s118, 1
    %p122 = scmp.eq.s32.totalorder %s21, 1
    %p123 = scmp.ne.s32.totalorder %s118, %s120
    %p124 = scmp.eq.s32.totalorder %s21, 0
    %p125 = por %p123, %p124
    %p126 = scmp.ne.s32.totalorder %s118, %s120
    %p127 = scmp.eq.s32.totalorder %s26, 1
    %p128 = por %p126, %p127
    %p129 = scmp.ne.s32.totalorder %s120, %s121
    %p130 = scmp.eq.s32.totalorder %s26, 0
    %p131 = por %p129, %p130
    %p132 = scmp.ne.s32.totalorder %s120, %s121
    %p133 = scmp.eq.s32.totalorder %s27, 1
    %p134 = por %p132, %p133
    %p136 = scmp.ne.s32.totalorder %s121, %s135
    %p137 = scmp.eq.s32.totalorder %s27, 0
    %p138 = por %p136, %p137
    %s140 = sadd.s32 %s139, 1
    %p143 = scmp.eq.s32.totalorder %s21, 1
    %p144 = scmp.ne.s32.totalorder %s139, %s141
    %p145 = scmp.eq.s32.totalorder %s21, 0
    %p146 = por %p144, %p145
    %p147 = scmp.ne.s32.totalorder %s139, %s141
    %p148 = scmp.eq.s32.totalorder %s26, 1
    %p149 = por %p147, %p148
    %p150 = scmp.ne.s32.totalorder %s141, %s142
    %p151 = scmp.eq.s32.totalorder %s26, 0
    %p152 = por %p150, %p151
    %p153 = scmp.ne.s32.totalorder %s141, %s142
    %p154 = scmp.eq.s32.totalorder %s27, 1
    %p155 = por %p153, %p154
    %p157 = scmp.ne.s32.totalorder %s142, %s156
    %p158 = scmp.eq.s32.totalorder %s27, 0
    %p159 = por %p157, %p158
    %s161 = sadd.s32 %s160, 1
    %p164 = scmp.eq.s32.totalorder %s21, 1
    %p165 = scmp.ne.s32.totalorder %s160, %s162
    %p166 = scmp.eq.s32.totalorder %s21, 0
    %p167 = por %p165, %p166
    %p168 = scmp.ne.s32.totalorder %s160, %s162
    %p169 = scmp.eq.s32.totalorder %s26, 1
    %p170 = por %p168, %p169
    %p171 = scmp.ne.s32.totalorder %s162, %s163
    %p172 = scmp.eq.s32.totalorder %s26, 0
    %p173 = por %p171, %p172
    %p174 = scmp.ne.s32.totalorder %s162, %s163
    %p175 = scmp.eq.s32.totalorder %s27, 1
    %p176 = por %p174, %p175
    %p178 = scmp.ne.s32.totalorder %s163, %s177
    %p179 = scmp.eq.s32.totalorder %s27, 0
    %p180 = por %p178, %p179
    %s182 = sadd.s32 %s181, 1
    %p185 = scmp.eq.s32.totalorder %s21, 1
    %p186 = scmp.ne.s32.totalorder %s181, %s183
    %p187 = scmp.eq.s32.totalorder %s21, 0
    %p188 = por %p186, %p187
    %p189 = scmp.ne.s32.totalorder %s181, %s183
    %p190 = scmp.eq.s32.totalorder %s26, 1
    %p191 = por %p189, %p190
    %p192 = scmp.ne.s32.totalorder %s183, %s184
    %p193 = scmp.eq.s32.totalorder %s26, 0
    %p194 = por %p192, %p193
    %p195 = scmp.ne.s32.totalorder %s183, %s184
    %p196 = scmp.eq.s32.totalorder %s27, 1
    %p197 = por %p195, %p196
    %p199 = scmp.ne.s32.totalorder %s184, %s198
    %p200 = scmp.eq.s32.totalorder %s27, 0
    %p201 = por %p199, %p200
    %s203 = sadd.s32 %s202, 1
    %p206 = scmp.eq.s32.totalorder %s21, 1
    %p207 = scmp.ne.s32.totalorder %s202, %s204
    %p208 = scmp.eq.s32.totalorder %s21, 0
    %p209 = por %p207, %p208
    %p210 = scmp.ne.s32.totalorder %s202, %s204
    %p211 = scmp.eq.s32.totalorder %s26, 1
    %p212 = por %p210, %p211
    %p213 = scmp.ne.s32.totalorder %s204, %s205
    %p214 = scmp.eq.s32.totalorder %s26, 0
    %p215 = por %p213, %p214
    %p216 = scmp.ne.s32.totalorder %s204, %s205
    %p217 = scmp.eq.s32.totalorder %s27, 1
    %p218 = por %p216, %p217
    %p220 = scmp.ne.s32.totalorder %s205, %s219
    %p221 = scmp.eq.s32.totalorder %s27, 0
    %p222 = por %p220, %p221
    %s224 = sadd.s32 %s223, 1
    %p227 = scmp.eq.s32.totalorder %s21, 1
    %p228 = scmp.ne.s32.totalorder %s223, %s225
    %p229 = scmp.eq.s32.totalorder %s21, 0
    %p230 = por %p228, %p229
    %p231 = scmp.ne.s32.totalorder %s223, %s225
    %p232 = scmp.eq.s32.totalorder %s26, 1
    %p233 = por %p231, %p232
    %p234 = scmp.ne.s32.totalorder %s225, %s226
    %p235 = scmp.eq.s32.totalorder %s26, 0
    %p236 = por %p234, %p235
    %p237 = scmp.ne.s32.totalorder %s225, %s226
    %p238 = scmp.eq.s32.totalorder %s27, 1
    %p239 = por %p237, %p238
    %p241 = scmp.ne.s32.totalorder %s226, %s240
    %p242 = scmp.eq.s32.totalorder %s27, 0
    %p243 = por %p241, %p242
    %s245 = sadd.s32 %s244, 1
    %p248 = scmp.eq.s32.totalorder %s21, 1
    %p249 = scmp.ne.s32.totalorder %s244, %s246
    %p250 = scmp.eq.s32.totalorder %s21, 0
    %p251 = por %p249, %p250
    %p252 = scmp.ne.s32.totalorder %s244, %s246
    %p253 = scmp.eq.s32.totalorder %s26, 1
    %p254 = por %p252, %p253
    %p255 = scmp.ne.s32.totalorder %s246, %s247
    %p256 = scmp.eq.s32.totalorder %s26, 0
    %p257 = por %p255, %p256
    %p258 = scmp.ne.s32.totalorder %s246, %s247
    %p259 = scmp.eq.s32.totalorder %s27, 1
    %p260 = por %p258, %p259
    %p262 = scmp.ne.s32.totalorder %s247, %s261
    %p263 = scmp.eq.s32.totalorder %s27, 0
    %p264 = por %p262, %p263
    %s266 = sadd.s32 %s265, 1
    %p269 = scmp.eq.s32.totalorder %s21, 1
    %p270 = scmp.ne.s32.totalorder %s265, %s267
    %p271 = scmp.eq.s32.totalorder %s21, 0
    %p272 = por %p270, %p271
    %p273 = scmp.ne.s32.totalorder %s265, %s267
    %p274 = scmp.eq.s32.totalorder %s26, 1
    %p275 = por %p273, %p274
    %p276 = scmp.ne.s32.totalorder %s267, %s268
    %p277 = scmp.eq.s32.totalorder %s26, 0
    %p278 = por %p276, %p277
    %p279 = scmp.ne.s32.totalorder %s267, %s268
    %p280 = scmp.eq.s32.totalorder %s27, 1
    %p281 = por %p279, %p280
    %p283 = scmp.ne.s32.totalorder %s268, %s282
    %p284 = scmp.eq.s32.totalorder %s27, 0
    %p285 = por %p283, %p284
    %s287 = sadd.s32 %s286, 1
    %p290 = scmp.eq.s32.totalorder %s21, 1
    %p291 = scmp.ne.s32.totalorder %s286, %s288
    %p292 = scmp.eq.s32.totalorder %s21, 0
    %p293 = por %p291, %p292
    %p294 = scmp.ne.s32.totalorder %s286, %s288
    %p295 = scmp.eq.s32.totalorder %s26, 1
    %p296 = por %p294, %p295
    %p297 = scmp.ne.s32.totalorder %s288, %s289
    %p298 = scmp.eq.s32.totalorder %s26, 0
    %p299 = por %p297, %p298
    %p300 = scmp.ne.s32.totalorder %s288, %s289
    %p301 = scmp.eq.s32.totalorder %s27, 1
    %p302 = por %p300, %p301
    %p304 = scmp.ne.s32.totalorder %s289, %s303
    %p305 = scmp.eq.s32.totalorder %s27, 0
    %p306 = por %p304, %p305
    %s308 = sadd.s32 %s307, 1
    %p311 = scmp.eq.s32.totalorder %s21, 1
    %p312 = scmp.ne.s32.totalorder %s307, %s309
    %p313 = scmp.eq.s32.totalorder %s21, 0
    %p314 = por %p312, %p313
    %p315 = scmp.ne.s32.totalorder %s307, %s309
    %p316 = scmp.eq.s32.totalorder %s26, 1
    %p317 = por %p315, %p316
    %p318 = scmp.ne.s32.totalorder %s309, %s310
    %p319 = scmp.eq.s32.totalorder %s26, 0
    %p320 = por %p318, %p319
    %p321 = scmp.ne.s32.totalorder %s309, %s310
    %p322 = scmp.eq.s32.totalorder %s27, 1
    %p323 = por %p321, %p322
    %p325 = scmp.ne.s32.totalorder %s310, %s324
    %p326 = scmp.eq.s32.totalorder %s27, 0
    %p327 = por %p325, %p326
    %s329 = sadd.s32 %s328, 1
    %p332 = scmp.eq.s32.totalorder %s21, 1
    %p333 = scmp.ne.s32.totalorder %s328, %s330
    %p334 = scmp.eq.s32.totalorder %s21, 0
    %p335 = por %p333, %p334
    %p336 = scmp.ne.s32.totalorder %s328, %s330
    %p337 = scmp.eq.s32.totalorder %s26, 1
    %p338 = por %p336, %p337
    %p339 = scmp.ne.s32.totalorder %s330, %s331
    %p340 = scmp.eq.s32.totalorder %s26, 0
    %p341 = por %p339, %p340
    %p342 = scmp.ne.s32.totalorder %s330, %s331
    %p343 = scmp.eq.s32.totalorder %s27, 1
    %p344 = por %p342, %p343
    %p346 = scmp.ne.s32.totalorder %s331, %s345
    %p347 = scmp.eq.s32.totalorder %s27, 0
    %p348 = por %p346, %p347
    %s349 = ssub.s32 %s21, %s28
    %p350 = scmp.eq.s32.totalorder %s349, 0
    %s352 = sadd.s32 %s351, 1
    %s353 = scalar_select %p350, %s351, %s352
    %p356 = pneg %p350
    %p357 = scmp.eq.s32.totalorder %s21, 1
    %p358 = por %p356, %p357
    %p359 = scmp.ne.s32.totalorder %s351, %s354
    %p360 = scmp.eq.s32.totalorder %s21, 0
    %p361 = por %p359, %p360
    %p362 = scmp.ne.s32.totalorder %s351, %s354
    %p363 = scmp.eq.s32.totalorder %s26, 1
    %p364 = por %p362, %p363
    %p365 = scmp.ne.s32.totalorder %s354, %s355
    %p366 = scmp.eq.s32.totalorder %s26, 0
    %p367 = por %p365, %p366
    %p368 = scmp.ne.s32.totalorder %s354, %s355
    %p369 = scmp.eq.s32.totalorder %s27, 1
    %p370 = por %p368, %p369
    %p372 = scmp.ne.s32.totalorder %s355, %s371
    %p373 = scmp.eq.s32.totalorder %s27, 0
    %p374 = por %p372, %p373
    %p375 = scmp.le.s32.totalorder 1, %s21
    %p376 = scmp.lt.s32.totalorder %s21, 3
    %p377 = pnand %p375, %p376
    %p378 = pneg %p377
    // Predicated region
    $region9: #{forward.5} parent=5 // pred_check
      _
    $region10: #{forward.5} parent=5 // pred_check_branch
      %380 = sbr.rel (%p377) target = $region12
    $region11: #{forward.5} parent=5 // pred_region
      %s381 = ssub.s32 %s21, 1
      // Predicated region
      $region13: #{forward.5} parent=11 // pred_check
        %p382 = pneg %p68
      $region14: #{forward.5} parent=11 // pred_check_branch
        %384 = sbr.rel (%p382) target = $region16
      $region15: #{forward.5} parent=11 // pred_region
        _
      $region16: #{forward.5} parent=11 // pred_fallthru
        _
      // Predicated region
      $region17: #{forward.5} parent=11 // pred_check
        %p385 = pneg %p89
      $region18: #{forward.5} parent=11 // pred_check_branch
        %387 = sbr.rel (%p385) target = $region20
      $region19: #{forward.5} parent=11 // pred_region
        _
      $region20: #{forward.5} parent=11 // pred_fallthru
        _
      // Predicated region
      $region21: #{forward.5} parent=11 // pred_check
        %p388 = pneg %p110
      $region22: #{forward.5} parent=11 // pred_check_branch
        %390 = sbr.rel (%p388) target = $region24
      $region23: #{forward.5} parent=11 // pred_region
        _
      $region24: #{forward.5} parent=11 // pred_fallthru
        _
      // Predicated region
      $region25: #{forward.5} parent=11 // pred_check
        %p391 = pneg %p131
      $region26: #{forward.5} parent=11 // pred_check_branch
        %393 = sbr.rel (%p391) target = $region28
      $region27: #{forward.5} parent=11 // pred_region
        _
      $region28: #{forward.5} parent=11 // pred_fallthru
        _
      // Predicated region
      $region29: #{forward.5} parent=11 // pred_check
        %p394 = pneg %p152
      $region30: #{forward.5} parent=11 // pred_check_branch
        %396 = sbr.rel (%p394) target = $region32
      $region31: #{forward.5} parent=11 // pred_region
        _
      $region32: #{forward.5} parent=11 // pred_fallthru
        _
      // Predicated region
      $region33: #{forward.5} parent=11 // pred_check
        %p397 = pneg %p173
      $region34: #{forward.5} parent=11 // pred_check_branch
        %399 = sbr.rel (%p397) target = $region36
      $region35: #{forward.5} parent=11 // pred_region
        _
      $region36: #{forward.5} parent=11 // pred_fallthru
        _
      // Predicated region
      $region37: #{forward.5} parent=11 // pred_check
        %p400 = pneg %p194
      $region38: #{forward.5} parent=11 // pred_check_branch
        %402 = sbr.rel (%p400) target = $region40
      $region39: #{forward.5} parent=11 // pred_region
        _
      $region40: #{forward.5} parent=11 // pred_fallthru
        _
      // Predicated region
      $region41: #{forward.5} parent=11 // pred_check
        %p403 = pneg %p215
      $region42: #{forward.5} parent=11 // pred_check_branch
        %405 = sbr.rel (%p403) target = $region44
      $region43: #{forward.5} parent=11 // pred_region
        _
      $region44: #{forward.5} parent=11 // pred_fallthru
        _
      // Predicated region
      $region45: #{forward.5} parent=11 // pred_check
        %p406 = pneg %p236
      $region46: #{forward.5} parent=11 // pred_check_branch
        %408 = sbr.rel (%p406) target = $region48
      $region47: #{forward.5} parent=11 // pred_region
        _
      $region48: #{forward.5} parent=11 // pred_fallthru
        _
      // Predicated region
      $region49: #{forward.5} parent=11 // pred_check
        %p409 = pneg %p257
      $region50: #{forward.5} parent=11 // pred_check_branch
        %411 = sbr.rel (%p409) target = $region52
      $region51: #{forward.5} parent=11 // pred_region
        _
      $region52: #{forward.5} parent=11 // pred_fallthru
        _
      // Predicated region
      $region53: #{forward.5} parent=11 // pred_check
        %p412 = pneg %p278
      $region54: #{forward.5} parent=11 // pred_check_branch
        %414 = sbr.rel (%p412) target = $region56
      $region55: #{forward.5} parent=11 // pred_region
        _
      $region56: #{forward.5} parent=11 // pred_fallthru
        _
      // Predicated region
      $region57: #{forward.5} parent=11 // pred_check
        %p415 = pneg %p299
      $region58: #{forward.5} parent=11 // pred_check_branch
        %417 = sbr.rel (%p415) target = $region60
      $region59: #{forward.5} parent=11 // pred_region
        _
      $region60: #{forward.5} parent=11 // pred_fallthru
        _
      // Predicated region
      $region61: #{forward.5} parent=11 // pred_check
        %p418 = pneg %p320
      $region62: #{forward.5} parent=11 // pred_check_branch
        %420 = sbr.rel (%p418) target = $region64
      $region63: #{forward.5} parent=11 // pred_region
        _
      $region64: #{forward.5} parent=11 // pred_fallthru
        _
      // Predicated region
      $region65: #{forward.5} parent=11 // pred_check
        %p421 = pneg %p341
      $region66: #{forward.5} parent=11 // pred_check_branch
        %423 = sbr.rel (%p421) target = $region68
      $region67: #{forward.5} parent=11 // pred_region
        _
      $region68: #{forward.5} parent=11 // pred_fallthru
        _
    $region12: #{forward.5} parent=5 // pred_fallthru
      _
    %p424 = scmp.lt.s32.totalorder %s21, 2
    // Predicated region
    $region69: #{forward.5} parent=5 // pred_check
      %p425 = pneg %p424
    $region70: #{forward.5} parent=5 // pred_check_branch
      %427 = sbr.rel (%p425) target = $region72
    $region71: #{forward.5} parent=5 // pred_region
      // Predicated region
      $region73: #{forward.5} parent=71 // pred_check
        %p428 = pneg %p41
      $region74: #{forward.5} parent=71 // pred_check_branch
        %430 = sbr.rel (%p428) target = $region76
      $region75: #{forward.5} parent=71 // pred_region
        %p431 = scmp.lt.s32.totalorder %s21, 1
        %s432 = scalar_select %p431, %s21, 1
        %s433 = smul.addr %s432, 8
        %s434 = scalar_lea.vmem %s0, %s433
      $region76: #{forward.5} parent=71 // pred_fallthru
        _
    $region72: #{forward.5} parent=5 // pred_fallthru
      _
    %p435 = scmp.le.s32.totalorder 1, %s21
    %p436 = scmp.lt.s32.totalorder %s21, 3
    %p437 = pnand %p435, %p436
    %p438 = pneg %p437
    // Predicated region
    $region77: #{forward.5} parent=5 // pred_check
      _
    $region78: #{forward.5} parent=5 // pred_check_branch
      %440 = sbr.rel (%p437) target = $region80
    $region79: #{forward.5} parent=5 // pred_region
      %s441 = ssub.s32 %s21, 1
      %p442 = scmp.lt.s32.totalorder %s26, 1
      %s443 = scalar_select %p442, %s26, 1
      %s444 = smul.addr %s443, 8
      %s445 = scalar_lea.vmem %s0, %s444
      %p446 = pneg %p47
      %p447 = pneg %p44
      %p448 = pneg %p68
      %p449 = pneg %p65
      %p450 = pneg %p89
      %p451 = pneg %p86
      %p452 = pneg %p110
      %p453 = pneg %p107
      %p454 = pneg %p131
      %p455 = pneg %p128
      %p456 = pneg %p152
      %p457 = pneg %p149
      %p458 = pneg %p173
      %p459 = pneg %p170
      %p460 = pneg %p194
      %p461 = pneg %p191
      %p462 = pneg %p215
      %p463 = pneg %p212
      %p464 = pneg %p236
      %p465 = pneg %p233
      %p466 = pneg %p257
      %p467 = pneg %p254
      %p468 = pneg %p278
      %p469 = pneg %p275
      %p470 = pneg %p299
      %p471 = pneg %p296
      %p472 = pneg %p320
      %p473 = pneg %p317
      %p474 = pneg %p341
      %p475 = pneg %p338
      %p476 = pneg %p367
      %p477 = pneg %p364
      %p478 = scmp.lt.s32.totalorder %s26, 1
      %s479 = scalar_select %p478, %s26, 1
      %s480 = smul.addr %s479, 8
      %s481 = scalar_lea.vmem %s15, %s480
      %p482 = scmp.lt.s32.totalorder %s26, 1
      %s483 = scalar_select %p482, %s26, 1
      %s484 = smul.addr %s483, 8
      %s485 = scalar_lea.vmem %s0, %s484
      %p486 = scmp.lt.s32.totalorder %s26, 1
      %s487 = scalar_select %p486, %s26, 1
      %s488 = smul.addr %s487, 8
      %s489 = scalar_lea.vmem %s15, %s488
      %v490 = vld [vmem:[%s485] sm:$0xff]
      %v491 = vlaneseq
      %v492 = vand.u32 %v491, 127
      %vm493 = vcmp.lt.s32.totalorder %v492, 4
      %v494 = vsel %vm493, 0.0, -1e+30
      %v495 = vld [vmem:[%s1] sm:$0x1]
      %v496 = vld [vmem:[%s2] sm:$0x1]
      %vm497 = vcmask 261120
      %v498 = vsel %vm497, %v490, 0.0
      %499 = vadd.xlane.f32.xlu0 %v498
      %v500 = vpop.xlane.xlu0 %499
      %v501 = vrcp.pop 32.0
      %v502 = vmul.f32 32.0, %v501
      %v503 = vsub.f32 1.0, %v502
      %v504 = vmul.f32 %v501, %v503
      %v505 = vadd.f32 %v501, %v504
      %vm506 = vweird.f32 %v501
      %v507 = vsel %vm506, %v501, %v505
      %v508 = vmul.f32 %v500, %v507
      %v509 = vsub.f32 %v490, %v508
      %v510 = vmul.f32 %v509, %v509
      %v511 = vsel %vm497, %v510, 0.0
      %512 = vadd.xlane.f32.xlu0 %v511
      %v513 = vpop.xlane.xlu0 %512
      %v514 = vmul.f32 %v513, %v507
      %v515 = vadd.f32 %v514, 1e-05
      %v516 = vrsqrt.pop %v515
      %v517 = vmul.f32 %v516, %v515
      %v518 = vmul.f32 %v517, %v516
      %v519 = vmul.f32 0.5, %v518
      %v520 = vsub.f32 1.5, %v519
      %v521 = vmul.f32 %v516, %v520
      %vm522 = vweird.f32 %v515
      %vm523 = vweird.f32 %v516
      %vm524 = vmor %vm522, %vm523
      %v525 = vsel %vm524, %v516, %v521
      %v526 = vmul.f32 %v509, %v525
      %v528 = vperm.slane %v495, 0
      %v530 = vmul.f32 %v526, %v528
      %v532 = vperm.slane %v496, 0
      %v534 = vadd.f32 %v530, %v532
      %v535 = vld [vmem:[%s3] sm:$0xff]
      %v536 = vld [vmem:[%s3 + $0x8] sm:$0xff]
      %v537 = vld [vmem:[%s3 + $0x10] sm:$0xff]
      %v538 = vld [vmem:[%s3 + $0x18] sm:$0xff]
      %v539 = vld [vmem:[%s4] sm:$0x1]
      %v541 = vperm.slane %v539, 0
      %v544 = vsel %vm497, %v534, 0
      %546 = vmatpush.msra.mxu0 0.0
      %547 = vmatpush.msra.mxu0 0.0
      %548 = vmatpush.msra.mxu0 0.0
      %549 = vmatpush.msra.mxu0 0.0
      %550 = vmatpush.msra.mxu0 0.0
      %551 = vmatpush.msra.mxu0 0.0
      %552 = vmatpush.msra.mxu0 0.0
      %553 = vmatpush.msra.mxu0 0.0
      %554 = vmatpush.msra.mxu0 0.0
      %555 = vmatpush.msra.mxu0 0.0
      %556 = vmatpush.msra.mxu0 0.0
      %557 = vmatpush.msra.mxu0 0.0
      %558 = vmatpush.msra.mxu0 %v538
      %559 = vmatpush.msra.mxu0 %v537
      %560 = vmatpush.msra.mxu0 %v536
      %561 = vmatpush.msra.mxu0 %v535
      %562 = vmatmul.f32.gmra.mxu0 %v544
      %v563 = vpop.f32.mrf.mxu0
      %v564 = vadd.f32 %v541, %v563
      %565 = vdwg.mxu0
      %567 = vrot.lane.b32.xlu0 %v564, 96
      %v568 = vpop.permute.xlu0 %567
      %vm569 = vcmask 64512
      %v570 = vsel %vm569, %v564, 0
      %v572 = vsel %vm569, %v568, 0
      %574 = vmatpush.xpose.msra.mxu0 0.0
      %575 = vmatpush.xpose.msra.mxu0 0.0
      %576 = vmatpush.xpose.msra.mxu0 0.0
      %577 = vmatpush.xpose.msra.mxu0 0.0
      %578 = vmatpush.xpose.msra.mxu0 0.0
      %579 = vmatpush.xpose.msra.mxu0 0.0
      %580 = vmatpush.xpose.msra.mxu0 0.0
      %581 = vmatpush.xpose.msra.mxu0 0.0
      %582 = vmatpush.xpose.msra.mxu0 0.0
      %583 = vmatpush.xpose.msra.mxu0 0.0
      %584 = vmatpush.xpose.msra.mxu0 0.0
      %585 = vmatpush.xpose.msra.mxu0 0.0
      %586 = vmatpush.xpose.msra.mxu0 0.0
      %587 = vmatpush.xpose.msra.mxu0 0.0
      %588 = vmatpush.xpose.msra.mxu0 0.0
      %589 = vmatpush.xpose.msra.mxu0 %v572
      %590 = vmatmul.f32.gmra.mxu0 %v570
      %v591 = vpop.f32.mrf.mxu0
      %v592 = vadd.f32 0.0, %v591
      %593 = vdwg.mxu0
      %v594 = vmul.f32 %v592, 0.35355338
      %v595 = vadd.f32 %v594, %v494
      %v596 = vsel %vm569, %v595, -inf
      %597 = vmax.xlane.f32.xlu0 %v596
      %v598 = vpop.xlane.xlu0 %597
      %v599 = vsub.f32 %v595, %v598
      %v600 = vmul.f32 %v599, 1.442695
      %v601 = vpow.pop %v600
      %v602 = vsel %vm569, %v601, 0.0
      %603 = vadd.xlane.f32.xlu0 %v602
      %v604 = vpop.xlane.xlu0 %603
      %v605 = vrcp.pop %v604
      %v606 = vmul.f32 %v601, %v605
      %607 = vrot.lane.b32.xlu0 %v564, 64
      %v608 = vpop.permute.xlu0 %607
      %v611 = vsel %vm569, %v606, 0
      %613 = vmatpush.msra.mxu0 0.0
      %614 = vmatpush.msra.mxu0 0.0
      %615 = vmatpush.msra.mxu0 0.0
      %616 = vmatpush.msra.mxu0 0.0
      %617 = vmatpush.msra.mxu0 0.0
      %618 = vmatpush.msra.mxu0 0.0
      %619 = vmatpush.msra.mxu0 0.0
      %620 = vmatpush.msra.mxu0 0.0
      %621 = vmatpush.msra.mxu0 0.0
      %622 = vmatpush.msra.mxu0 0.0
      %623 = vmatpush.msra.mxu0 0.0
      %624 = vmatpush.msra.mxu0 0.0
      %625 = vmatpush.msra.mxu0 0.0
      %626 = vmatpush.msra.mxu0 0.0
      %627 = vmatpush.msra.mxu0 0.0
      %628 = vmatpush.msra.mxu0 %v608
      %629 = vmatmul.f32.gmra.mxu0 %v611
      %v630 = vpop.f32.mrf.mxu0
      %v631 = vadd.f32 0.0, %v630
      %632 = vdwg.mxu0
      %633 = vrot.lane.b32.xlu0 %v564, 120
      %v634 = vpop.permute.xlu0 %633
      %635 = vrot.lane.b32.xlu0 %v564, 88
      %v636 = vpop.permute.xlu0 %635
      %v637 = vsel %vm569, %v634, 0
      %v639 = vsel %vm569, %v636, 0
      %641 = vmatpush.xpose.msra.mxu0 0.0
      %642 = vmatpush.xpose.msra.mxu0 0.0
      %643 = vmatpush.xpose.msra.mxu0 0.0
      %644 = vmatpush.xpose.msra.mxu0 0.0
      %645 = vmatpush.xpose.msra.mxu0 0.0
      %646 = vmatpush.xpose.msra.mxu0 0.0
      %647 = vmatpush.xpose.msra.mxu0 0.0
      %648 = vmatpush.xpose.msra.mxu0 0.0
      %649 = vmatpush.xpose.msra.mxu0 0.0
      %650 = vmatpush.xpose.msra.mxu0 0.0
      %651 = vmatpush.xpose.msra.mxu0 0.0
      %652 = vmatpush.xpose.msra.mxu0 0.0
      %653 = vmatpush.xpose.msra.mxu0 0.0
      %654 = vmatpush.xpose.msra.mxu0 0.0
      %655 = vmatpush.xpose.msra.mxu0 0.0
      %656 = vmatpush.xpose.msra.mxu0 %v639
      %657 = vmatmul.f32.gmra.mxu0 %v637
      %v658 = vpop.f32.mrf.mxu0
      %v659 = vadd.f32 0.0, %v658
      %660 = vdwg.mxu0
      %v661 = vmul.f32 %v659, 0.35355338
      %v662 = vadd.f32 %v661, %v494
      %v663 = vsel %vm569, %v662, -inf
      %664 = vmax.xlane.f32.xlu0 %v663
      %v665 = vpop.xlane.xlu0 %664
      %v666 = vsub.f32 %v662, %v665
      %v667 = vmul.f32 %v666, 1.442695
      %v668 = vpow.pop %v667
      %v669 = vsel %vm569, %v668, 0.0
      %670 = vadd.xlane.f32.xlu0 %v669
      %v671 = vpop.xlane.xlu0 %670
      %v672 = vrcp.pop %v671
      %v673 = vmul.f32 %v668, %v672
      %674 = vrot.lane.b32.xlu0 %v564, 56
      %v675 = vpop.permute.xlu0 %674
      %v678 = vsel %vm569, %v673, 0
      %680 = vmatpush.msra.mxu0 0.0
      %681 = vmatpush.msra.mxu0 0.0
      %682 = vmatpush.msra.mxu0 0.0
      %683 = vmatpush.msra.mxu0 0.0
      %684 = vmatpush.msra.mxu0 0.0
      %685 = vmatpush.msra.mxu0 0.0
      %686 = vmatpush.msra.mxu0 0.0
      %687 = vmatpush.msra.mxu0 0.0
      %688 = vmatpush.msra.mxu0 0.0
      %689 = vmatpush.msra.mxu0 0.0
      %690 = vmatpush.msra.mxu0 0.0
      %691 = vmatpush.msra.mxu0 0.0
      %692 = vmatpush.msra.mxu0 0.0
      %693 = vmatpush.msra.mxu0 0.0
      %694 = vmatpush.msra.mxu0 0.0
      %695 = vmatpush.msra.mxu0 %v675
      %696 = vmatmul.f32.gmra.mxu0 %v678
      %v697 = vpop.f32.mrf.mxu0
      %v698 = vadd.f32 0.0, %v697
      %699 = vdwg.mxu0
      %700 = vrot.lane.b32.xlu0 %v564, 112
      %v701 = vpop.permute.xlu0 %700
      %702 = vrot.lane.b32.xlu0 %v564, 80
      %v703 = vpop.permute.xlu0 %702
      %v704 = vsel %vm569, %v701, 0
      %v706 = vsel %vm569, %v703, 0
      %708 = vmatpush.xpose.msra.mxu0 0.0
      %709 = vmatpush.xpose.msra.mxu0 0.0
      %710 = vmatpush.xpose.msra.mxu0 0.0
      %711 = vmatpush.xpose.msra.mxu0 0.0
      %712 = vmatpush.xpose.msra.mxu0 0.0
      %713 = vmatpush.xpose.msra.mxu0 0.0
      %714 = vmatpush.xpose.msra.mxu0 0.0
      %715 = vmatpush.xpose.msra.mxu0 0.0
      %716 = vmatpush.xpose.msra.mxu0 0.0
      %717 = vmatpush.xpose.msra.mxu0 0.0
      %718 = vmatpush.xpose.msra.mxu0 0.0
      %719 = vmatpush.xpose.msra.mxu0 0.0
      %720 = vmatpush.xpose.msra.mxu0 0.0
      %721 = vmatpush.xpose.msra.mxu0 0.0
      %722 = vmatpush.xpose.msra.mxu0 0.0
      %723 = vmatpush.xpose.msra.mxu0 %v706
      %724 = vmatmul.f32.gmra.mxu0 %v704
      %v725 = vpop.f32.mrf.mxu0
      %v726 = vadd.f32 0.0, %v725
      %727 = vdwg.mxu0
      %v728 = vmul.f32 %v726, 0.35355338
      %v729 = vadd.f32 %v728, %v494
      %v730 = vsel %vm569, %v729, -inf
      %731 = vmax.xlane.f32.xlu0 %v730
      %v732 = vpop.xlane.xlu0 %731
      %v733 = vsub.f32 %v729, %v732
      %v734 = vmul.f32 %v733, 1.442695
      %v735 = vpow.pop %v734
      %v736 = vsel %vm569, %v735, 0.0
      %737 = vadd.xlane.f32.xlu0 %v736
      %v738 = vpop.xlane.xlu0 %737
      %v739 = vrcp.pop %v738
      %v740 = vmul.f32 %v735, %v739
      %741 = vrot.lane.b32.xlu0 %v564, 48
      %v742 = vpop.permute.xlu0 %741
      %v745 = vsel %vm569, %v740, 0
      %747 = vmatpush.msra.mxu0 0.0
      %748 = vmatpush.msra.mxu0 0.0
      %749 = vmatpush.msra.mxu0 0.0
      %750 = vmatpush.msra.mxu0 0.0
      %751 = vmatpush.msra.mxu0 0.0
      %752 = vmatpush.msra.mxu0 0.0
      %753 = vmatpush.msra.mxu0 0.0
      %754 = vmatpush.msra.mxu0 0.0
      %755 = vmatpush.msra.mxu0 0.0
      %756 = vmatpush.msra.mxu0 0.0
      %757 = vmatpush.msra.mxu0 0.0
      %758 = vmatpush.msra.mxu0 0.0
      %759 = vmatpush.msra.mxu0 0.0
      %760 = vmatpush.msra.mxu0 0.0
      %761 = vmatpush.msra.mxu0 0.0
      %762 = vmatpush.msra.mxu0 %v742
      %763 = vmatmul.f32.gmra.mxu0 %v745
      %v764 = vpop.f32.mrf.mxu0
      %v765 = vadd.f32 0.0, %v764
      %766 = vdwg.mxu0
      %767 = vrot.lane.b32.xlu0 %v564, 104
      %v768 = vpop.permute.xlu0 %767
      %769 = vrot.lane.b32.xlu0 %v564, 72
      %v770 = vpop.permute.xlu0 %769
      %v771 = vsel %vm569, %v768, 0
      %v773 = vsel %vm569, %v770, 0
      %775 = vmatpush.xpose.msra.mxu0 0.0
      %776 = vmatpush.xpose.msra.mxu0 0.0
      %777 = vmatpush.xpose.msra.mxu0 0.0
      %778 = vmatpush.xpose.msra.mxu0 0.0
      %779 = vmatpush.xpose.msra.mxu0 0.0
      %780 = vmatpush.xpose.msra.mxu0 0.0
      %781 = vmatpush.xpose.msra.mxu0 0.0
      %782 = vmatpush.xpose.msra.mxu0 0.0
      %783 = vmatpush.xpose.msra.mxu0 0.0
      %784 = vmatpush.xpose.msra.mxu0 0.0
      %785 = vmatpush.xpose.msra.mxu0 0.0
      %786 = vmatpush.xpose.msra.mxu0 0.0
      %787 = vmatpush.xpose.msra.mxu0 0.0
      %788 = vmatpush.xpose.msra.mxu0 0.0
      %789 = vmatpush.xpose.msra.mxu0 0.0
      %790 = vmatpush.xpose.msra.mxu0 %v773
      %791 = vmatmul.f32.gmra.mxu0 %v771
      %v792 = vpop.f32.mrf.mxu0
      %v793 = vadd.f32 0.0, %v792
      %794 = vdwg.mxu0
      %v795 = vmul.f32 %v793, 0.35355338
      %v796 = vadd.f32 %v795, %v494
      %v797 = vsel %vm569, %v796, -inf
      %798 = vmax.xlane.f32.xlu0 %v797
      %v799 = vpop.xlane.xlu0 %798
      %v800 = vsub.f32 %v796, %v799
      %v801 = vmul.f32 %v800, 1.442695
      %v802 = vpow.pop %v801
      %v803 = vsel %vm569, %v802, 0.0
      %804 = vadd.xlane.f32.xlu0 %v803
      %v805 = vpop.xlane.xlu0 %804
      %v806 = vrcp.pop %v805
      %v807 = vmul.f32 %v802, %v806
      %808 = vrot.lane.b32.xlu0 %v564, 40
      %v809 = vpop.permute.xlu0 %808
      %v812 = vsel %vm569, %v807, 0
      %814 = vmatpush.msra.mxu0 0.0
      %815 = vmatpush.msra.mxu0 0.0
      %816 = vmatpush.msra.mxu0 0.0
      %817 = vmatpush.msra.mxu0 0.0
      %818 = vmatpush.msra.mxu0 0.0
      %819 = vmatpush.msra.mxu0 0.0
      %820 = vmatpush.msra.mxu0 0.0
      %821 = vmatpush.msra.mxu0 0.0
      %822 = vmatpush.msra.mxu0 0.0
      %823 = vmatpush.msra.mxu0 0.0
      %824 = vmatpush.msra.mxu0 0.0
      %825 = vmatpush.msra.mxu0 0.0
      %826 = vmatpush.msra.mxu0 0.0
      %827 = vmatpush.msra.mxu0 0.0
      %828 = vmatpush.msra.mxu0 0.0
      %829 = vmatpush.msra.mxu0 %v809
      %830 = vmatmul.f32.gmra.mxu0 %v812
      %v831 = vpop.f32.mrf.mxu0
      %v832 = vadd.f32 0.0, %v831
      %833 = vdwg.mxu0
      %835 = vrot.lane.b32.xlu0 %v698, 8
      %v836 = vpop.permute.xlu0 %835
      %839 = vrot.lane.b32.xlu0 %v765, 16
      %v840 = vpop.permute.xlu0 %839
      %843 = vrot.lane.b32.xlu0 %v832, 24
      %v844 = vpop.permute.xlu0 %843
      %v846 = vsel %vm569, %v631, %v836
      %vm847 = vcmask 130048
      %v848 = vsel %vm847, %v846, %v840
      %vm849 = vcmask 195584
      %v850 = vsel %vm849, %v848, %v844
      %v851 = vld [vmem:[%s5] sm:$0xff]
      %v852 = vld [vmem:[%s5 + $0x8] sm:$0xff]
      %v853 = vld [vmem:[%s5 + $0x10] sm:$0xff]
      %v854 = vld [vmem:[%s5 + $0x18] sm:$0xff]
      %v855 = vld [vmem:[%s6] sm:$0x1]
      %v857 = vperm.slane %v855, 0
      %v860 = vsel %vm497, %v850, 0
      %862 = vmatpush.msra.mxu0 0.0
      %863 = vmatpush.msra.mxu0 0.0
      %864 = vmatpush.msra.mxu0 0.0
      %865 = vmatpush.msra.mxu0 0.0
      %866 = vmatpush.msra.mxu0 0.0
      %867 = vmatpush.msra.mxu0 0.0
      %868 = vmatpush.msra.mxu0 0.0
      %869 = vmatpush.msra.mxu0 0.0
      %870 = vmatpush.msra.mxu0 0.0
      %871 = vmatpush.msra.mxu0 0.0
      %872 = vmatpush.msra.mxu0 0.0
      %873 = vmatpush.msra.mxu0 0.0
      %874 = vmatpush.msra.mxu0 %v854
      %875 = vmatpush.msra.mxu0 %v853
      %876 = vmatpush.msra.mxu0 %v852
      %877 = vmatpush.msra.mxu0 %v851
      %878 = vmatmul.f32.gmra.mxu0 %v860
      %v879 = vpop.f32.mrf.mxu0
      %v880 = vadd.f32 %v857, %v879
      %881 = vdwg.mxu0
      %v882 = vadd.f32 %v490, %v880
      %v883 = vld [vmem:[%s7] sm:$0x1]
      %v884 = vld [vmem:[%s8] sm:$0x1]
      %v885 = vsel %vm497, %v882, 0.0
      %886 = vadd.xlane.f32.xlu0 %v885
      %v887 = vpop.xlane.xlu0 %886
      %v888 = vmul.f32 %v887, %v507
      %v889 = vsub.f32 %v882, %v888
      %v890 = vmul.f32 %v889, %v889
      %v891 = vsel %vm497, %v890, 0.0
      %892 = vadd.xlane.f32.xlu0 %v891
      %v893 = vpop.xlane.xlu0 %892
      %v894 = vmul.f32 %v893, %v507
      %v895 = vadd.f32 %v894, 1e-05
      %v896 = vrsqrt.pop %v895
      %v897 = vmul.f32 %v896, %v895
      %v898 = vmul.f32 %v897, %v896
      %v899 = vmul.f32 0.5, %v898
      %v900 = vsub.f32 1.5, %v899
      %v901 = vmul.f32 %v896, %v900
      %vm902 = vweird.f32 %v895
      %vm903 = vweird.f32 %v896
      %vm904 = vmor %vm902, %vm903
      %v905 = vsel %vm904, %v896, %v901
      %v906 = vmul.f32 %v889, %v905
      %v908 = vperm.slane %v883, 0
      %v910 = vmul.f32 %v906, %v908
      %v912 = vperm.slane %v884, 0
      %v914 = vadd.f32 %v910, %v912
      %v915 = vld [vmem:[%s9] sm:$0xff]
      %v916 = vld [vmem:[%s9 + $0x8] sm:$0xff]
      %v917 = vld [vmem:[%s9 + $0x10] sm:$0xff]
      %v918 = vld [vmem:[%s9 + $0x18] sm:$0xff]
      %v919 = vld [vmem:[%s10] sm:$0x1]
      %v921 = vperm.slane %v919, 0
      %v924 = vsel %vm497, %v914, 0
      %926 = vmatpush.msra.mxu0 0.0
      %927 = vmatpush.msra.mxu0 0.0
      %928 = vmatpush.msra.mxu0 0.0
      %929 = vmatpush.msra.mxu0 0.0
      %930 = vmatpush.msra.mxu0 0.0
      %931 = vmatpush.msra.mxu0 0.0
      %932 = vmatpush.msra.mxu0 0.0
      %933 = vmatpush.msra.mxu0 0.0
      %934 = vmatpush.msra.mxu0 0.0
      %935 = vmatpush.msra.mxu0 0.0
      %936 = vmatpush.msra.mxu0 0.0
      %937 = vmatpush.msra.mxu0 0.0
      %938 = vmatpush.msra.mxu0 %v918
      %939 = vmatpush.msra.mxu0 %v917
      %940 = vmatpush.msra.mxu0 %v916
      %941 = vmatpush.msra.mxu0 %v915
      %942 = vmatmul.f32.gmra.mxu0 %v924
      %v943 = vpop.f32.mrf.mxu0
      %v944 = vadd.f32 %v921, %v943
      %945 = vdwg.mxu0
      %v946 = vmul.f32 %v944, 0.5
      %v947 = vmul.f32 %v944, 0.70710677
      %v948 = vmul.f32 %v947, %v947
      %v949 = vmin.f32 16.0, %v948
      %v950 = vmul.f32 %v949, 2.1237322e-06
      %v951 = vadd.f32 %v950, 0.00028619796
      %v952 = vmul.f32 %v949, %v951
      %v953 = vadd.f32 %v952, 0.0036580483
      %v954 = vmul.f32 %v949, %v953
      %v955 = vadd.f32 %v954, 0.05243302
      %v956 = vmul.f32 %v949, %v955
      %v957 = vadd.f32 %v956, 0.18741608
      %v958 = vmul.f32 %v949, %v957
      %v959 = vadd.f32 %v958, 1.1283791
      %v960 = vmul.f32 %v947, %v959
      %v961 = vmul.f32 %v949, 3.8918573e-05
      %v962 = vadd.f32 %v961, 0.001143296
      %v963 = vmul.f32 %v949, %v962
      %v964 = vadd.f32 %v963, 0.014752088
      %v965 = vmul.f32 %v949, %v964
      %v966 = vadd.f32 %v965, 0.112945676
      %v967 = vmul.f32 %v949, %v966
      %v968 = vadd.f32 %v967, 0.4994258
      %v969 = vmul.f32 %v949, %v968
      %v970 = vadd.f32 %v969, 1.0
      %v971 = vrcp.pop %v970
      %v972 = vmul.f32 %v970, %v971
      %v973 = vsub.f32 1.0, %v972
      %v974 = vmul.f32 %v971, %v973
      %v975 = vadd.f32 %v971, %v974
      %vm976 = vweird.f32 %v970
      %vm977 = vweird.f32 %v971
      %vm978 = vmor %vm976, %vm977
      %v979 = vsel %vm978, %v971, %v975
      %v980 = vand.u32 2147483647, %v970
      %vm981 = vcmp.eq.f32.partialorder %v980, 8.507059e+37
      %v982 = vand.u32 %v970, 2147483648
      %v983 = vor.u32 1.1754944e-38, %v982
      %v984 = vsel %vm981, %v983, %v979
      %v985 = vmul.f32 %v960, %v984
      %v986 = vmin.f32 %v985, 1.0
      %v987 = vmax.f32 %v986, -1.0
      %v988 = vadd.f32 %v987, 1.0
      %v989 = vmul.f32 %v946, %v988
      %v990 = vld [vmem:[%s11] sm:$0xff]
      %v991 = vld [vmem:[%s11 + $0x8] sm:$0xff]
      %v992 = vld [vmem:[%s11 + $0x10] sm:$0xff]
      %v993 = vld [vmem:[%s11 + $0x18] sm:$0xff]
      %v994 = vld [vmem:[%s11 + $0x20] sm:$0xff]
      %v995 = vld [vmem:[%s11 + $0x28] sm:$0xff]
      %v996 = vld [vmem:[%s11 + $0x30] sm:$0xff]
      %v997 = vld [vmem:[%s11 + $0x38] sm:$0xff]
      %v998 = vld [vmem:[%s11 + $0x40] sm:$0xff]
      %v999 = vld [vmem:[%s11 + $0x48] sm:$0xff]
      %v1000 = vld [vmem:[%s11 + $0x50] sm:$0xff]
      %v1001 = vld [vmem:[%s11 + $0x58] sm:$0xff]
      %v1002 = vld [vmem:[%s11 + $0x60] sm:$0xff]
      %v1003 = vld [vmem:[%s11 + $0x68] sm:$0xff]
      %v1004 = vld [vmem:[%s11 + $0x70] sm:$0xff]
      %v1005 = vld [vmem:[%s11 + $0x78] sm:$0xff]
      %v1006 = vld [vmem:[%s12] sm:$0x1]
      %v1008 = vperm.slane %v1006, 0
      %1010 = vmatpush.msra.mxu0 %v1005
      %1011 = vmatpush.msra.mxu0 %v1004
      %1012 = vmatpush.msra.mxu0 %v1003
      %1013 = vmatpush.msra.mxu0 %v1002
      %1014 = vmatpush.msra.mxu0 %v1001
      %1015 = vmatpush.msra.mxu0 %v1000
      %1016 = vmatpush.msra.mxu0 %v999
      %1017 = vmatpush.msra.mxu0 %v998
      %1018 = vmatpush.msra.mxu0 %v997
      %1019 = vmatpush.msra.mxu0 %v996
      %1020 = vmatpush.msra.mxu0 %v995
      %1021 = vmatpush.msra.mxu0 %v994
      %1022 = vmatpush.msra.mxu0 %v993
      %1023 = vmatpush.msra.mxu0 %v992
      %1024 = vmatpush.msra.mxu0 %v991
      %1025 = vmatpush.msra.mxu0 %v990
      %1026 = vmatmul.f32.gmra.mxu0 %v989
      %v1027 = vpop.f32.mrf.mxu0
      %v1028 = vadd.f32 %v1008, %v1027
      %1029 = vdwg.mxu0
      %v1030 = vadd.f32 %v882, %v1028
      %s1031 = scalar_lea.vmem %s1, 1
      %v1032 = vld [vmem:[%s1031] sm:$0x1]
      %s1033 = scalar_lea.vmem %s2, 1
      %v1034 = vld [vmem:[%s1033] sm:$0x1]
      %v1035 = vsel %vm497, %v1030, 0.0
      %1036 = vadd.xlane.f32.xlu0 %v1035
      %v1037 = vpop.xlane.xlu0 %1036
      %v1038 = vmul.f32 %v1037, %v507
      %v1039 = vsub.f32 %v1030, %v1038
      %v1040 = vmul.f32 %v1039, %v1039
      %v1041 = vsel %vm497, %v1040, 0.0
      %1042 = vadd.xlane.f32.xlu0 %v1041
      %v1043 = vpop.xlane.xlu0 %1042
      %v1044 = vmul.f32 %v1043, %v507
      %v1045 = vadd.f32 %v1044, 1e-05
      %v1046 = vrsqrt.pop %v1045
      %v1047 = vmul.f32 %v1046, %v1045
      %v1048 = vmul.f32 %v1047, %v1046
      %v1049 = vmul.f32 0.5, %v1048
      %v1050 = vsub.f32 1.5, %v1049
      %v1051 = vmul.f32 %v1046, %v1050
      %vm1052 = vweird.f32 %v1045
      %vm1053 = vweird.f32 %v1046
      %vm1054 = vmor %vm1052, %vm1053
      %v1055 = vsel %vm1054, %v1046, %v1051
      %v1056 = vmul.f32 %v1039, %v1055
      %v1058 = vperm.slane %v1032, 0
      %v1060 = vmul.f32 %v1056, %v1058
      %v1062 = vperm.slane %v1034, 0
      %v1064 = vadd.f32 %v1060, %v1062
      %s1065 = scalar_lea.vmem %s3, 32
      %v1066 = vld [vmem:[%s1065] sm:$0xff]
      %v1067 = vld [vmem:[%s1065 + $0x8] sm:$0xff]
      %v1068 = vld [vmem:[%s1065 + $0x10] sm:$0xff]
      %v1069 = vld [vmem:[%s1065 + $0x18] sm:$0xff]
      %s1070 = scalar_lea.vmem %s4, 1
      %v1071 = vld [vmem:[%s1070] sm:$0x1]
      %v1073 = vperm.slane %v1071, 0
      %v1076 = vsel %vm497, %v1064, 0
      %1078 = vmatpush.msra.mxu0 0.0
      %1079 = vmatpush.msra.mxu0 0.0
      %1080 = vmatpush.msra.mxu0 0.0
      %1081 = vmatpush.msra.mxu0 0.0
      %1082 = vmatpush.msra.mxu0 0.0
      %1083 = vmatpush.msra.mxu0 0.0
      %1084 = vmatpush.msra.mxu0 0.0
      %1085 = vmatpush.msra.mxu0 0.0
      %1086 = vmatpush.msra.mxu0 0.0
      %1087 = vmatpush.msra.mxu0 0.0
      %1088 = vmatpush.msra.mxu0 0.0
      %1089 = vmatpush.msra.mxu0 0.0
      %1090 = vmatpush.msra.mxu0 %v1069
      %1091 = vmatpush.msra.mxu0 %v1068
      %1092 = vmatpush.msra.mxu0 %v1067
      %1093 = vmatpush.msra.mxu0 %v1066
      %1094 = vmatmul.f32.gmra.mxu0 %v1076
      %v1095 = vpop.f32.mrf.mxu0
      %v1096 = vadd.f32 %v1073, %v1095
      %1097 = vdwg.mxu0
      %1099 = vrot.lane.b32.xlu0 %v1096, 96
      %v1100 = vpop.permute.xlu0 %1099
      %v1101 = vsel %vm569, %v1096, 0
      %v1103 = vsel %vm569, %v1100, 0
      %1105 = vmatpush.xpose.msra.mxu0 0.0
      %1106 = vmatpush.xpose.msra.mxu0 0.0
      %1107 = vmatpush.xpose.msra.mxu0 0.0
      %1108 = vmatpush.xpose.msra.mxu0 0.0
      %1109 = vmatpush.xpose.msra.mxu0 0.0
      %1110 = vmatpush.xpose.msra.mxu0 0.0
      %1111 = vmatpush.xpose.msra.mxu0 0.0
      %1112 = vmatpush.xpose.msra.mxu0 0.0
      %1113 = vmatpush.xpose.msra.mxu0 0.0
      %1114 = vmatpush.xpose.msra.mxu0 0.0
      %1115 = vmatpush.xpose.msra.mxu0 0.0
      %1116 = vmatpush.xpose.msra.mxu0 0.0
      %1117 = vmatpush.xpose.msra.mxu0 0.0
      %1118 = vmatpush.xpose.msra.mxu0 0.0
      %1119 = vmatpush.xpose.msra.mxu0 0.0
      %1120 = vmatpush.xpose.msra.mxu0 %v1103
      %1121 = vmatmul.f32.gmra.mxu0 %v1101
      %v1122 = vpop.f32.mrf.mxu0
      %v1123 = vadd.f32 0.0, %v1122
      %1124 = vdwg.mxu0
      %v1125 = vmul.f32 %v1123, 0.35355338
      %v1126 = vadd.f32 %v1125, %v494
      %v1127 = vsel %vm569, %v1126, -inf
      %1128 = vmax.xlane.f32.xlu0 %v1127
      %v1129 = vpop.xlane.xlu0 %1128
      %v1130 = vsub.f32 %v1126, %v1129
      %v1131 = vmul.f32 %v1130, 1.442695
      %v1132 = vpow.pop %v1131
      %v1133 = vsel %vm569, %v1132, 0.0
      %1134 = vadd.xlane.f32.xlu0 %v1133
      %v1135 = vpop.xlane.xlu0 %1134
      %v1136 = vrcp.pop %v1135
      %v1137 = vmul.f32 %v1132, %v1136
      %1138 = vrot.lane.b32.xlu0 %v1096, 64
      %v1139 = vpop.permute.xlu0 %1138
      %v1142 = vsel %vm569, %v1137, 0
      %1144 = vmatpush.msra.mxu0 0.0
      %1145 = vmatpush.msra.mxu0 0.0
      %1146 = vmatpush.msra.mxu0 0.0
      %1147 = vmatpush.msra.mxu0 0.0
      %1148 = vmatpush.msra.mxu0 0.0
      %1149 = vmatpush.msra.mxu0 0.0
      %1150 = vmatpush.msra.mxu0 0.0
      %1151 = vmatpush.msra.mxu0 0.0
      %1152 = vmatpush.msra.mxu0 0.0
      %1153 = vmatpush.msra.mxu0 0.0
      %1154 = vmatpush.msra.mxu0 0.0
      %1155 = vmatpush.msra.mxu0 0.0
      %1156 = vmatpush.msra.mxu0 0.0
      %1157 = vmatpush.msra.mxu0 0.0
      %1158 = vmatpush.msra.mxu0 0.0
      %1159 = vmatpush.msra.mxu0 %v1139
      %1160 = vmatmul.f32.gmra.mxu0 %v1142
      %v1161 = vpop.f32.mrf.mxu0
      %v1162 = vadd.f32 0.0, %v1161
      %1163 = vdwg.mxu0
      %1164 = vrot.lane.b32.xlu0 %v1096, 120
      %v1165 = vpop.permute.xlu0 %1164
      %1166 = vrot.lane.b32.xlu0 %v1096, 88
      %v1167 = vpop.permute.xlu0 %1166
      %v1168 = vsel %vm569, %v1165, 0
      %v1170 = vsel %vm569, %v1167, 0
      %1172 = vmatpush.xpose.msra.mxu0 0.0
      %1173 = vmatpush.xpose.msra.mxu0 0.0
      %1174 = vmatpush.xpose.msra.mxu0 0.0
      %1175 = vmatpush.xpose.msra.mxu0 0.0
      %1176 = vmatpush.xpose.msra.mxu0 0.0
      %1177 = vmatpush.xpose.msra.mxu0 0.0
      %1178 = vmatpush.xpose.msra.mxu0 0.0
      %1179 = vmatpush.xpose.msra.mxu0 0.0
      %1180 = vmatpush.xpose.msra.mxu0 0.0
      %1181 = vmatpush.xpose.msra.mxu0 0.0
      %1182 = vmatpush.xpose.msra.mxu0 0.0
      %1183 = vmatpush.xpose.msra.mxu0 0.0
      %1184 = vmatpush.xpose.msra.mxu0 0.0
      %1185 = vmatpush.xpose.msra.mxu0 0.0
      %1186 = vmatpush.xpose.msra.mxu0 0.0
      %1187 = vmatpush.xpose.msra.mxu0 %v1170
      %1188 = vmatmul.f32.gmra.mxu0 %v1168
      %v1189 = vpop.f32.mrf.mxu0
      %v1190 = vadd.f32 0.0, %v1189
      %1191 = vdwg.mxu0
      %v1192 = vmul.f32 %v1190, 0.35355338
      %v1193 = vadd.f32 %v1192, %v494
      %v1194 = vsel %vm569, %v1193, -inf
      %1195 = vmax.xlane.f32.xlu0 %v1194
      %v1196 = vpop.xlane.xlu0 %1195
      %v1197 = vsub.f32 %v1193, %v1196
      %v1198 = vmul.f32 %v1197, 1.442695
      %v1199 = vpow.pop %v1198
      %v1200 = vsel %vm569, %v1199, 0.0
      %1201 = vadd.xlane.f32.xlu0 %v1200
      %v1202 = vpop.xlane.xlu0 %1201
      %v1203 = vrcp.pop %v1202
      %v1204 = vmul.f32 %v1199, %v1203
      %1205 = vrot.lane.b32.xlu0 %v1096, 56
      %v1206 = vpop.permute.xlu0 %1205
      %v1209 = vsel %vm569, %v1204, 0
      %1211 = vmatpush.msra.mxu0 0.0
      %1212 = vmatpush.msra.mxu0 0.0
      %1213 = vmatpush.msra.mxu0 0.0
      %1214 = vmatpush.msra.mxu0 0.0
      %1215 = vmatpush.msra.mxu0 0.0
      %1216 = vmatpush.msra.mxu0 0.0
      %1217 = vmatpush.msra.mxu0 0.0
      %1218 = vmatpush.msra.mxu0 0.0
      %1219 = vmatpush.msra.mxu0 0.0
      %1220 = vmatpush.msra.mxu0 0.0
      %1221 = vmatpush.msra.mxu0 0.0
      %1222 = vmatpush.msra.mxu0 0.0
      %1223 = vmatpush.msra.mxu0 0.0
      %1224 = vmatpush.msra.mxu0 0.0
      %1225 = vmatpush.msra.mxu0 0.0
      %1226 = vmatpush.msra.mxu0 %v1206
      %1227 = vmatmul.f32.gmra.mxu0 %v1209
      %v1228 = vpop.f32.mrf.mxu0
      %v1229 = vadd.f32 0.0, %v1228
      %1230 = vdwg.mxu0
      %1231 = vrot.lane.b32.xlu0 %v1096, 112
      %v1232 = vpop.permute.xlu0 %1231
      %1233 = vrot.lane.b32.xlu0 %v1096, 80
      %v1234 = vpop.permute.xlu0 %1233
      %v1235 = vsel %vm569, %v1232, 0
      %v1237 = vsel %vm569, %v1234, 0
      %1239 = vmatpush.xpose.msra.mxu0 0.0
      %1240 = vmatpush.xpose.msra.mxu0 0.0
      %1241 = vmatpush.xpose.msra.mxu0 0.0
      %1242 = vmatpush.xpose.msra.mxu0 0.0
      %1243 = vmatpush.xpose.msra.mxu0 0.0
      %1244 = vmatpush.xpose.msra.mxu0 0.0
      %1245 = vmatpush.xpose.msra.mxu0 0.0
      %1246 = vmatpush.xpose.msra.mxu0 0.0
      %1247 = vmatpush.xpose.msra.mxu0 0.0
      %1248 = vmatpush.xpose.msra.mxu0 0.0
      %1249 = vmatpush.xpose.msra.mxu0 0.0
      %1250 = vmatpush.xpose.msra.mxu0 0.0
      %1251 = vmatpush.xpose.msra.mxu0 0.0
      %1252 = vmatpush.xpose.msra.mxu0 0.0
      %1253 = vmatpush.xpose.msra.mxu0 0.0
      %1254 = vmatpush.xpose.msra.mxu0 %v1237
      %1255 = vmatmul.f32.gmra.mxu0 %v1235
      %v1256 = vpop.f32.mrf.mxu0
      %v1257 = vadd.f32 0.0, %v1256
      %1258 = vdwg.mxu0
      %v1259 = vmul.f32 %v1257, 0.35355338
      %v1260 = vadd.f32 %v1259, %v494
      %v1261 = vsel %vm569, %v1260, -inf
      %1262 = vmax.xlane.f32.xlu0 %v1261
      %v1263 = vpop.xlane.xlu0 %1262
      %v1264 = vsub.f32 %v1260, %v1263
      %v1265 = vmul.f32 %v1264, 1.442695
      %v1266 = vpow.pop %v1265
      %v1267 = vsel %vm569, %v1266, 0.0
      %1268 = vadd.xlane.f32.xlu0 %v1267
      %v1269 = vpop.xlane.xlu0 %1268
      %v1270 = vrcp.pop %v1269
      %v1271 = vmul.f32 %v1266, %v1270
      %1272 = vrot.lane.b32.xlu0 %v1096, 48
      %v1273 = vpop.permute.xlu0 %1272
      %v1276 = vsel %vm569, %v1271, 0
      %1278 = vmatpush.msra.mxu0 0.0
      %1279 = vmatpush.msra.mxu0 0.0
      %1280 = vmatpush.msra.mxu0 0.0
      %1281 = vmatpush.msra.mxu0 0.0
      %1282 = vmatpush.msra.mxu0 0.0
      %1283 = vmatpush.msra.mxu0 0.0
      %1284 = vmatpush.msra.mxu0 0.0
      %1285 = vmatpush.msra.mxu0 0.0
      %1286 = vmatpush.msra.mxu0 0.0
      %1287 = vmatpush.msra.mxu0 0.0
      %1288 = vmatpush.msra.mxu0 0.0
      %1289 = vmatpush.msra.mxu0 0.0
      %1290 = vmatpush.msra.mxu0 0.0
      %1291 = vmatpush.msra.mxu0 0.0
      %1292 = vmatpush.msra.mxu0 0.0
      %1293 = vmatpush.msra.mxu0 %v1273
      %1294 = vmatmul.f32.gmra.mxu0 %v1276
      %v1295 = vpop.f32.mrf.mxu0
      %v1296 = vadd.f32 0.0, %v1295
      %1297 = vdwg.mxu0
      %1298 = vrot.lane.b32.xlu0 %v1096, 104
      %v1299 = vpop.permute.xlu0 %1298
      %1300 = vrot.lane.b32.xlu0 %v1096, 72
      %v1301 = vpop.permute.xlu0 %1300
      %v1302 = vsel %vm569, %v1299, 0
      %v1304 = vsel %vm569, %v1301, 0
      %1306 = vmatpush.xpose.msra.mxu0 0.0
      %1307 = vmatpush.xpose.msra.mxu0 0.0
      %1308 = vmatpush.xpose.msra.mxu0 0.0
      %1309 = vmatpush.xpose.msra.mxu0 0.0
      %1310 = vmatpush.xpose.msra.mxu0 0.0
      %1311 = vmatpush.xpose.msra.mxu0 0.0
      %1312 = vmatpush.xpose.msra.mxu0 0.0
      %1313 = vmatpush.xpose.msra.mxu0 0.0
      %1314 = vmatpush.xpose.msra.mxu0 0.0
      %1315 = vmatpush.xpose.msra.mxu0 0.0
      %1316 = vmatpush.xpose.msra.mxu0 0.0
      %1317 = vmatpush.xpose.msra.mxu0 0.0
      %1318 = vmatpush.xpose.msra.mxu0 0.0
      %1319 = vmatpush.xpose.msra.mxu0 0.0
      %1320 = vmatpush.xpose.msra.mxu0 0.0
      %1321 = vmatpush.xpose.msra.mxu0 %v1304
      %1322 = vmatmul.f32.gmra.mxu0 %v1302
      %v1323 = vpop.f32.mrf.mxu0
      %v1324 = vadd.f32 0.0, %v1323
      %1325 = vdwg.mxu0
      %v1326 = vmul.f32 %v1324, 0.35355338
      %v1327 = vadd.f32 %v1326, %v494
      %v1328 = vsel %vm569, %v1327, -inf
      %1329 = vmax.xlane.f32.xlu0 %v1328
      %v1330 = vpop.xlane.xlu0 %1329
      %v1331 = vsub.f32 %v1327, %v1330
      %v1332 = vmul.f32 %v1331, 1.442695
      %v1333 = vpow.pop %v1332
      %v1334 = vsel %vm569, %v1333, 0.0
      %1335 = vadd.xlane.f32.xlu0 %v1334
      %v1336 = vpop.xlane.xlu0 %1335
      %v1337 = vrcp.pop %v1336
      %v1338 = vmul.f32 %v1333, %v1337
      %1339 = vrot.lane.b32.xlu0 %v1096, 40
      %v1340 = vpop.permute.xlu0 %1339
      %v1343 = vsel %vm569, %v1338, 0
      %1345 = vmatpush.msra.mxu0 0.0
      %1346 = vmatpush.msra.mxu0 0.0
      %1347 = vmatpush.msra.mxu0 0.0
      %1348 = vmatpush.msra.mxu0 0.0
      %1349 = vmatpush.msra.mxu0 0.0
      %1350 = vmatpush.msra.mxu0 0.0
      %1351 = vmatpush.msra.mxu0 0.0
      %1352 = vmatpush.msra.mxu0 0.0
      %1353 = vmatpush.msra.mxu0 0.0
      %1354 = vmatpush.msra.mxu0 0.0
      %1355 = vmatpush.msra.mxu0 0.0
      %1356 = vmatpush.msra.mxu0 0.0
      %1357 = vmatpush.msra.mxu0 0.0
      %1358 = vmatpush.msra.mxu0 0.0
      %1359 = vmatpush.msra.mxu0 0.0
      %1360 = vmatpush.msra.mxu0 %v1340
      %1361 = vmatmul.f32.gmra.mxu0 %v1343
      %v1362 = vpop.f32.mrf.mxu0
      %v1363 = vadd.f32 0.0, %v1362
      %1364 = vdwg.mxu0
      %1366 = vrot.lane.b32.xlu0 %v1229, 8
      %v1367 = vpop.permute.xlu0 %1366
      %1370 = vrot.lane.b32.xlu0 %v1296, 16
      %v1371 = vpop.permute.xlu0 %1370
      %1374 = vrot.lane.b32.xlu0 %v1363, 24
      %v1375 = vpop.permute.xlu0 %1374
      %v1377 = vsel %vm569, %v1162, %v1367
      %v1378 = vsel %vm847, %v1377, %v1371
      %v1379 = vsel %vm849, %v1378, %v1375
      %s1380 = scalar_lea.vmem %s5, 32
      %v1381 = vld [vmem:[%s1380] sm:$0xff]
      %v1382 = vld [vmem:[%s1380 + $0x8] sm:$0xff]
      %v1383 = vld [vmem:[%s1380 + $0x10] sm:$0xff]
      %v1384 = vld [vmem:[%s1380 + $0x18] sm:$0xff]
      %s1385 = scalar_lea.vmem %s6, 1
      %v1386 = vld [vmem:[%s1385] sm:$0x1]
      %v1388 = vperm.slane %v1386, 0
      %v1391 = vsel %vm497, %v1379, 0
      %1393 = vmatpush.msra.mxu0 0.0
      %1394 = vmatpush.msra.mxu0 0.0
      %1395 = vmatpush.msra.mxu0 0.0
      %1396 = vmatpush.msra.mxu0 0.0
      %1397 = vmatpush.msra.mxu0 0.0
      %1398 = vmatpush.msra.mxu0 0.0
      %1399 = vmatpush.msra.mxu0 0.0
      %1400 = vmatpush.msra.mxu0 0.0
      %1401 = vmatpush.msra.mxu0 0.0
      %1402 = vmatpush.msra.mxu0 0.0
      %1403 = vmatpush.msra.mxu0 0.0
      %1404 = vmatpush.msra.mxu0 0.0
      %1405 = vmatpush.msra.mxu0 %v1384
      %1406 = vmatpush.msra.mxu0 %v1383
      %1407 = vmatpush.msra.mxu0 %v1382
      %1408 = vmatpush.msra.mxu0 %v1381
      %1409 = vmatmul.f32.gmra.mxu0 %v1391
      %v1410 = vpop.f32.mrf.mxu0
      %v1411 = vadd.f32 %v1388, %v1410
      %1412 = vdwg.mxu0
      %v1413 = vadd.f32 %v1030, %v1411
      %s1414 = scalar_lea.vmem %s7, 1
      %v1415 = vld [vmem:[%s1414] sm:$0x1]
      %s1416 = scalar_lea.vmem %s8, 1
      %v1417 = vld [vmem:[%s1416] sm:$0x1]
      %v1418 = vsel %vm497, %v1413, 0.0
      %1419 = vadd.xlane.f32.xlu0 %v1418
      %v1420 = vpop.xlane.xlu0 %1419
      %v1421 = vmul.f32 %v1420, %v507
      %v1422 = vsub.f32 %v1413, %v1421
      %v1423 = vmul.f32 %v1422, %v1422
      %v1424 = vsel %vm497, %v1423, 0.0
      %1425 = vadd.xlane.f32.xlu0 %v1424
      %v1426 = vpop.xlane.xlu0 %1425
      %v1427 = vmul.f32 %v1426, %v507
      %v1428 = vadd.f32 %v1427, 1e-05
      %v1429 = vrsqrt.pop %v1428
      %v1430 = vmul.f32 %v1429, %v1428
      %v1431 = vmul.f32 %v1430, %v1429
      %v1432 = vmul.f32 0.5, %v1431
      %v1433 = vsub.f32 1.5, %v1432
      %v1434 = vmul.f32 %v1429, %v1433
      %vm1435 = vweird.f32 %v1428
      %vm1436 = vweird.f32 %v1429
      %vm1437 = vmor %vm1435, %vm1436
      %v1438 = vsel %vm1437, %v1429, %v1434
      %v1439 = vmul.f32 %v1422, %v1438
      %v1441 = vperm.slane %v1415, 0
      %v1443 = vmul.f32 %v1439, %v1441
      %v1445 = vperm.slane %v1417, 0
      %v1447 = vadd.f32 %v1443, %v1445
      %s1448 = scalar_lea.vmem %s9, 32
      %v1449 = vld [vmem:[%s1448] sm:$0xff]
      %v1450 = vld [vmem:[%s1448 + $0x8] sm:$0xff]
      %v1451 = vld [vmem:[%s1448 + $0x10] sm:$0xff]
      %v1452 = vld [vmem:[%s1448 + $0x18] sm:$0xff]
      %s1453 = scalar_lea.vmem %s10, 1
      %v1454 = vld [vmem:[%s1453] sm:$0x1]
      %v1456 = vperm.slane %v1454, 0
      %v1459 = vsel %vm497, %v1447, 0
      %1461 = vmatpush.msra.mxu0 0.0
      %1462 = vmatpush.msra.mxu0 0.0
      %1463 = vmatpush.msra.mxu0 0.0
      %1464 = vmatpush.msra.mxu0 0.0
      %1465 = vmatpush.msra.mxu0 0.0
      %1466 = vmatpush.msra.mxu0 0.0
      %1467 = vmatpush.msra.mxu0 0.0
      %1468 = vmatpush.msra.mxu0 0.0
      %1469 = vmatpush.msra.mxu0 0.0
      %1470 = vmatpush.msra.mxu0 0.0
      %1471 = vmatpush.msra.mxu0 0.0
      %1472 = vmatpush.msra.mxu0 0.0
      %1473 = vmatpush.msra.mxu0 %v1452
      %1474 = vmatpush.msra.mxu0 %v1451
      %1475 = vmatpush.msra.mxu0 %v1450
      %1476 = vmatpush.msra.mxu0 %v1449
      %1477 = vmatmul.f32.gmra.mxu0 %v1459
      %v1478 = vpop.f32.mrf.mxu0
      %v1479 = vadd.f32 %v1456, %v1478
      %1480 = vdwg.mxu0
      %v1481 = vmul.f32 %v1479, 0.5
      %v1482 = vmul.f32 %v1479, 0.70710677
      %v1483 = vmul.f32 %v1482, %v1482
      %v1484 = vmin.f32 16.0, %v1483
      %v1485 = vmul.f32 %v1484, 2.1237322e-06
      %v1486 = vadd.f32 %v1485, 0.00028619796
      %v1487 = vmul.f32 %v1484, %v1486
      %v1488 = vadd.f32 %v1487, 0.0036580483
      %v1489 = vmul.f32 %v1484, %v1488
      %v1490 = vadd.f32 %v1489, 0.05243302
      %v1491 = vmul.f32 %v1484, %v1490
      %v1492 = vadd.f32 %v1491, 0.18741608
      %v1493 = vmul.f32 %v1484, %v1492
      %v1494 = vadd.f32 %v1493, 1.1283791
      %v1495 = vmul.f32 %v1482, %v1494
      %v1496 = vmul.f32 %v1484, 3.8918573e-05
      %v1497 = vadd.f32 %v1496, 0.001143296
      %v1498 = vmul.f32 %v1484, %v1497
      %v1499 = vadd.f32 %v1498, 0.014752088
      %v1500 = vmul.f32 %v1484, %v1499
      %v1501 = vadd.f32 %v1500, 0.112945676
      %v1502 = vmul.f32 %v1484, %v1501
      %v1503 = vadd.f32 %v1502, 0.4994258
      %v1504 = vmul.f32 %v1484, %v1503
      %v1505 = vadd.f32 %v1504, 1.0
      %v1506 = vrcp.pop %v1505
      %v1507 = vmul.f32 %v1505, %v1506
      %v1508 = vsub.f32 1.0, %v1507
      %v1509 = vmul.f32 %v1506, %v1508
      %v1510 = vadd.f32 %v1506, %v1509
      %vm1511 = vweird.f32 %v1505
      %vm1512 = vweird.f32 %v1506
      %vm1513 = vmor %vm1511, %vm1512
      %v1514 = vsel %vm1513, %v1506, %v1510
      %v1515 = vand.u32 2147483647, %v1505
      %vm1516 = vcmp.eq.f32.partialorder %v1515, 8.507059e+37
      %v1517 = vand.u32 %v1505, 2147483648
      %v1518 = vor.u32 1.1754944e-38, %v1517
      %v1519 = vsel %vm1516, %v1518, %v1514
      %v1520 = vmul.f32 %v1495, %v1519
      %v1521 = vmin.f32 %v1520, 1.0
      %v1522 = vmax.f32 %v1521, -1.0
      %v1523 = vadd.f32 %v1522, 1.0
      %v1524 = vmul.f32 %v1481, %v1523
      %s1525 = scalar_lea.vmem %s11, 128
      %v1526 = vld [vmem:[%s1525] sm:$0xff]
      %v1527 = vld [vmem:[%s1525 + $0x8] sm:$0xff]
      %v1528 = vld [vmem:[%s1525 + $0x10] sm:$0xff]
      %v1529 = vld [vmem:[%s1525 + $0x18] sm:$0xff]
      %v1530 = vld [vmem:[%s1525 + $0x20] sm:$0xff]
      %v1531 = vld [vmem:[%s1525 + $0x28] sm:$0xff]
      %v1532 = vld [vmem:[%s1525 + $0x30] sm:$0xff]
      %v1533 = vld [vmem:[%s1525 + $0x38] sm:$0xff]
      %v1534 = vld [vmem:[%s1525 + $0x40] sm:$0xff]
      %v1535 = vld [vmem:[%s1525 + $0x48] sm:$0xff]
      %v1536 = vld [vmem:[%s1525 + $0x50] sm:$0xff]
      %v1537 = vld [vmem:[%s1525 + $0x58] sm:$0xff]
      %v1538 = vld [vmem:[%s1525 + $0x60] sm:$0xff]
      %v1539 = vld [vmem:[%s1525 + $0x68] sm:$0xff]
      %v1540 = vld [vmem:[%s1525 + $0x70] sm:$0xff]
      %v1541 = vld [vmem:[%s1525 + $0x78] sm:$0xff]
      %s1542 = scalar_lea.vmem %s12, 1
      %v1543 = vld [vmem:[%s1542] sm:$0x1]
      %v1545 = vperm.slane %v1543, 0
      %1547 = vmatpush.msra.mxu0 %v1541
      %1548 = vmatpush.msra.mxu0 %v1540
      %1549 = vmatpush.msra.mxu0 %v1539
      %1550 = vmatpush.msra.mxu0 %v1538
      %1551 = vmatpush.msra.mxu0 %v1537
      %1552 = vmatpush.msra.mxu0 %v1536
      %1553 = vmatpush.msra.mxu0 %v1535
      %1554 = vmatpush.msra.mxu0 %v1534
      %1555 = vmatpush.msra.mxu0 %v1533
      %1556 = vmatpush.msra.mxu0 %v1532
      %1557 = vmatpush.msra.mxu0 %v1531
      %1558 = vmatpush.msra.mxu0 %v1530
      %1559 = vmatpush.msra.mxu0 %v1529
      %1560 = vmatpush.msra.mxu0 %v1528
      %1561 = vmatpush.msra.mxu0 %v1527
      %1562 = vmatpush.msra.mxu0 %v1526
      %1563 = vmatmul.f32.gmra.mxu0 %v1524
      %v1564 = vpop.f32.mrf.mxu0
      %v1565 = vadd.f32 %v1545, %v1564
      %1566 = vdwg.mxu0
      %v1567 = vadd.f32 %v1413, %v1565
      %v1568 = vld [vmem:[%s13] sm:$0x1]
      %v1569 = vld [vmem:[%s14] sm:$0x1]
      %v1570 = vsel %vm497, %v1567, 0.0
      %1571 = vadd.xlane.f32.xlu0 %v1570
      %v1572 = vpop.xlane.xlu0 %1571
      %v1573 = vmul.f32 %v1572, %v507
      %v1574 = vsub.f32 %v1567, %v1573
      %v1575 = vmul.f32 %v1574, %v1574
      %v1576 = vsel %vm497, %v1575, 0.0
      %1577 = vadd.xlane.f32.xlu0 %v1576
      %v1578 = vpop.xlane.xlu0 %1577
      %v1579 = vmul.f32 %v1578, %v507
      %v1580 = vadd.f32 %v1579, 1e-05
      %v1581 = vrsqrt.pop %v1580
      %v1582 = vmul.f32 %v1581, %v1580
      %v1583 = vmul.f32 %v1582, %v1581
      %v1584 = vmul.f32 0.5, %v1583
      %v1585 = vsub.f32 1.5, %v1584
      %v1586 = vmul.f32 %v1581, %v1585
      %vm1587 = vweird.f32 %v1580
      %vm1588 = vweird.f32 %v1581
      %vm1589 = vmor %vm1587, %vm1588
      %v1590 = vsel %vm1589, %v1581, %v1586
      %v1591 = vmul.f32 %v1574, %v1590
      %v1593 = vperm.slane %v1568, 0
      %v1595 = vmul.f32 %v1591, %v1593
      %v1597 = vperm.slane %v1569, 0
      %v1599 = vadd.f32 %v1595, %v1597
      %1600 = vst.msk [vmem:[%s489] sm:$0xff] %vm497, %v1599
      %p1601 = scmp.lt.s32.totalorder %s26, 1
      %s1602 = scalar_select %p1601, %s26, 1
      %s1603 = smul.addr %s1602, 8
      %s1604 = scalar_lea.vmem %s15, %s1603
      // Predicated region
      $region81: #{forward.5} parent=79 // pred_check
        %p1605 = pneg %p364
      $region82: #{forward.5} parent=79 // pred_check_branch
        %1607 = sbr.rel (%p1605) target = $region84
      $region83: #{forward.5} parent=79 // pred_region
        _
      $region84: #{forward.5} parent=79 // pred_fallthru
        _
    $region80: #{forward.5} parent=5 // pred_fallthru
      _
    %p1608 = scmp.le.s32.totalorder 2, %s21
    // Predicated region
    $region85: #{forward.5} parent=5 // pred_check
      %p1609 = pneg %p1608
    $region86: #{forward.5} parent=5 // pred_check_branch
      %1611 = sbr.rel (%p1609) target = $region88
    $region87: #{forward.5} parent=5 // pred_region
      %s1612 = ssub.s32 %s21, 2
      // Predicated region
      $region89: #{forward.5} parent=87 // pred_check
        %p1613 = pneg %p370
      $region90: #{forward.5} parent=87 // pred_check_branch
        %1615 = sbr.rel (%p1613) target = $region92
      $region91: #{forward.5} parent=87 // pred_region
        %p1616 = scmp.lt.s32.totalorder %s27, 1
        %s1617 = scalar_select %p1616, %s27, 1
        %s1618 = smul.addr %s1617, 8
        %s1619 = scalar_lea.vmem %s15, %s1618
      $region92: #{forward.5} parent=87 // pred_fallthru
        _
    $region88: #{forward.5} parent=5 // pred_fallthru
      _
  $region6: #{forward.5} parent=0 // loop_footer
    %s25 = sadd.s32 1, %s21
  $region7: #{forward.5} parent=0 // loop_footer_branch
    %20 = sbr.rel target = $region3
  $region8: #{forward.5} parent=0 // loop_exit
    _

</llo_original>
